<compile_context>
chip_gen: v5e
topology: v5e:2x2
jax: 0.10.0
libtpu: 0.0.40
codegen_flags: <defaults>
</compile_context>

<pallas_src>
import functools

import jax
import jax.numpy as jnp
from jax import lax
from jax.experimental import pallas as pl
from jax.experimental.pallas import tpu as pltpu

NEG_SLOPE = 0.2
BN_EPS = 1e-5
LANE = 128


def _round_up(x, m):
    return (x + m - 1) // m * m


def _device_config():
    """Per-generation VMEM limit / max row tile (v5e,v6e: 128 MiB VMEM; v7x: 64 MiB)."""
    vmem_limit = 48 * 1024 * 1024
    tm_cap = 256
    try:
        vmem_bytes = int(pltpu.get_tpu_info().vmem_capacity_bytes)
        if vmem_bytes >= 100 * 1024 * 1024:          # v5e / v6e (128 MiB physical)
            vmem_limit, tm_cap = 96 * 1024 * 1024, 1024
        else:                                        # v7x (64 MiB per TensorCore)
            vmem_limit, tm_cap = 48 * 1024 * 1024, 256
    except Exception:
        pass                                         # conservative defaults
    return dict(vmem_limit=vmem_limit, tm_cap=tm_cap)


def _choose_tm(m, cap):
    # Multiple of 32 rows (bf16 packs 16 rows per vreg), capped by the chip budget.
    return min(cap, max(32, _round_up(m, 32)))


# --------------------------------------------------------------------------
# Kernel 1: conv-as-GEMM row tile.  The full (K, Cout) bf16 weight block stays
# VMEM resident (constant index_map -> fetched once); each grid step streams one
# (tm, K) row tile of the im2col matrix, does a single MXU dot with f32
# accumulation, fuses bias (+ optional LeakyReLU), stores bf16/f32, and
# optionally emits per-tile BatchNorm partial sums (sum, sum of squares).
# --------------------------------------------------------------------------
def _conv_mm_kernel(x_ref, w_ref, b_ref, o_ref, *stats_refs, apply_act, with_stats):
    y = jnp.dot(x_ref[...], w_ref[...], preferred_element_type=jnp.float32)
    y = y + b_ref[...]
    if apply_act:
        y = jnp.where(y >= 0, y, NEG_SLOPE * y)
    o_ref[...] = y.astype(o_ref.dtype)
    if with_stats:
        sum_ref, sq_ref = stats_refs
        # Per-M-tile partial stats (reduced in JAX).  Padded rows are exactly
        # zero (BN layers have zero bias) so they contribute nothing.
        sum_ref[...] = jnp.sum(y, axis=0, keepdims=True)[None]
        sq_ref[...] = jnp.sum(y * y, axis=0, keepdims=True)[None]


def conv_matmul(cols, wmat, bias_row, *, apply_act, with_stats, out_dtype, tm,
                vmem_limit):
    Mp, K = cols.shape
    K2, Np = wmat.shape
    assert K == K2 and Mp % tm == 0
    num_i = Mp // tm

    in_specs = [
        pl.BlockSpec((tm, K), lambda i: (i, 0)),     # im2col rows, streamed once
        pl.BlockSpec((K, Np), lambda i: (0, 0)),     # resident weights
        pl.BlockSpec((1, Np), lambda i: (0, 0)),     # resident bias row
    ]
    o_spec = pl.BlockSpec((tm, Np), lambda i: (i, 0))
    o_shape = jax.ShapeDtypeStruct((Mp, Np), out_dtype)

    if with_stats:
        stat_spec = pl.BlockSpec((1, 1, Np), lambda i: (i, 0, 0))
        out_specs = (o_spec, stat_spec, stat_spec)
        out_shape = (o_shape,
                     jax.ShapeDtypeStruct((num_i, 1, Np), jnp.float32),
                     jax.ShapeDtypeStruct((num_i, 1, Np), jnp.float32))
    else:
        out_specs = o_spec
        out_shape = o_shape

    return pl.pallas_call(
        functools.partial(_conv_mm_kernel, apply_act=apply_act,
                          with_stats=with_stats),
        out_shape=out_shape,
        grid_spec=pltpu.PrefetchScalarGridSpec(
            num_scalar_prefetch=0,
            grid=(num_i,),
            in_specs=in_specs,
            out_specs=out_specs,
        ),
        compiler_params=pltpu.CompilerParams(
            dimension_semantics=("parallel",),
            vmem_limit_bytes=vmem_limit),
    )(cols, wmat, bias_row)


# --------------------------------------------------------------------------
# Kernel 2: tiled elementwise y = LeakyReLU(x * scale + shift)  (BN apply),
# bf16 in / bf16 out, f32 math in-register.
# --------------------------------------------------------------------------
def _bn_act_kernel(x_ref, scale_ref, shift_ref, o_ref):
    y = x_ref[...].astype(jnp.float32) * scale_ref[...] + shift_ref[...]
    o_ref[...] = jnp.where(y >= 0, y, NEG_SLOPE * y).astype(o_ref.dtype)


def bn_leakyrelu(x, scale_row, shift_row, *, tm, vmem_limit):
    Mp, Np = x.shape
    return pl.pallas_call(
        _bn_act_kernel,
        out_shape=jax.ShapeDtypeStruct((Mp, Np), jnp.bfloat16),
        grid_spec=pltpu.PrefetchScalarGridSpec(
            num_scalar_prefetch=0,
            grid=(Mp // tm,),
            in_specs=[pl.BlockSpec((tm, Np), lambda i: (i, 0)),
                      pl.BlockSpec((1, Np), lambda i: (0, 0)),
                      pl.BlockSpec((1, Np), lambda i: (0, 0))],
            out_specs=pl.BlockSpec((tm, Np), lambda i: (i, 0)),
        ),
        compiler_params=pltpu.CompilerParams(
            dimension_semantics=("parallel",),
            vmem_limit_bytes=vmem_limit),
    )(x, scale_row, shift_row)


# --------------------------------------------------------------------------
# Glue: im2col (bf16 operands for the MXU)
# --------------------------------------------------------------------------
def im2col_bf16(x_nhwc, kh, kw, stride, pad):
    # TODO(synk): lower the 4x4 conv fully inside Pallas (tap-reduction grid axis /
    # manual DMA of strided input windows) so the duplicated patch matrix never
    # hits HBM; that is the remaining largest traffic term.
    n, h, w, c = x_nhwc.shape
    xp = jnp.pad(x_nhwc.astype(jnp.bfloat16),
                 ((0, 0), (pad, pad), (pad, pad), (0, 0)))
    hp, wp = h + 2 * pad, w + 2 * pad
    oh = (hp - kh) // stride + 1
    ow = (wp - kw) // stride + 1
    taps = []
    for i in range(kh):
        for j in range(kw):
            taps.append(xp[:, i:i + stride * (oh - 1) + 1:stride,
                           j:j + stride * (ow - 1) + 1:stride, :])
    patches = jnp.stack(taps, axis=3)                 # (N, oh, ow, kh*kw, C)
    return patches.reshape(n * oh * ow, kh * kw * c), (n, oh, ow)


# --------------------------------------------------------------------------
# Model definition (mirrors NLayerDiscriminator.__init__ with BatchNorm2d)
# --------------------------------------------------------------------------
def build_layer_specs(input_nc, ndf, n_layers):
    specs = [dict(cin=input_nc, cout=ndf, stride=2, bn=False, bias=True, act=True)]
    nf_mult = 1
    for n in range(1, n_layers):
        nf_mult_prev = nf_mult
        nf_mult = min(2 ** n, 8)
        specs.append(dict(cin=ndf * nf_mult_prev, cout=ndf * nf_mult,
                          stride=2, bn=True, bias=False, act=True))
    nf_mult_prev = nf_mult
    nf_mult = min(2 ** n_layers, 8)
    specs.append(dict(cin=ndf * nf_mult_prev, cout=ndf * nf_mult,
                      stride=1, bn=True, bias=False, act=True))
    specs.append(dict(cin=ndf * nf_mult, cout=1,
                      stride=1, bn=False, bias=True, act=False))
    return specs


def init_params(key, specs):
    params = []
    for s in specs:
        key, k1, k2, k3, k4 = jax.random.split(key, 5)
        p = dict(
            w=0.1 * jax.random.normal(k1, (s["cout"], s["cin"], 4, 4), jnp.float32),
            b=(0.1 * jax.random.normal(k2, (s["cout"],), jnp.float32)
               if s["bias"] else jnp.zeros((s["cout"],), jnp.float32)),
        )
        if s["bn"]:
            p["gamma"] = 1.0 + 0.1 * jax.random.normal(k3, (s["cout"],), jnp.float32)
            p["beta"] = 0.1 * jax.random.normal(k4, (s["cout"],), jnp.float32)
        params.append(p)
    return params


def prepare_padded_params(specs, params):
    """Pad weights / bias / gamma / beta to lane-aligned channel counts ONCE.

    Activations carried between layers keep their channel dim padded to a
    multiple of 128 (padded channels stay exactly zero)."""
    prepped = []
    for idx, (s, p) in enumerate(zip(specs, params)):
        assert not (s["bn"] and s["bias"]), "fused BN stats rely on zero bias"
        cin, cout = s["cin"], s["cout"]
        cin_pad = cin if idx == 0 else _round_up(cin, LANE)
        cout_pad = _round_up(cout, LANE)
        w = jnp.transpose(p["w"], (2, 3, 1, 0))            # (kh, kw, cin, cout)
        w = jnp.pad(w, ((0, 0), (0, 0), (0, cin_pad - cin), (0, cout_pad - cout)))
        wmat = w.reshape(16 * cin_pad, cout_pad)
        kp = _round_up(wmat.shape[0], LANE)                # only layer 0 pads K
        wmat = jnp.pad(wmat, ((0, kp - wmat.shape[0]), (0, 0))).astype(jnp.bfloat16)
        brow = jnp.zeros((1, cout_pad), jnp.float32).at[0, :cout].set(p["b"])
        entry = dict(wmat=wmat, brow=brow)
        if s["bn"]:
            entry["gamma"] = jnp.ones((cout_pad,), jnp.float32).at[:cout].set(p["gamma"])
            entry["beta"] = jnp.zeros((cout_pad,), jnp.float32).at[:cout].set(p["beta"])
        prepped.append(entry)
    return prepped


def nlayer_discriminator_forward(x_nchw, specs, padded_params, cfg):
    x = jnp.transpose(x_nchw, (0, 2, 3, 1)).astype(jnp.bfloat16)   # NCHW -> NHWC
    n_total = len(specs)
    for li, (s, p) in enumerate(zip(specs, padded_params)):
        cols, (nb, oh, ow) = im2col_bf16(x, 4, 4, s["stride"], 1)
        m, k = cols.shape
        kp, np_ = p["wmat"].shape
        tm = _choose_tm(m, cfg["tm_cap"])
        mp = _round_up(m, tm)
        if (mp, kp) != (m, k):
            # Single pad, fused with the im2col reshape; padded rows stay zero.
            cols = jnp.pad(cols, ((0, mp - m), (0, kp - k)))
        is_last = li == n_total - 1
        out_dtype = jnp.float32 if is_last else jnp.bfloat16

        if s["bn"]:
            # Conv; training-mode BN statistics (over N*H*W) fused in the epilogue
            # as per-M-tile partial sums (M axis stays "parallel").
            y, ssum, ssq = conv_matmul(cols, p["wmat"], p["brow"],
                                       apply_act=False, with_stats=True,
                                       out_dtype=jnp.bfloat16,
                                       tm=tm, vmem_limit=cfg["vmem_limit"])
            ssum = jnp.sum(ssum, axis=(0, 1))
            ssq = jnp.sum(ssq, axis=(0, 1))
            mean = ssum / m                              # divide by TRUE row count
            # TODO(synk): one-pass E[x^2]-mean^2 (clamped); a per-tile Welford/Chan
            # merge would be numerically sturdier for large activation means.
            var = jnp.maximum(ssq / m - mean * mean, 0.0)
            scale = p["gamma"] * lax.rsqrt(var + BN_EPS)
            shift = p["beta"] - mean * scale
            # TODO(synk): fold scale/shift+LeakyReLU into the NEXT layer's GEMM
            # prologue (needs per-channel pad values + masked stats) to remove
            # this bf16 activation round trip entirely.
            y = bn_leakyrelu(y, scale.reshape(1, -1), shift.reshape(1, -1),
                             tm=tm, vmem_limit=cfg["vmem_limit"])
        else:
            y = conv_matmul(cols, p["wmat"], p["brow"],
                            apply_act=s["act"], with_stats=False,
                            out_dtype=out_dtype,
                            tm=tm, vmem_limit=cfg["vmem_limit"])
        if mp != m:
            y = y[:m]
        x = y.reshape(nb, oh, ow, np_)
    x = x[..., :specs[-1]["cout"]].astype(jnp.float32)   # drop lane padding (cout=1)
    return jnp.transpose(x, (0, 3, 1, 2))                # NHWC -> NCHW


# --------------------------------------------------------------------------
# Plain-JAX reference with the same numerics policy as the kernels
# (bf16 conv operands, f32 accumulation/stats, bf16 intermediate storage).
# --------------------------------------------------------------------------
def reference_forward(x_nchw, specs, params):
    def bf16_round(v):
        return v.astype(jnp.bfloat16).astype(jnp.float32)

    x = x_nchw
    n_total = len(specs)
    for li, (s, p) in enumerate(zip(specs, params)):
        x = lax.conv_general_dilated(
            x.astype(jnp.bfloat16), p["w"].astype(jnp.bfloat16),
            (s["stride"], s["stride"]), [(1, 1), (1, 1)],
            dimension_numbers=("NCHW", "OIHW", "NCHW"),
            preferred_element_type=jnp.float32)
        x = x + p["b"][None, :, None, None]
        if s["bn"]:
            mean = jnp.mean(x, axis=(0, 2, 3), keepdims=True)
            var = jnp.mean((x - mean) ** 2, axis=(0, 2, 3), keepdims=True)
            x = bf16_round(x)                            # conv output stored bf16
            x = ((x - mean) / jnp.sqrt(var + BN_EPS)
                 * p["gamma"][None, :, None, None] + p["beta"][None, :, None, None])
        if s["act"]:
            x = jnp.where(x >= 0, x, NEG_SLOPE * x)
        if li != n_total - 1:
            x = bf16_round(x)                            # intermediates stored bf16
    return x


if __name__ == "__main__":
    # Small config consistent with the module: input_nc=3, ndf=8, n_layers=3.
    # 32x32 spatial so all five 4x4 convs produce valid sizes (16, 8, 4, 3, 2).
    input_nc, ndf, n_layers = 3, 8, 3
    key = jax.random.PRNGKey(0)
    kx, kparam = jax.random.split(key)
    x = jax.random.normal(kx, (2, input_nc, 32, 32), jnp.float32)

    specs = build_layer_specs(input_nc, ndf, n_layers)
    params = init_params(kparam, specs)
    padded_params = prepare_padded_params(specs, params)
    cfg = _device_config()

    fwd = jax.jit(lambda inp, pp: nlayer_discriminator_forward(inp, specs, pp, cfg))
    out = jax.block_until_ready(fwd(x, padded_params))

    ref = reference_forward(x, specs, params)
    assert out.shape == ref.shape, (out.shape, ref.shape)
    rel = float(jnp.max(jnp.abs(out - ref)) / (jnp.max(jnp.abs(ref)) + 1e-6))
    assert rel < 3e-2, f"relative error vs reference: {rel}"

    print("KERNEL_OK")
</pallas_src>

<mosaic_0001>
module attributes {stable_mosaic.version = 11 : i64} {
  func.func @_conv_mm_kernel(%arg0: i32, %arg1: memref<256x128xbf16, #tpu.memory_space<vmem>>, %arg2: memref<128x128xbf16, #tpu.memory_space<vmem>>, %arg3: memref<1x128xf32, #tpu.memory_space<vmem>>, %arg4: memref<256x128xbf16, #tpu.memory_space<vmem>>) attributes {dimension_semantics = [#tpu.dimension_semantics<parallel>], iteration_bounds = array<i64: 2>, scalar_prefetch = 0 : i64, scratch_operands = 0 : i64, tpu.core_type = #tpu.core_type<tc>, window_params = [{transform_indices = @transform_0, window_bounds = array<i64: 256, 128>}, {pipeline_mode = #tpu.pipeline_mode<synchronous>, transform_indices = @transform_1, window_bounds = array<i64: 128, 128>}, {pipeline_mode = #tpu.pipeline_mode<synchronous>, transform_indices = @transform_2, window_bounds = array<i64: 1, 128>}, {transform_indices = @transform_3, window_bounds = array<i64: 256, 128>}]} {
    %c0 = arith.constant 0 : index
    %c0_0 = arith.constant 0 : index
    %0 = vector.load %arg1[%c0, %c0_0] : memref<256x128xbf16, #tpu.memory_space<vmem>>, vector<256x128xbf16>
    %c0_1 = arith.constant 0 : index
    %c0_2 = arith.constant 0 : index
    %1 = vector.load %arg2[%c0_1, %c0_2] : memref<128x128xbf16, #tpu.memory_space<vmem>>, vector<128x128xbf16>
    %cst = arith.constant dense<0.000000e+00> : vector<256x128xf32>
    %2 = tpu.matmul %0, %1, %cst {dimension_numbers = #tpu.dot_dimension_numbers<[1], [0], [0], [1], [0, 0, 1, 1], [], []>} : vector<256x128xbf16>, vector<128x128xbf16>, vector<256x128xf32> -> vector<256x128xf32>
    %c0_3 = arith.constant 0 : index
    %c0_4 = arith.constant 0 : index
    %3 = vector.load %arg3[%c0_3, %c0_4] : memref<1x128xf32, #tpu.memory_space<vmem>>, vector<1x128xf32>
    %4 = vector.broadcast %3 : vector<1x128xf32> to vector<256x128xf32>
    %5 = arith.addf %2, %4 : vector<256x128xf32>
    %cst_5 = arith.constant 0.000000e+00 : f32
    %6 = vector.broadcast %cst_5 : f32 to vector<256x128xf32>
    %7 = arith.cmpf oge, %5, %6 : vector<256x128xf32>
    %cst_6 = arith.constant 2.000000e-01 : f32
    %8 = vector.broadcast %cst_6 : f32 to vector<256x128xf32>
    %9 = arith.mulf %8, %5 : vector<256x128xf32>
    %10 = arith.select %7, %5, %9 : vector<256x128xi1>, vector<256x128xf32>
    %11 = arith.truncf %10 : vector<256x128xf32> to vector<256x128xbf16>
    %c0_7 = arith.constant 0 : index
    %c0_8 = arith.constant 0 : index
    %12 = vector.load %arg4[%c0_7, %c0_8] : memref<256x128xbf16, #tpu.memory_space<vmem>>, vector<256x128xbf16>
    tpu.vector_store %arg4[%c0_7, %c0_8], %11 {strides = array<i32>} : memref<256x128xbf16, #tpu.memory_space<vmem>>, vector<256x128xbf16>,
    return
  }
  func.func @transform_0(%arg0: i32) -> (i32, i32) {
    %c0_i32 = arith.constant 0 : i32
    %c0_i32_0 = arith.constant 0 : i32
    return %arg0, %c0_i32 : i32, i32
  }
  func.func @transform_1(%arg0: i32) -> (i32, i32) {
    %c0_i32 = arith.constant 0 : i32
    %c0_i32_0 = arith.constant 0 : i32
    %c0_i32_1 = arith.constant 0 : i32
    return %c0_i32, %c0_i32_0 : i32, i32
  }
  func.func @transform_2(%arg0: i32) -> (i32, i32) {
    %c0_i32 = arith.constant 0 : i32
    %c0_i32_0 = arith.constant 0 : i32
    %c0_i32_1 = arith.constant 0 : i32
    return %c0_i32, %c0_i32_0 : i32, i32
  }
  func.func @transform_3(%arg0: i32) -> (i32, i32) {
    %c0_i32 = arith.constant 0 : i32
    %c0_i32_0 = arith.constant 0 : i32
    return %arg0, %c0_i32 : i32, i32
  }
}

module attributes {stable_mosaic.version = 11 : i64} {
  func.func @_conv_mm_kernel(%arg0: i32, %arg1: memref<128x2048xbf16, #tpu.memory_space<vmem>>, %arg2: memref<2048x128xbf16, #tpu.memory_space<vmem>>, %arg3: memref<1x128xf32, #tpu.memory_space<vmem>>, %arg4: memref<128x128xbf16, #tpu.memory_space<vmem>>, %arg5: memref<1x1x128xf32, #tpu.memory_space<vmem>>, %arg6: memref<1x1x128xf32, #tpu.memory_space<vmem>>) attributes {dimension_semantics = [#tpu.dimension_semantics<parallel>], iteration_bounds = array<i64: 1>, scalar_prefetch = 0 : i64, scratch_operands = 0 : i64, tpu.core_type = #tpu.core_type<tc>, window_params = [{transform_indices = @transform_0, window_bounds = array<i64: 128, 2048>}, {pipeline_mode = #tpu.pipeline_mode<synchronous>, transform_indices = @transform_1, window_bounds = array<i64: 2048, 128>}, {pipeline_mode = #tpu.pipeline_mode<synchronous>, transform_indices = @transform_2, window_bounds = array<i64: 1, 128>}, {transform_indices = @transform_3, window_bounds = array<i64: 128, 128>}, {transform_indices = @transform_4, window_bounds = array<i64: 1, 1, 128>}, {transform_indices = @transform_5, window_bounds = array<i64: 1, 1, 128>}]} {
    %c0 = arith.constant 0 : index
    %c0_0 = arith.constant 0 : index
    %0 = vector.load %arg1[%c0, %c0_0] : memref<128x2048xbf16, #tpu.memory_space<vmem>>, vector<128x2048xbf16>
    %c0_1 = arith.constant 0 : index
    %c0_2 = arith.constant 0 : index
    %1 = vector.load %arg2[%c0_1, %c0_2] : memref<2048x128xbf16, #tpu.memory_space<vmem>>, vector<2048x128xbf16>
    %cst = arith.constant dense<0.000000e+00> : vector<128x128xf32>
    %2 = tpu.matmul %0, %1, %cst {dimension_numbers = #tpu.dot_dimension_numbers<[1], [0], [0], [1], [0, 0, 1, 1], [], []>} : vector<128x2048xbf16>, vector<2048x128xbf16>, vector<128x128xf32> -> vector<128x128xf32>
    %c0_3 = arith.constant 0 : index
    %c0_4 = arith.constant 0 : index
    %3 = vector.load %arg3[%c0_3, %c0_4] : memref<1x128xf32, #tpu.memory_space<vmem>>, vector<1x128xf32>
    %4 = vector.broadcast %3 : vector<1x128xf32> to vector<128x128xf32>
    %5 = arith.addf %2, %4 : vector<128x128xf32>
    %6 = arith.truncf %5 : vector<128x128xf32> to vector<128x128xbf16>
    %c0_5 = arith.constant 0 : index
    %c0_6 = arith.constant 0 : index
    %7 = vector.load %arg4[%c0_5, %c0_6] : memref<128x128xbf16, #tpu.memory_space<vmem>>, vector<128x128xbf16>
    tpu.vector_store %arg4[%c0_5, %c0_6], %6 {strides = array<i32>} : memref<128x128xbf16, #tpu.memory_space<vmem>>, vector<128x128xbf16>,
    %cst_7 = arith.constant dense<0.000000e+00> : vector<128xf32>
    %8 = vector.multi_reduction <add>, %5, %cst_7 [0] : vector<128x128xf32> to vector<128xf32>
    %9 = vector.shape_cast %8 : vector<128xf32> to vector<1x128xf32>
    %10 = vector.shape_cast %9 : vector<1x128xf32> to vector<1x1x128xf32>
    %c0_8 = arith.constant 0 : index
    %c0_9 = arith.constant 0 : index
    %c0_10 = arith.constant 0 : index
    %11 = vector.load %arg5[%c0_8, %c0_9, %c0_10] : memref<1x1x128xf32, #tpu.memory_space<vmem>>, vector<1x1x128xf32>
    tpu.vector_store %arg5[%c0_8, %c0_9, %c0_10], %10 {strides = array<i32>} : memref<1x1x128xf32, #tpu.memory_space<vmem>>, vector<1x1x128xf32>,
    %12 = arith.mulf %5, %5 : vector<128x128xf32>
    %cst_11 = arith.constant dense<0.000000e+00> : vector<128xf32>
    %13 = vector.multi_reduction <add>, %12, %cst_11 [0] : vector<128x128xf32> to vector<128xf32>
    %14 = vector.shape_cast %13 : vector<128xf32> to vector<1x128xf32>
    %15 = vector.shape_cast %14 : vector<1x128xf32> to vector<1x1x128xf32>
    %c0_12 = arith.constant 0 : index
    %c0_13 = arith.constant 0 : index
    %c0_14 = arith.constant 0 : index
    %16 = vector.load %arg6[%c0_12, %c0_13, %c0_14] : memref<1x1x128xf32, #tpu.memory_space<vmem>>, vector<1x1x128xf32>
    tpu.vector_store %arg6[%c0_12, %c0_13, %c0_14], %15 {strides = array<i32>} : memref<1x1x128xf32, #tpu.memory_space<vmem>>, vector<1x1x128xf32>,
    return
  }
  func.func @transform_0(%arg0: i32) -> (i32, i32) {
    %c0_i32 = arith.constant 0 : i32
    %c0_i32_0 = arith.constant 0 : i32
    return %arg0, %c0_i32 : i32, i32
  }
  func.func @transform_1(%arg0: i32) -> (i32, i32) {
    %c0_i32 = arith.constant 0 : i32
    %c0_i32_0 = arith.constant 0 : i32
    %c0_i32_1 = arith.constant 0 : i32
    return %c0_i32, %c0_i32_0 : i32, i32
  }
  func.func @transform_2(%arg0: i32) -> (i32, i32) {
    %c0_i32 = arith.constant 0 : i32
    %c0_i32_0 = arith.constant 0 : i32
    %c0_i32_1 = arith.constant 0 : i32
    return %c0_i32, %c0_i32_0 : i32, i32
  }
  func.func @transform_3(%arg0: i32) -> (i32, i32) {
    %c0_i32 = arith.constant 0 : i32
    %c0_i32_0 = arith.constant 0 : i32
    return %arg0, %c0_i32 : i32, i32
  }
  func.func @transform_4(%arg0: i32) -> (i32, i32, i32) {
    %c0_i32 = arith.constant 0 : i32
    %c0_i32_0 = arith.constant 0 : i32
    %c0_i32_1 = arith.constant 0 : i32
    return %arg0, %c0_i32, %c0_i32_0 : i32, i32, i32
  }
  func.func @transform_5(%arg0: i32) -> (i32, i32, i32) {
    %c0_i32 = arith.constant 0 : i32
    %c0_i32_0 = arith.constant 0 : i32
    %c0_i32_1 = arith.constant 0 : i32
    return %arg0, %c0_i32, %c0_i32_0 : i32, i32, i32
  }
}

module attributes {stable_mosaic.version = 11 : i64} {
  func.func @_bn_act_kernel(%arg0: i32, %arg1: memref<128x128xbf16, #tpu.memory_space<vmem>>, %arg2: memref<1x128xf32, #tpu.memory_space<vmem>>, %arg3: memref<1x128xf32, #tpu.memory_space<vmem>>, %arg4: memref<128x128xbf16, #tpu.memory_space<vmem>>) attributes {dimension_semantics = [#tpu.dimension_semantics<parallel>], iteration_bounds = array<i64: 1>, scalar_prefetch = 0 : i64, scratch_operands = 0 : i64, tpu.core_type = #tpu.core_type<tc>, window_params = [{transform_indices = @transform_0, window_bounds = array<i64: 128, 128>}, {pipeline_mode = #tpu.pipeline_mode<synchronous>, transform_indices = @transform_1, window_bounds = array<i64: 1, 128>}, {pipeline_mode = #tpu.pipeline_mode<synchronous>, transform_indices = @transform_2, window_bounds = array<i64: 1, 128>}, {transform_indices = @transform_3, window_bounds = array<i64: 128, 128>}]} {
    %c0 = arith.constant 0 : index
    %c0_0 = arith.constant 0 : index
    %0 = vector.load %arg1[%c0, %c0_0] : memref<128x128xbf16, #tpu.memory_space<vmem>>, vector<128x128xbf16>
    %1 = arith.extf %0 : vector<128x128xbf16> to vector<128x128xf32>
    %c0_1 = arith.constant 0 : index
    %c0_2 = arith.constant 0 : index
    %2 = vector.load %arg2[%c0_1, %c0_2] : memref<1x128xf32, #tpu.memory_space<vmem>>, vector<1x128xf32>
    %3 = vector.broadcast %2 : vector<1x128xf32> to vector<128x128xf32>
    %4 = arith.mulf %1, %3 : vector<128x128xf32>
    %c0_3 = arith.constant 0 : index
    %c0_4 = arith.constant 0 : index
    %5 = vector.load %arg3[%c0_3, %c0_4] : memref<1x128xf32, #tpu.memory_space<vmem>>, vector<1x128xf32>
    %6 = vector.broadcast %5 : vector<1x128xf32> to vector<128x128xf32>
    %7 = arith.addf %4, %6 : vector<128x128xf32>
    %cst = arith.constant 0.000000e+00 : f32
    %8 = vector.broadcast %cst : f32 to vector<128x128xf32>
    %9 = arith.cmpf oge, %7, %8 : vector<128x128xf32>
    %cst_5 = arith.constant 2.000000e-01 : f32
    %10 = vector.broadcast %cst_5 : f32 to vector<128x128xf32>
    %11 = arith.mulf %10, %7 : vector<128x128xf32>
    %12 = arith.select %9, %7, %11 : vector<128x128xi1>, vector<128x128xf32>
    %13 = arith.truncf %12 : vector<128x128xf32> to vector<128x128xbf16>
    %c0_6 = arith.constant 0 : index
    %c0_7 = arith.constant 0 : index
    %14 = vector.load %arg4[%c0_6, %c0_7] : memref<128x128xbf16, #tpu.memory_space<vmem>>, vector<128x128xbf16>
    tpu.vector_store %arg4[%c0_6, %c0_7], %13 {strides = array<i32>} : memref<128x128xbf16, #tpu.memory_space<vmem>>, vector<128x128xbf16>,
    return
  }
  func.func @transform_0(%arg0: i32) -> (i32, i32) {
    %c0_i32 = arith.constant 0 : i32
    %c0_i32_0 = arith.constant 0 : i32
    return %arg0, %c0_i32 : i32, i32
  }
  func.func @transform_1(%arg0: i32) -> (i32, i32) {
    %c0_i32 = arith.constant 0 : i32
    %c0_i32_0 = arith.constant 0 : i32
    %c0_i32_1 = arith.constant 0 : i32
    return %c0_i32, %c0_i32_0 : i32, i32
  }
  func.func @transform_2(%arg0: i32) -> (i32, i32) {
    %c0_i32 = arith.constant 0 : i32
    %c0_i32_0 = arith.constant 0 : i32
    %c0_i32_1 = arith.constant 0 : i32
    return %c0_i32, %c0_i32_0 : i32, i32
  }
  func.func @transform_3(%arg0: i32) -> (i32, i32) {
    %c0_i32 = arith.constant 0 : i32
    %c0_i32_0 = arith.constant 0 : i32
    return %arg0, %c0_i32 : i32, i32
  }
}

module attributes {stable_mosaic.version = 11 : i64} {
  func.func @_conv_mm_kernel(%arg0: i32, %arg1: memref<32x2048xbf16, #tpu.memory_space<vmem>>, %arg2: memref<2048x128xbf16, #tpu.memory_space<vmem>>, %arg3: memref<1x128xf32, #tpu.memory_space<vmem>>, %arg4: memref<32x128xbf16, #tpu.memory_space<vmem>>, %arg5: memref<1x1x128xf32, #tpu.memory_space<vmem>>, %arg6: memref<1x1x128xf32, #tpu.memory_space<vmem>>) attributes {dimension_semantics = [#tpu.dimension_semantics<parallel>], iteration_bounds = array<i64: 1>, scalar_prefetch = 0 : i64, scratch_operands = 0 : i64, tpu.core_type = #tpu.core_type<tc>, window_params = [{transform_indices = @transform_0, window_bounds = array<i64: 32, 2048>}, {pipeline_mode = #tpu.pipeline_mode<synchronous>, transform_indices = @transform_1, window_bounds = array<i64: 2048, 128>}, {pipeline_mode = #tpu.pipeline_mode<synchronous>, transform_indices = @transform_2, window_bounds = array<i64: 1, 128>}, {transform_indices = @transform_3, window_bounds = array<i64: 32, 128>}, {transform_indices = @transform_4, window_bounds = array<i64: 1, 1, 128>}, {transform_indices = @transform_5, window_bounds = array<i64: 1, 1, 128>}]} {
    %c0 = arith.constant 0 : index
    %c0_0 = arith.constant 0 : index
    %0 = vector.load %arg1[%c0, %c0_0] : memref<32x2048xbf16, #tpu.memory_space<vmem>>, vector<32x2048xbf16>
    %c0_1 = arith.constant 0 : index
    %c0_2 = arith.constant 0 : index
    %1 = vector.load %arg2[%c0_1, %c0_2] : memref<2048x128xbf16, #tpu.memory_space<vmem>>, vector<2048x128xbf16>
    %cst = arith.constant dense<0.000000e+00> : vector<32x128xf32>
    %2 = tpu.matmul %0, %1, %cst {dimension_numbers = #tpu.dot_dimension_numbers<[1], [0], [0], [1], [0, 0, 1, 1], [], []>} : vector<32x2048xbf16>, vector<2048x128xbf16>, vector<32x128xf32> -> vector<32x128xf32>
    %c0_3 = arith.constant 0 : index
    %c0_4 = arith.constant 0 : index
    %3 = vector.load %arg3[%c0_3, %c0_4] : memref<1x128xf32, #tpu.memory_space<vmem>>, vector<1x128xf32>
    %4 = vector.broadcast %3 : vector<1x128xf32> to vector<32x128xf32>
    %5 = arith.addf %2, %4 : vector<32x128xf32>
    %6 = arith.truncf %5 : vector<32x128xf32> to vector<32x128xbf16>
    %c0_5 = arith.constant 0 : index
    %c0_6 = arith.constant 0 : index
    %7 = vector.load %arg4[%c0_5, %c0_6] : memref<32x128xbf16, #tpu.memory_space<vmem>>, vector<32x128xbf16>
    tpu.vector_store %arg4[%c0_5, %c0_6], %6 {strides = array<i32>} : memref<32x128xbf16, #tpu.memory_space<vmem>>, vector<32x128xbf16>,
    %cst_7 = arith.constant dense<0.000000e+00> : vector<128xf32>
    %8 = vector.multi_reduction <add>, %5, %cst_7 [0] : vector<32x128xf32> to vector<128xf32>
    %9 = vector.shape_cast %8 : vector<128xf32> to vector<1x128xf32>
    %10 = vector.shape_cast %9 : vector<1x128xf32> to vector<1x1x128xf32>
    %c0_8 = arith.constant 0 : index
    %c0_9 = arith.constant 0 : index
    %c0_10 = arith.constant 0 : index
    %11 = vector.load %arg5[%c0_8, %c0_9, %c0_10] : memref<1x1x128xf32, #tpu.memory_space<vmem>>, vector<1x1x128xf32>
    tpu.vector_store %arg5[%c0_8, %c0_9, %c0_10], %10 {strides = array<i32>} : memref<1x1x128xf32, #tpu.memory_space<vmem>>, vector<1x1x128xf32>,
    %12 = arith.mulf %5, %5 : vector<32x128xf32>
    %cst_11 = arith.constant dense<0.000000e+00> : vector<128xf32>
    %13 = vector.multi_reduction <add>, %12, %cst_11 [0] : vector<32x128xf32> to vector<128xf32>
    %14 = vector.shape_cast %13 : vector<128xf32> to vector<1x128xf32>
    %15 = vector.shape_cast %14 : vector<1x128xf32> to vector<1x1x128xf32>
    %c0_12 = arith.constant 0 : index
    %c0_13 = arith.constant 0 : index
    %c0_14 = arith.constant 0 : index
    %16 = vector.load %arg6[%c0_12, %c0_13, %c0_14] : memref<1x1x128xf32, #tpu.memory_space<vmem>>, vector<1x1x128xf32>
    tpu.vector_store %arg6[%c0_12, %c0_13, %c0_14], %15 {strides = array<i32>} : memref<1x1x128xf32, #tpu.memory_space<vmem>>, vector<1x1x128xf32>,
    return
  }
  func.func @transform_0(%arg0: i32) -> (i32, i32) {
    %c0_i32 = arith.constant 0 : i32
    %c0_i32_0 = arith.constant 0 : i32
    return %arg0, %c0_i32 : i32, i32
  }
  func.func @transform_1(%arg0: i32) -> (i32, i32) {
    %c0_i32 = arith.constant 0 : i32
    %c0_i32_0 = arith.constant 0 : i32
    %c0_i32_1 = arith.constant 0 : i32
    return %c0_i32, %c0_i32_0 : i32, i32
  }
  func.func @transform_2(%arg0: i32) -> (i32, i32) {
    %c0_i32 = arith.constant 0 : i32
    %c0_i32_0 = arith.constant 0 : i32
    %c0_i32_1 = arith.constant 0 : i32
    return %c0_i32, %c0_i32_0 : i32, i32
  }
  func.func @transform_3(%arg0: i32) -> (i32, i32) {
    %c0_i32 = arith.constant 0 : i32
    %c0_i32_0 = arith.constant 0 : i32
    return %arg0, %c0_i32 : i32, i32
  }
  func.func @transform_4(%arg0: i32) -> (i32, i32, i32) {
    %c0_i32 = arith.constant 0 : i32
    %c0_i32_0 = arith.constant 0 : i32
    %c0_i32_1 = arith.constant 0 : i32
    return %arg0, %c0_i32, %c0_i32_0 : i32, i32, i32
  }
  func.func @transform_5(%arg0: i32) -> (i32, i32, i32) {
    %c0_i32 = arith.constant 0 : i32
    %c0_i32_0 = arith.constant 0 : i32
    %c0_i32_1 = arith.constant 0 : i32
    return %arg0, %c0_i32, %c0_i32_0 : i32, i32, i32
  }
}

module attributes {stable_mosaic.version = 11 : i64} {
  func.func @_bn_act_kernel(%arg0: i32, %arg1: memref<32x128xbf16, #tpu.memory_space<vmem>>, %arg2: memref<1x128xf32, #tpu.memory_space<vmem>>, %arg3: memref<1x128xf32, #tpu.memory_space<vmem>>, %arg4: memref<32x128xbf16, #tpu.memory_space<vmem>>) attributes {dimension_semantics = [#tpu.dimension_semantics<parallel>], iteration_bounds = array<i64: 1>, scalar_prefetch = 0 : i64, scratch_operands = 0 : i64, tpu.core_type = #tpu.core_type<tc>, window_params = [{transform_indices = @transform_0, window_bounds = array<i64: 32, 128>}, {pipeline_mode = #tpu.pipeline_mode<synchronous>, transform_indices = @transform_1, window_bounds = array<i64: 1, 128>}, {pipeline_mode = #tpu.pipeline_mode<synchronous>, transform_indices = @transform_2, window_bounds = array<i64: 1, 128>}, {transform_indices = @transform_3, window_bounds = array<i64: 32, 128>}]} {
    %c0 = arith.constant 0 : index
    %c0_0 = arith.constant 0 : index
    %0 = vector.load %arg1[%c0, %c0_0] : memref<32x128xbf16, #tpu.memory_space<vmem>>, vector<32x128xbf16>
    %1 = arith.extf %0 : vector<32x128xbf16> to vector<32x128xf32>
    %c0_1 = arith.constant 0 : index
    %c0_2 = arith.constant 0 : index
    %2 = vector.load %arg2[%c0_1, %c0_2] : memref<1x128xf32, #tpu.memory_space<vmem>>, vector<1x128xf32>
    %3 = vector.broadcast %2 : vector<1x128xf32> to vector<32x128xf32>
    %4 = arith.mulf %1, %3 : vector<32x128xf32>
    %c0_3 = arith.constant 0 : index
    %c0_4 = arith.constant 0 : index
    %5 = vector.load %arg3[%c0_3, %c0_4] : memref<1x128xf32, #tpu.memory_space<vmem>>, vector<1x128xf32>
    %6 = vector.broadcast %5 : vector<1x128xf32> to vector<32x128xf32>
    %7 = arith.addf %4, %6 : vector<32x128xf32>
    %cst = arith.constant 0.000000e+00 : f32
    %8 = vector.broadcast %cst : f32 to vector<32x128xf32>
    %9 = arith.cmpf oge, %7, %8 : vector<32x128xf32>
    %cst_5 = arith.constant 2.000000e-01 : f32
    %10 = vector.broadcast %cst_5 : f32 to vector<32x128xf32>
    %11 = arith.mulf %10, %7 : vector<32x128xf32>
    %12 = arith.select %9, %7, %11 : vector<32x128xi1>, vector<32x128xf32>
    %13 = arith.truncf %12 : vector<32x128xf32> to vector<32x128xbf16>
    %c0_6 = arith.constant 0 : index
    %c0_7 = arith.constant 0 : index
    %14 = vector.load %arg4[%c0_6, %c0_7] : memref<32x128xbf16, #tpu.memory_space<vmem>>, vector<32x128xbf16>
    tpu.vector_store %arg4[%c0_6, %c0_7], %13 {strides = array<i32>} : memref<32x128xbf16, #tpu.memory_space<vmem>>, vector<32x128xbf16>,
    return
  }
  func.func @transform_0(%arg0: i32) -> (i32, i32) {
    %c0_i32 = arith.constant 0 : i32
    %c0_i32_0 = arith.constant 0 : i32
    return %arg0, %c0_i32 : i32, i32
  }
  func.func @transform_1(%arg0: i32) -> (i32, i32) {
    %c0_i32 = arith.constant 0 : i32
    %c0_i32_0 = arith.constant 0 : i32
    %c0_i32_1 = arith.constant 0 : i32
    return %c0_i32, %c0_i32_0 : i32, i32
  }
  func.func @transform_2(%arg0: i32) -> (i32, i32) {
    %c0_i32 = arith.constant 0 : i32
    %c0_i32_0 = arith.constant 0 : i32
    %c0_i32_1 = arith.constant 0 : i32
    return %c0_i32, %c0_i32_0 : i32, i32
  }
  func.func @transform_3(%arg0: i32) -> (i32, i32) {
    %c0_i32 = arith.constant 0 : i32
    %c0_i32_0 = arith.constant 0 : i32
    return %arg0, %c0_i32 : i32, i32
  }
}

module attributes {stable_mosaic.version = 11 : i64} {
  func.func @_conv_mm_kernel(%arg0: i32, %arg1: memref<32x2048xbf16, #tpu.memory_space<vmem>>, %arg2: memref<2048x128xbf16, #tpu.memory_space<vmem>>, %arg3: memref<1x128xf32, #tpu.memory_space<vmem>>, %arg4: memref<32x128xf32, #tpu.memory_space<vmem>>) attributes {dimension_semantics = [#tpu.dimension_semantics<parallel>], iteration_bounds = array<i64: 1>, scalar_prefetch = 0 : i64, scratch_operands = 0 : i64, tpu.core_type = #tpu.core_type<tc>, window_params = [{transform_indices = @transform_0, window_bounds = array<i64: 32, 2048>}, {pipeline_mode = #tpu.pipeline_mode<synchronous>, transform_indices = @transform_1, window_bounds = array<i64: 2048, 128>}, {pipeline_mode = #tpu.pipeline_mode<synchronous>, transform_indices = @transform_2, window_bounds = array<i64: 1, 128>}, {transform_indices = @transform_3, window_bounds = array<i64: 32, 128>}]} {
    %c0 = arith.constant 0 : index
    %c0_0 = arith.constant 0 : index
    %0 = vector.load %arg1[%c0, %c0_0] : memref<32x2048xbf16, #tpu.memory_space<vmem>>, vector<32x2048xbf16>
    %c0_1 = arith.constant 0 : index
    %c0_2 = arith.constant 0 : index
    %1 = vector.load %arg2[%c0_1, %c0_2] : memref<2048x128xbf16, #tpu.memory_space<vmem>>, vector<2048x128xbf16>
    %cst = arith.constant dense<0.000000e+00> : vector<32x128xf32>
    %2 = tpu.matmul %0, %1, %cst {dimension_numbers = #tpu.dot_dimension_numbers<[1], [0], [0], [1], [0, 0, 1, 1], [], []>} : vector<32x2048xbf16>, vector<2048x128xbf16>, vector<32x128xf32> -> vector<32x128xf32>
    %c0_3 = arith.constant 0 : index
    %c0_4 = arith.constant 0 : index
    %3 = vector.load %arg3[%c0_3, %c0_4] : memref<1x128xf32, #tpu.memory_space<vmem>>, vector<1x128xf32>
    %4 = vector.broadcast %3 : vector<1x128xf32> to vector<32x128xf32>
    %5 = arith.addf %2, %4 : vector<32x128xf32>
    %c0_5 = arith.constant 0 : index
    %c0_6 = arith.constant 0 : index
    %6 = vector.load %arg4[%c0_5, %c0_6] : memref<32x128xf32, #tpu.memory_space<vmem>>, vector<32x128xf32>
    tpu.vector_store %arg4[%c0_5, %c0_6], %5 {strides = array<i32>} : memref<32x128xf32, #tpu.memory_space<vmem>>, vector<32x128xf32>,
    return
  }
  func.func @transform_0(%arg0: i32) -> (i32, i32) {
    %c0_i32 = arith.constant 0 : i32
    %c0_i32_0 = arith.constant 0 : i32
    return %arg0, %c0_i32 : i32, i32
  }
  func.func @transform_1(%arg0: i32) -> (i32, i32) {
    %c0_i32 = arith.constant 0 : i32
    %c0_i32_0 = arith.constant 0 : i32
    %c0_i32_1 = arith.constant 0 : i32
    return %c0_i32, %c0_i32_0 : i32, i32
  }
  func.func @transform_2(%arg0: i32) -> (i32, i32) {
    %c0_i32 = arith.constant 0 : i32
    %c0_i32_0 = arith.constant 0 : i32
    %c0_i32_1 = arith.constant 0 : i32
    return %c0_i32, %c0_i32_0 : i32, i32
  }
  func.func @transform_3(%arg0: i32) -> (i32, i32) {
    %c0_i32 = arith.constant 0 : i32
    %c0_i32_0 = arith.constant 0 : i32
    return %arg0, %c0_i32 : i32, i32
  }
}

</mosaic_0001>

<llo_original>
// kernel: _lambda_.8
$region0: #{_lambda_.8}
  #allocation0 [shape = 'u32[]', space=smem, size = 0x4, offset = 0x4, fixed_abs, tag = 'smem constant byte address 0x4 - core index']
  #allocation1 [shape = 'u32[72,128]{1,0:T(1,128)}', space=vmem, size = 0x9000, scoped, tag = 'internal scratch']
  %s0 = inlined_call_operand.vmem [shape: bf16[512,128], index: 0, kind: input, shape index: {}]
  %s1 = inlined_call_operand.vmem [shape: bf16[128,128], index: 1, kind: input, shape index: {}]
  %s2 = inlined_call_operand.vmem [shape: f32[1,128], index: 2, kind: input, shape index: {}]
  %s3 = inlined_call_operand.vmem [shape: bf16[512,128], index: 3, kind: output, shape index: {}]
  %s4 = sld [smem:[#allocation0]]
  $region45: #{_lambda_.8} parent=0
    _
  %s6 = ssub.s32 1, %s4
  %s7 = scalar_select 0, %s6, %s4
  loop: start=0, step=1, limit=4
  $region2: #{_lambda_.8} parent=0 // loop_pre_header
    _
  $region3: #{_lambda_.8} parent=0 // loop_header
    %s9 = sphi 0, %s13
    %p10 = scmp.ge.s32.totalorder %s9, 4
    %s19 = sphi 0, %s21
    %s22 = sphi 0, %s19
    %s23 = sphi 0, %s22
    %s39 = sphi 0, %s23
    %s43 = sphi 0, %s43
    %s45 = sphi 0, %s43
    %s46 = sphi 0, %s45
    %s60 = sphi 0, %s46
    %s64 = sphi 0, %s64
    %s66 = sphi 0, %s64
    %s67 = sphi 0, %s66
    %s81 = sphi 0, %s67
    %s87 = sphi 0, %s89
    %s90 = sphi 0, %s87
    %s91 = sphi 0, %s90
    %s107 = sphi 0, %s91
  $region4: #{_lambda_.8} parent=0 // loop_header_branch
    %12 = sbr.rel (%p10) target = $region8
  $region5: #{_lambda_.8} parent=0 // loop_body
    %s14 = ssub.s32 %s9, 1
    %s15 = ssub.s32 %s9, 2
    %s16 = sadd.s32 %s9, 1
    %s17 = ssub.s32 %s9, %s16
    %p18 = scmp.eq.s32.totalorder %s17, 0
    %s20 = sadd.s32 %s19, 1
    %s21 = scalar_select %p18, %s19, %s20
    %p24 = pneg %p18
    %p25 = scmp.eq.s32.totalorder %s9, 1
    %p26 = por %p24, %p25
    %p27 = scmp.ne.s32.totalorder %s19, %s22
    %p28 = scmp.eq.s32.totalorder %s9, 0
    %p29 = por %p27, %p28
    %p30 = scmp.ne.s32.totalorder %s19, %s22
    %p31 = scmp.eq.s32.totalorder %s14, 1
    %p32 = por %p30, %p31
    %p33 = scmp.ne.s32.totalorder %s22, %s23
    %p34 = scmp.eq.s32.totalorder %s14, 0
    %p35 = por %p33, %p34
    %p36 = scmp.ne.s32.totalorder %s22, %s23
    %p37 = scmp.eq.s32.totalorder %s15, 1
    %p38 = por %p36, %p37
    %p40 = scmp.ne.s32.totalorder %s23, %s39
    %p41 = scmp.eq.s32.totalorder %s15, 0
    %p42 = por %p40, %p41
    %s44 = sadd.s32 %s43, 1
    %p47 = scmp.eq.s32.totalorder %s9, 1
    %p48 = scmp.ne.s32.totalorder %s43, %s45
    %p49 = scmp.eq.s32.totalorder %s9, 0
    %p50 = por %p48, %p49
    %p51 = scmp.ne.s32.totalorder %s43, %s45
    %p52 = scmp.eq.s32.totalorder %s14, 1
    %p53 = por %p51, %p52
    %p54 = scmp.ne.s32.totalorder %s45, %s46
    %p55 = scmp.eq.s32.totalorder %s14, 0
    %p56 = por %p54, %p55
    %p57 = scmp.ne.s32.totalorder %s45, %s46
    %p58 = scmp.eq.s32.totalorder %s15, 1
    %p59 = por %p57, %p58
    %p61 = scmp.ne.s32.totalorder %s46, %s60
    %p62 = scmp.eq.s32.totalorder %s15, 0
    %p63 = por %p61, %p62
    %s65 = sadd.s32 %s64, 1
    %p68 = scmp.eq.s32.totalorder %s9, 1
    %p69 = scmp.ne.s32.totalorder %s64, %s66
    %p70 = scmp.eq.s32.totalorder %s9, 0
    %p71 = por %p69, %p70
    %p72 = scmp.ne.s32.totalorder %s64, %s66
    %p73 = scmp.eq.s32.totalorder %s14, 1
    %p74 = por %p72, %p73
    %p75 = scmp.ne.s32.totalorder %s66, %s67
    %p76 = scmp.eq.s32.totalorder %s14, 0
    %p77 = por %p75, %p76
    %p78 = scmp.ne.s32.totalorder %s66, %s67
    %p79 = scmp.eq.s32.totalorder %s15, 1
    %p80 = por %p78, %p79
    %p82 = scmp.ne.s32.totalorder %s67, %s81
    %p83 = scmp.eq.s32.totalorder %s15, 0
    %p84 = por %p82, %p83
    %s85 = ssub.s32 %s9, %s16
    %p86 = scmp.eq.s32.totalorder %s85, 0
    %s88 = sadd.s32 %s87, 1
    %s89 = scalar_select %p86, %s87, %s88
    %p92 = pneg %p86
    %p93 = scmp.eq.s32.totalorder %s9, 1
    %p94 = por %p92, %p93
    %p95 = scmp.ne.s32.totalorder %s87, %s90
    %p96 = scmp.eq.s32.totalorder %s9, 0
    %p97 = por %p95, %p96
    %p98 = scmp.ne.s32.totalorder %s87, %s90
    %p99 = scmp.eq.s32.totalorder %s14, 1
    %p100 = por %p98, %p99
    %p101 = scmp.ne.s32.totalorder %s90, %s91
    %p102 = scmp.eq.s32.totalorder %s14, 0
    %p103 = por %p101, %p102
    %p104 = scmp.ne.s32.totalorder %s90, %s91
    %p105 = scmp.eq.s32.totalorder %s15, 1
    %p106 = por %p104, %p105
    %p108 = scmp.ne.s32.totalorder %s91, %s107
    %p109 = scmp.eq.s32.totalorder %s15, 0
    %p110 = por %p108, %p109
    %p111 = scmp.le.s32.totalorder 1, %s9
    %p112 = scmp.lt.s32.totalorder %s9, 3
    %p113 = pnand %p111, %p112
    %p114 = pneg %p113
    // Predicated region
    $region9: #{_lambda_.8} parent=5 // pred_check
      _
    $region10: #{_lambda_.8} parent=5 // pred_check_branch
      %116 = sbr.rel (%p113) target = $region12
    $region11: #{_lambda_.8} parent=5 // pred_region
      %s117 = ssub.s32 %s9, 1
      // Predicated region
      $region13: #{_lambda_.8} parent=11 // pred_check
        %p118 = pneg %p56
      $region14: #{_lambda_.8} parent=11 // pred_check_branch
        %120 = sbr.rel (%p118) target = $region16
      $region15: #{_lambda_.8} parent=11 // pred_region
        _
      $region16: #{_lambda_.8} parent=11 // pred_fallthru
        _
      // Predicated region
      $region17: #{_lambda_.8} parent=11 // pred_check
        %p121 = pneg %p77
      $region18: #{_lambda_.8} parent=11 // pred_check_branch
        %123 = sbr.rel (%p121) target = $region20
      $region19: #{_lambda_.8} parent=11 // pred_region
        _
      $region20: #{_lambda_.8} parent=11 // pred_fallthru
        _
    $region12: #{_lambda_.8} parent=5 // pred_fallthru
      _
    %p124 = scmp.lt.s32.totalorder %s9, 2
    // Predicated region
    $region21: #{_lambda_.8} parent=5 // pred_check
      %p125 = pneg %p124
    $region22: #{_lambda_.8} parent=5 // pred_check_branch
      %127 = sbr.rel (%p125) target = $region24
    $region23: #{_lambda_.8} parent=5 // pred_region
      // Predicated region
      $region25: #{_lambda_.8} parent=23 // pred_check
        %p128 = pneg %p29
      $region26: #{_lambda_.8} parent=23 // pred_check_branch
        %130 = sbr.rel (%p128) target = $region28
      $region27: #{_lambda_.8} parent=23 // pred_region
        %s131 = smul.u32 32, %s9
        %p132 = scmp.lt.s32.totalorder %s131, 63
        %s133 = scalar_select %p132, %s131, 63
        %s134 = smul.addr %s133, 4
        %s135 = scalar_lea.vmem %s0, %s134
        %s136 = smul.u32 32, %s9
      $region28: #{_lambda_.8} parent=23 // pred_fallthru
        _
    $region24: #{_lambda_.8} parent=5 // pred_fallthru
      _
    %p137 = scmp.le.s32.totalorder 1, %s9
    %p138 = scmp.lt.s32.totalorder %s9, 3
    %p139 = pnand %p137, %p138
    %p140 = pneg %p139
    // Predicated region
    $region29: #{_lambda_.8} parent=5 // pred_check
      _
    $region30: #{_lambda_.8} parent=5 // pred_check_branch
      %142 = sbr.rel (%p139) target = $region32
    $region31: #{_lambda_.8} parent=5 // pred_region
      %s143 = ssub.s32 %s9, 1
      %s144 = smul.u32 32, %s14
      %p145 = scmp.lt.s32.totalorder %s144, 63
      %s146 = scalar_select %p145, %s144, 63
      %s147 = smul.addr %s146, 4
      %s148 = scalar_lea.vmem %s0, %s147
      %p149 = pneg %p35
      %p150 = pneg %p32
      %p151 = pneg %p56
      %p152 = pneg %p53
      %p153 = pneg %p77
      %p154 = pneg %p74
      %p155 = pneg %p103
      %p156 = pneg %p100
      %s157 = smul.u32 32, %s14
      %p158 = scmp.lt.s32.totalorder %s157, 63
      %s159 = scalar_select %p158, %s157, 63
      %s160 = smul.addr %s159, 4
      %s161 = scalar_lea.vmem %s3, %s160
      %s162 = smul.u32 32, %s14
      %p163 = scmp.lt.s32.totalorder %s162, 63
      %s164 = scalar_select %p163, %s162, 63
      %s165 = smul.addr %s164, 4
      %s166 = scalar_lea.vmem %s0, %s165
      %s167 = smul.u32 32, %s14
      %s168 = smul.u32 32, %s14
      %p169 = scmp.lt.s32.totalorder %s168, 63
      %s170 = scalar_select %p169, %s168, 63
      %s171 = smul.addr %s170, 4
      %s172 = scalar_lea.vmem %s3, %s171
      %s173 = smul.u32 32, %s14
      %v174 = vld [vmem:[%s166] sm:$0xf]
      %v175 = vld [vmem:[%s166 + $0x4] sm:$0xf]
      %v176 = vld [vmem:[%s166 + $0x8] sm:$0xf]
      %v177 = vld [vmem:[%s166 + $0xc] sm:$0xf]
      %v178 = vld [vmem:[%s166 + $0x10] sm:$0xf]
      %v179 = vld [vmem:[%s166 + $0x14] sm:$0xf]
      %v180 = vld [vmem:[%s166 + $0x18] sm:$0xf]
      %v181 = vld [vmem:[%s166 + $0x1c] sm:$0xf]
      %v182 = vld [vmem:[%s166 + $0x20] sm:$0xf]
      %v183 = vld [vmem:[%s166 + $0x24] sm:$0xf]
      %v184 = vld [vmem:[%s166 + $0x28] sm:$0xf]
      %v185 = vld [vmem:[%s166 + $0x2c] sm:$0xf]
      %v186 = vld [vmem:[%s166 + $0x30] sm:$0xf]
      %v187 = vld [vmem:[%s166 + $0x34] sm:$0xf]
      %v188 = vld [vmem:[%s166 + $0x38] sm:$0xf]
      %v189 = vld [vmem:[%s166 + $0x3c] sm:$0xf]
      %v190 = vld [vmem:[%s166 + $0x40] sm:$0xf]
      %v191 = vld [vmem:[%s166 + $0x44] sm:$0xf]
      %v192 = vld [vmem:[%s166 + $0x48] sm:$0xf]
      %v193 = vld [vmem:[%s166 + $0x4c] sm:$0xf]
      %v194 = vld [vmem:[%s166 + $0x50] sm:$0xf]
      %v195 = vld [vmem:[%s166 + $0x54] sm:$0xf]
      %v196 = vld [vmem:[%s166 + $0x58] sm:$0xf]
      %v197 = vld [vmem:[%s166 + $0x5c] sm:$0xf]
      %v198 = vld [vmem:[%s166 + $0x60] sm:$0xf]
      %v199 = vld [vmem:[%s166 + $0x64] sm:$0xf]
      %v200 = vld [vmem:[%s166 + $0x68] sm:$0xf]
      %v201 = vld [vmem:[%s166 + $0x6c] sm:$0xf]
      %v202 = vld [vmem:[%s166 + $0x70] sm:$0xf]
      %v203 = vld [vmem:[%s166 + $0x74] sm:$0xf]
      %v204 = vld [vmem:[%s166 + $0x78] sm:$0xf]
      %v205 = vld [vmem:[%s166 + $0x7c] sm:$0xf]
      %v206 = vld [vmem:[%s1] sm:$0xf]
      %v207 = vld [vmem:[%s1 + $0x4] sm:$0xf]
      %v208 = vld [vmem:[%s1 + $0x8] sm:$0xf]
      %v209 = vld [vmem:[%s1 + $0xc] sm:$0xf]
      %v210 = vld [vmem:[%s1 + $0x10] sm:$0xf]
      %v211 = vld [vmem:[%s1 + $0x14] sm:$0xf]
      %v212 = vld [vmem:[%s1 + $0x18] sm:$0xf]
      %v213 = vld [vmem:[%s1 + $0x1c] sm:$0xf]
      %v214 = vld [vmem:[%s1 + $0x20] sm:$0xf]
      %v215 = vld [vmem:[%s1 + $0x24] sm:$0xf]
      %v216 = vld [vmem:[%s1 + $0x28] sm:$0xf]
      %v217 = vld [vmem:[%s1 + $0x2c] sm:$0xf]
      %v218 = vld [vmem:[%s1 + $0x30] sm:$0xf]
      %v219 = vld [vmem:[%s1 + $0x34] sm:$0xf]
      %v220 = vld [vmem:[%s1 + $0x38] sm:$0xf]
      %v221 = vld [vmem:[%s1 + $0x3c] sm:$0xf]
      %v222 = vld [vmem:[%s2] sm:$0x1]
      %v224 = vperm.slane %v222, 0
      %v258 = vunpack.c.l.b16 %v174
      %v259 = vunpack.c.l.b16 %v175
      %v260 = vunpack.c.l.b16 %v176
      %v261 = vunpack.c.l.b16 %v177
      %v262 = vunpack.c.l.b16 %v178
      %v263 = vunpack.c.l.b16 %v179
      %v264 = vunpack.c.l.b16 %v180
      %v265 = vunpack.c.l.b16 %v181
      %v266 = vunpack.c.l.b16 %v182
      %v267 = vunpack.c.l.b16 %v183
      %v268 = vunpack.c.l.b16 %v184
      %v269 = vunpack.c.l.b16 %v185
      %v270 = vunpack.c.l.b16 %v186
      %v271 = vunpack.c.l.b16 %v187
      %v272 = vunpack.c.l.b16 %v188
      %v273 = vunpack.c.l.b16 %v189
      %v274 = vunpack.c.l.b16 %v190
      %v275 = vunpack.c.l.b16 %v191
      %v276 = vunpack.c.l.b16 %v192
      %v277 = vunpack.c.l.b16 %v193
      %v278 = vunpack.c.l.b16 %v194
      %v279 = vunpack.c.l.b16 %v195
      %v280 = vunpack.c.l.b16 %v196
      %v281 = vunpack.c.l.b16 %v197
      %v282 = vunpack.c.l.b16 %v198
      %v283 = vunpack.c.l.b16 %v199
      %v284 = vunpack.c.l.b16 %v200
      %v285 = vunpack.c.l.b16 %v201
      %v286 = vunpack.c.l.b16 %v202
      %v287 = vunpack.c.l.b16 %v203
      %v288 = vunpack.c.l.b16 %v204
      %v289 = vunpack.c.l.b16 %v205
      %v290 = vpack.c.b16 %v259, %v258
      %v291 = vpack.c.b16 %v261, %v260
      %v292 = vpack.c.b16 %v263, %v262
      %v293 = vpack.c.b16 %v265, %v264
      %v294 = vpack.c.b16 %v267, %v266
      %v295 = vpack.c.b16 %v269, %v268
      %v296 = vpack.c.b16 %v271, %v270
      %v297 = vpack.c.b16 %v273, %v272
      %v298 = vpack.c.b16 %v275, %v274
      %v299 = vpack.c.b16 %v277, %v276
      %v300 = vpack.c.b16 %v279, %v278
      %v301 = vpack.c.b16 %v281, %v280
      %v302 = vpack.c.b16 %v283, %v282
      %v303 = vpack.c.b16 %v285, %v284
      %v304 = vpack.c.b16 %v287, %v286
      %v305 = vpack.c.b16 %v289, %v288
      %v338 = vunpack.c.l.b16 %v206
      %v339 = vunpack.c.l.b16 %v207
      %v340 = vunpack.c.l.b16 %v208
      %v341 = vunpack.c.l.b16 %v209
      %v342 = vunpack.c.l.b16 %v210
      %v343 = vunpack.c.l.b16 %v211
      %v344 = vunpack.c.l.b16 %v212
      %v345 = vunpack.c.l.b16 %v213
      %v346 = vunpack.c.l.b16 %v214
      %v347 = vunpack.c.l.b16 %v215
      %v348 = vunpack.c.l.b16 %v216
      %v349 = vunpack.c.l.b16 %v217
      %v350 = vunpack.c.l.b16 %v218
      %v351 = vunpack.c.l.b16 %v219
      %v352 = vunpack.c.l.b16 %v220
      %v353 = vunpack.c.l.b16 %v221
      %v354 = vpack.c.b16 %v339, %v338
      %v355 = vpack.c.b16 %v341, %v340
      %v356 = vpack.c.b16 %v343, %v342
      %v357 = vpack.c.b16 %v345, %v344
      %v358 = vpack.c.b16 %v347, %v346
      %v359 = vpack.c.b16 %v349, %v348
      %v360 = vpack.c.b16 %v351, %v350
      %v361 = vpack.c.b16 %v353, %v352
      %370 = vmatpush.bf16.msra.mxu0 %v361
      %371 = vmatpush.bf16.msra.mxu0 %v360
      %372 = vmatpush.bf16.msra.mxu0 %v359
      %373 = vmatpush.bf16.msra.mxu0 %v358
      %374 = vmatpush.bf16.msra.mxu0 %v357
      %375 = vmatpush.bf16.msra.mxu0 %v356
      %376 = vmatpush.bf16.msra.mxu0 %v355
      %377 = vmatpush.bf16.msra.mxu0 %v354
      %378 = vmatmul.bf16.gmra.mxu0 %v290
      %v379 = vpop.f32.mrf.mxu0
      %v380 = vadd.f32 %v224, %v379
      %v381 = vpop.f32.mrf.mxu0
      %v382 = vadd.f32 %v224, %v381
      %383 = vmatmul.bf16.gmra.mxu0 %v291
      %v384 = vpop.f32.mrf.mxu0
      %v385 = vadd.f32 %v224, %v384
      %v386 = vpop.f32.mrf.mxu0
      %v387 = vadd.f32 %v224, %v386
      %388 = vmatmul.bf16.gmra.mxu0 %v292
      %v389 = vpop.f32.mrf.mxu0
      %v390 = vadd.f32 %v224, %v389
      %v391 = vpop.f32.mrf.mxu0
      %v392 = vadd.f32 %v224, %v391
      %393 = vmatmul.bf16.gmra.mxu0 %v293
      %v394 = vpop.f32.mrf.mxu0
      %v395 = vadd.f32 %v224, %v394
      %v396 = vpop.f32.mrf.mxu0
      %v397 = vadd.f32 %v224, %v396
      %398 = vmatmul.bf16.gmra.mxu0 %v294
      %v399 = vpop.f32.mrf.mxu0
      %v400 = vadd.f32 %v224, %v399
      %v401 = vpop.f32.mrf.mxu0
      %v402 = vadd.f32 %v224, %v401
      %403 = vmatmul.bf16.gmra.mxu0 %v295
      %v404 = vpop.f32.mrf.mxu0
      %v405 = vadd.f32 %v224, %v404
      %v406 = vpop.f32.mrf.mxu0
      %v407 = vadd.f32 %v224, %v406
      %408 = vmatmul.bf16.gmra.mxu0 %v296
      %v409 = vpop.f32.mrf.mxu0
      %v410 = vadd.f32 %v224, %v409
      %v411 = vpop.f32.mrf.mxu0
      %v412 = vadd.f32 %v224, %v411
      %413 = vmatmul.bf16.gmra.mxu0 %v297
      %v414 = vpop.f32.mrf.mxu0
      %v415 = vadd.f32 %v224, %v414
      %v416 = vpop.f32.mrf.mxu0
      %v417 = vadd.f32 %v224, %v416
      %418 = vmatmul.bf16.gmra.mxu0 %v298
      %v419 = vpop.f32.mrf.mxu0
      %v420 = vadd.f32 %v224, %v419
      %v421 = vpop.f32.mrf.mxu0
      %v422 = vadd.f32 %v224, %v421
      %423 = vmatmul.bf16.gmra.mxu0 %v299
      %v424 = vpop.f32.mrf.mxu0
      %v425 = vadd.f32 %v224, %v424
      %v426 = vpop.f32.mrf.mxu0
      %v427 = vadd.f32 %v224, %v426
      %428 = vmatmul.bf16.gmra.mxu0 %v300
      %v429 = vpop.f32.mrf.mxu0
      %v430 = vadd.f32 %v224, %v429
      %v431 = vpop.f32.mrf.mxu0
      %v432 = vadd.f32 %v224, %v431
      %433 = vmatmul.bf16.gmra.mxu0 %v301
      %v434 = vpop.f32.mrf.mxu0
      %v435 = vadd.f32 %v224, %v434
      %v436 = vpop.f32.mrf.mxu0
      %v437 = vadd.f32 %v224, %v436
      %438 = vmatmul.bf16.gmra.mxu0 %v302
      %v439 = vpop.f32.mrf.mxu0
      %v440 = vadd.f32 %v224, %v439
      %v441 = vpop.f32.mrf.mxu0
      %v442 = vadd.f32 %v224, %v441
      %443 = vmatmul.bf16.gmra.mxu0 %v303
      %v444 = vpop.f32.mrf.mxu0
      %v445 = vadd.f32 %v224, %v444
      %v446 = vpop.f32.mrf.mxu0
      %v447 = vadd.f32 %v224, %v446
      %448 = vmatmul.bf16.gmra.mxu0 %v304
      %v449 = vpop.f32.mrf.mxu0
      %v450 = vadd.f32 %v224, %v449
      %v451 = vpop.f32.mrf.mxu0
      %v452 = vadd.f32 %v224, %v451
      %453 = vmatmul.bf16.gmra.mxu0 %v305
      %v454 = vpop.f32.mrf.mxu0
      %v455 = vadd.f32 %v224, %v454
      %v456 = vpop.f32.mrf.mxu0
      %v457 = vadd.f32 %v224, %v456
      %458 = vdwg.mxu0
      %vm459 = vcmp.ge.f32.partialorder %v380, 0.0
      %vm460 = vcmp.ge.f32.partialorder %v382, 0.0
      %vm461 = vcmp.ge.f32.partialorder %v385, 0.0
      %vm462 = vcmp.ge.f32.partialorder %v387, 0.0
      %vm463 = vcmp.ge.f32.partialorder %v390, 0.0
      %vm464 = vcmp.ge.f32.partialorder %v392, 0.0
      %vm465 = vcmp.ge.f32.partialorder %v395, 0.0
      %vm466 = vcmp.ge.f32.partialorder %v397, 0.0
      %vm467 = vcmp.ge.f32.partialorder %v400, 0.0
      %vm468 = vcmp.ge.f32.partialorder %v402, 0.0
      %vm469 = vcmp.ge.f32.partialorder %v405, 0.0
      %vm470 = vcmp.ge.f32.partialorder %v407, 0.0
      %vm471 = vcmp.ge.f32.partialorder %v410, 0.0
      %vm472 = vcmp.ge.f32.partialorder %v412, 0.0
      %vm473 = vcmp.ge.f32.partialorder %v415, 0.0
      %vm474 = vcmp.ge.f32.partialorder %v417, 0.0
      %vm475 = vcmp.ge.f32.partialorder %v420, 0.0
      %vm476 = vcmp.ge.f32.partialorder %v422, 0.0
      %vm477 = vcmp.ge.f32.partialorder %v425, 0.0
      %vm478 = vcmp.ge.f32.partialorder %v427, 0.0
      %vm479 = vcmp.ge.f32.partialorder %v430, 0.0
      %vm480 = vcmp.ge.f32.partialorder %v432, 0.0
      %vm481 = vcmp.ge.f32.partialorder %v435, 0.0
      %vm482 = vcmp.ge.f32.partialorder %v437, 0.0
      %vm483 = vcmp.ge.f32.partialorder %v440, 0.0
      %vm484 = vcmp.ge.f32.partialorder %v442, 0.0
      %vm485 = vcmp.ge.f32.partialorder %v445, 0.0
      %vm486 = vcmp.ge.f32.partialorder %v447, 0.0
      %vm487 = vcmp.ge.f32.partialorder %v450, 0.0
      %vm488 = vcmp.ge.f32.partialorder %v452, 0.0
      %vm489 = vcmp.ge.f32.partialorder %v455, 0.0
      %vm490 = vcmp.ge.f32.partialorder %v457, 0.0
      %v491 = vmul.f32 %v380, 0.2
      %v492 = vmul.f32 %v382, 0.2
      %v493 = vmul.f32 %v385, 0.2
      %v494 = vmul.f32 %v387, 0.2
      %v495 = vmul.f32 %v390, 0.2
      %v496 = vmul.f32 %v392, 0.2
      %v497 = vmul.f32 %v395, 0.2
      %v498 = vmul.f32 %v397, 0.2
      %v499 = vmul.f32 %v400, 0.2
      %v500 = vmul.f32 %v402, 0.2
      %v501 = vmul.f32 %v405, 0.2
      %v502 = vmul.f32 %v407, 0.2
      %v503 = vmul.f32 %v410, 0.2
      %v504 = vmul.f32 %v412, 0.2
      %v505 = vmul.f32 %v415, 0.2
      %v506 = vmul.f32 %v417, 0.2
      %v507 = vmul.f32 %v420, 0.2
      %v508 = vmul.f32 %v422, 0.2
      %v509 = vmul.f32 %v425, 0.2
      %v510 = vmul.f32 %v427, 0.2
      %v511 = vmul.f32 %v430, 0.2
      %v512 = vmul.f32 %v432, 0.2
      %v513 = vmul.f32 %v435, 0.2
      %v514 = vmul.f32 %v437, 0.2
      %v515 = vmul.f32 %v440, 0.2
      %v516 = vmul.f32 %v442, 0.2
      %v517 = vmul.f32 %v445, 0.2
      %v518 = vmul.f32 %v447, 0.2
      %v519 = vmul.f32 %v450, 0.2
      %v520 = vmul.f32 %v452, 0.2
      %v521 = vmul.f32 %v455, 0.2
      %v522 = vmul.f32 %v457, 0.2
      %v523 = vsel %vm459, %v380, %v491
      %v524 = vsel %vm460, %v382, %v492
      %v525 = vsel %vm461, %v385, %v493
      %v526 = vsel %vm462, %v387, %v494
      %v527 = vsel %vm463, %v390, %v495
      %v528 = vsel %vm464, %v392, %v496
      %v529 = vsel %vm465, %v395, %v497
      %v530 = vsel %vm466, %v397, %v498
      %v531 = vsel %vm467, %v400, %v499
      %v532 = vsel %vm468, %v402, %v500
      %v533 = vsel %vm469, %v405, %v501
      %v534 = vsel %vm470, %v407, %v502
      %v535 = vsel %vm471, %v410, %v503
      %v536 = vsel %vm472, %v412, %v504
      %v537 = vsel %vm473, %v415, %v505
      %v538 = vsel %vm474, %v417, %v506
      %v539 = vsel %vm475, %v420, %v507
      %v540 = vsel %vm476, %v422, %v508
      %v541 = vsel %vm477, %v425, %v509
      %v542 = vsel %vm478, %v427, %v510
      %v543 = vsel %vm479, %v430, %v511
      %v544 = vsel %vm480, %v432, %v512
      %v545 = vsel %vm481, %v435, %v513
      %v546 = vsel %vm482, %v437, %v514
      %v547 = vsel %vm483, %v440, %v515
      %v548 = vsel %vm484, %v442, %v516
      %v549 = vsel %vm485, %v445, %v517
      %v550 = vsel %vm486, %v447, %v518
      %v551 = vsel %vm487, %v450, %v519
      %v552 = vsel %vm488, %v452, %v520
      %v553 = vsel %vm489, %v455, %v521
      %v554 = vsel %vm490, %v457, %v522
      %v555 = vpack.c.bf16 %v523, %v523
      %v556 = vpack.c.bf16 %v524, %v524
      %v557 = vpack.c.bf16 %v525, %v525
      %v558 = vpack.c.bf16 %v526, %v526
      %v559 = vpack.c.bf16 %v527, %v527
      %v560 = vpack.c.bf16 %v528, %v528
      %v561 = vpack.c.bf16 %v529, %v529
      %v562 = vpack.c.bf16 %v530, %v530
      %v563 = vpack.c.bf16 %v531, %v531
      %v564 = vpack.c.bf16 %v532, %v532
      %v565 = vpack.c.bf16 %v533, %v533
      %v566 = vpack.c.bf16 %v534, %v534
      %v567 = vpack.c.bf16 %v535, %v535
      %v568 = vpack.c.bf16 %v536, %v536
      %v569 = vpack.c.bf16 %v537, %v537
      %v570 = vpack.c.bf16 %v538, %v538
      %v571 = vpack.c.bf16 %v539, %v539
      %v572 = vpack.c.bf16 %v540, %v540
      %v573 = vpack.c.bf16 %v541, %v541
      %v574 = vpack.c.bf16 %v542, %v542
      %v575 = vpack.c.bf16 %v543, %v543
      %v576 = vpack.c.bf16 %v544, %v544
      %v577 = vpack.c.bf16 %v545, %v545
      %v578 = vpack.c.bf16 %v546, %v546
      %v579 = vpack.c.bf16 %v547, %v547
      %v580 = vpack.c.bf16 %v548, %v548
      %v581 = vpack.c.bf16 %v549, %v549
      %v582 = vpack.c.bf16 %v550, %v550
      %v583 = vpack.c.bf16 %v551, %v551
      %v584 = vpack.c.bf16 %v552, %v552
      %v585 = vpack.c.bf16 %v553, %v553
      %v586 = vpack.c.bf16 %v554, %v554
      %587 = vst [vmem:[%s172] sm:$0xf] %v555
      %588 = vst [vmem:[%s172 + $0x4] sm:$0xf] %v556
      %589 = vst [vmem:[%s172 + $0x8] sm:$0xf] %v557
      %590 = vst [vmem:[%s172 + $0xc] sm:$0xf] %v558
      %591 = vst [vmem:[%s172 + $0x10] sm:$0xf] %v559
      %592 = vst [vmem:[%s172 + $0x14] sm:$0xf] %v560
      %593 = vst [vmem:[%s172 + $0x18] sm:$0xf] %v561
      %594 = vst [vmem:[%s172 + $0x1c] sm:$0xf] %v562
      %595 = vst [vmem:[%s172 + $0x20] sm:$0xf] %v563
      %596 = vst [vmem:[%s172 + $0x24] sm:$0xf] %v564
      %597 = vst [vmem:[%s172 + $0x28] sm:$0xf] %v565
      %598 = vst [vmem:[%s172 + $0x2c] sm:$0xf] %v566
      %599 = vst [vmem:[%s172 + $0x30] sm:$0xf] %v567
      %600 = vst [vmem:[%s172 + $0x34] sm:$0xf] %v568
      %601 = vst [vmem:[%s172 + $0x38] sm:$0xf] %v569
      %602 = vst [vmem:[%s172 + $0x3c] sm:$0xf] %v570
      %603 = vst [vmem:[%s172 + $0x40] sm:$0xf] %v571
      %604 = vst [vmem:[%s172 + $0x44] sm:$0xf] %v572
      %605 = vst [vmem:[%s172 + $0x48] sm:$0xf] %v573
      %606 = vst [vmem:[%s172 + $0x4c] sm:$0xf] %v574
      %607 = vst [vmem:[%s172 + $0x50] sm:$0xf] %v575
      %608 = vst [vmem:[%s172 + $0x54] sm:$0xf] %v576
      %609 = vst [vmem:[%s172 + $0x58] sm:$0xf] %v577
      %610 = vst [vmem:[%s172 + $0x5c] sm:$0xf] %v578
      %611 = vst [vmem:[%s172 + $0x60] sm:$0xf] %v579
      %612 = vst [vmem:[%s172 + $0x64] sm:$0xf] %v580
      %613 = vst [vmem:[%s172 + $0x68] sm:$0xf] %v581
      %614 = vst [vmem:[%s172 + $0x6c] sm:$0xf] %v582
      %615 = vst [vmem:[%s172 + $0x70] sm:$0xf] %v583
      %616 = vst [vmem:[%s172 + $0x74] sm:$0xf] %v584
      %617 = vst [vmem:[%s172 + $0x78] sm:$0xf] %v585
      %618 = vst [vmem:[%s172 + $0x7c] sm:$0xf] %v586
      %s619 = smul.u32 32, %s14
      %p620 = scmp.lt.s32.totalorder %s619, 63
      %s621 = scalar_select %p620, %s619, 63
      %s622 = smul.addr %s621, 4
      %s623 = scalar_lea.vmem %s3, %s622
      // Predicated region
      $region33: #{_lambda_.8} parent=31 // pred_check
        %p624 = pneg %p100
      $region34: #{_lambda_.8} parent=31 // pred_check_branch
        %626 = sbr.rel (%p624) target = $region36
      $region35: #{_lambda_.8} parent=31 // pred_region
        %s627 = smul.u32 32, %s14
      $region36: #{_lambda_.8} parent=31 // pred_fallthru
        _
    $region32: #{_lambda_.8} parent=5 // pred_fallthru
      _
    %p628 = scmp.le.s32.totalorder 2, %s9
    // Predicated region
    $region37: #{_lambda_.8} parent=5 // pred_check
      %p629 = pneg %p628
    $region38: #{_lambda_.8} parent=5 // pred_check_branch
      %631 = sbr.rel (%p629) target = $region40
    $region39: #{_lambda_.8} parent=5 // pred_region
      %s632 = ssub.s32 %s9, 2
      // Predicated region
      $region41: #{_lambda_.8} parent=39 // pred_check
        %p633 = pneg %p106
      $region42: #{_lambda_.8} parent=39 // pred_check_branch
        %635 = sbr.rel (%p633) target = $region44
      $region43: #{_lambda_.8} parent=39 // pred_region
        %s636 = smul.u32 32, %s15
        %p637 = scmp.lt.s32.totalorder %s636, 63
        %s638 = scalar_select %p637, %s636, 63
        %s639 = smul.addr %s638, 4
        %s640 = scalar_lea.vmem %s3, %s639
      $region44: #{_lambda_.8} parent=39 // pred_fallthru
        _
    $region40: #{_lambda_.8} parent=5 // pred_fallthru
      _
  $region6: #{_lambda_.8} parent=0 // loop_footer
    %s13 = sadd.s32 1, %s9
  $region7: #{_lambda_.8} parent=0 // loop_footer_branch
    %8 = sbr.rel target = $region3
  $region8: #{_lambda_.8} parent=0 // loop_exit
    _

// kernel: _lambda_.10
$region0: #{_lambda_.10}
  #allocation0 [shape = 'u32[]', space=smem, size = 0x4, offset = 0x4, fixed_abs, tag = 'smem constant byte address 0x4 - core index']
  #allocation1 [shape = 'u32[72,128]{1,0:T(1,128)}', space=vmem, size = 0x9000, scoped, tag = 'internal scratch']
  %s0 = inlined_call_operand.vmem [shape: bf16[128,128], index: 0, kind: input, shape index: {}]
  %s1 = inlined_call_operand.vmem [shape: f32[1,128], index: 1, kind: input, shape index: {}]
  %s2 = inlined_call_operand.vmem [shape: f32[1,128], index: 2, kind: input, shape index: {}]
  %s3 = inlined_call_operand.vmem [shape: bf16[128,128], index: 3, kind: output, shape index: {}]
  %s4 = sld [smem:[#allocation0]]
  $region22: #{_lambda_.10} parent=0
    _
  %s6 = ssub.s32 1, %s4
  %s7 = scalar_select 0, %s6, %s4
  // Predicated region
  $region2: #{_lambda_.10} parent=0 // pred_check
    _
  $region3: #{_lambda_.10} parent=0 // pred_check_branch
    %9 = sbr.rel (0) target = $region5
  $region4: #{_lambda_.10} parent=0 // pred_region
    _
  $region5: #{_lambda_.10} parent=0 // pred_fallthru
    _
  // Predicated region
  $region6: #{_lambda_.10} parent=0 // pred_check
    _
  $region7: #{_lambda_.10} parent=0 // pred_check_branch
    %11 = sbr.rel (0) target = $region9
  $region8: #{_lambda_.10} parent=0 // pred_region
    _
  $region9: #{_lambda_.10} parent=0 // pred_fallthru
    _
  // Predicated region
  $region10: #{_lambda_.10} parent=0 // pred_check
    _
  $region11: #{_lambda_.10} parent=0 // pred_check_branch
    %13 = sbr.rel (0) target = $region13
  $region12: #{_lambda_.10} parent=0 // pred_region
    _
  $region13: #{_lambda_.10} parent=0 // pred_fallthru
    _
  %v14 = vld [vmem:[%s0] sm:$0xf]
  %v15 = vld [vmem:[%s0 + $0x4] sm:$0xf]
  %v16 = vld [vmem:[%s0 + $0x8] sm:$0xf]
  %v17 = vld [vmem:[%s0 + $0xc] sm:$0xf]
  %v18 = vld [vmem:[%s0 + $0x10] sm:$0xf]
  %v19 = vld [vmem:[%s0 + $0x14] sm:$0xf]
  %v20 = vld [vmem:[%s0 + $0x18] sm:$0xf]
  %v21 = vld [vmem:[%s0 + $0x1c] sm:$0xf]
  %v22 = vld [vmem:[%s0 + $0x20] sm:$0xf]
  %v23 = vld [vmem:[%s0 + $0x24] sm:$0xf]
  %v24 = vld [vmem:[%s0 + $0x28] sm:$0xf]
  %v25 = vld [vmem:[%s0 + $0x2c] sm:$0xf]
  %v26 = vld [vmem:[%s0 + $0x30] sm:$0xf]
  %v27 = vld [vmem:[%s0 + $0x34] sm:$0xf]
  %v28 = vld [vmem:[%s0 + $0x38] sm:$0xf]
  %v29 = vld [vmem:[%s0 + $0x3c] sm:$0xf]
  %v30 = vunpack.c.l.bf16 %v14
  %v31 = vunpack.c.l.bf16 %v15
  %v32 = vunpack.c.l.bf16 %v16
  %v33 = vunpack.c.l.bf16 %v17
  %v34 = vunpack.c.l.bf16 %v18
  %v35 = vunpack.c.l.bf16 %v19
  %v36 = vunpack.c.l.bf16 %v20
  %v37 = vunpack.c.l.bf16 %v21
  %v38 = vunpack.c.l.bf16 %v22
  %v39 = vunpack.c.l.bf16 %v23
  %v40 = vunpack.c.l.bf16 %v24
  %v41 = vunpack.c.l.bf16 %v25
  %v42 = vunpack.c.l.bf16 %v26
  %v43 = vunpack.c.l.bf16 %v27
  %v44 = vunpack.c.l.bf16 %v28
  %v45 = vunpack.c.l.bf16 %v29
  %v46 = vld [vmem:[%s1] sm:$0x1]
  %v48 = vperm.slane %v46, 0
  %v50 = vmul.f32 %v30, %v48
  %v51 = vmul.f32 %v31, %v48
  %v52 = vmul.f32 %v32, %v48
  %v53 = vmul.f32 %v33, %v48
  %v54 = vmul.f32 %v34, %v48
  %v55 = vmul.f32 %v35, %v48
  %v56 = vmul.f32 %v36, %v48
  %v57 = vmul.f32 %v37, %v48
  %v58 = vmul.f32 %v38, %v48
  %v59 = vmul.f32 %v39, %v48
  %v60 = vmul.f32 %v40, %v48
  %v61 = vmul.f32 %v41, %v48
  %v62 = vmul.f32 %v42, %v48
  %v63 = vmul.f32 %v43, %v48
  %v64 = vmul.f32 %v44, %v48
  %v65 = vmul.f32 %v45, %v48
  %v66 = vld [vmem:[%s2] sm:$0x1]
  %v68 = vperm.slane %v66, 0
  %v70 = vadd.f32 %v50, %v68
  %v71 = vadd.f32 %v51, %v68
  %v72 = vadd.f32 %v52, %v68
  %v73 = vadd.f32 %v53, %v68
  %v74 = vadd.f32 %v54, %v68
  %v75 = vadd.f32 %v55, %v68
  %v76 = vadd.f32 %v56, %v68
  %v77 = vadd.f32 %v57, %v68
  %v78 = vadd.f32 %v58, %v68
  %v79 = vadd.f32 %v59, %v68
  %v80 = vadd.f32 %v60, %v68
  %v81 = vadd.f32 %v61, %v68
  %v82 = vadd.f32 %v62, %v68
  %v83 = vadd.f32 %v63, %v68
  %v84 = vadd.f32 %v64, %v68
  %v85 = vadd.f32 %v65, %v68
  %vm86 = vcmp.ge.f32.partialorder %v70, 0.0
  %vm87 = vcmp.ge.f32.partialorder %v71, 0.0
  %vm88 = vcmp.ge.f32.partialorder %v72, 0.0
  %vm89 = vcmp.ge.f32.partialorder %v73, 0.0
  %vm90 = vcmp.ge.f32.partialorder %v74, 0.0
  %vm91 = vcmp.ge.f32.partialorder %v75, 0.0
  %vm92 = vcmp.ge.f32.partialorder %v76, 0.0
  %vm93 = vcmp.ge.f32.partialorder %v77, 0.0
  %vm94 = vcmp.ge.f32.partialorder %v78, 0.0
  %vm95 = vcmp.ge.f32.partialorder %v79, 0.0
  %vm96 = vcmp.ge.f32.partialorder %v80, 0.0
  %vm97 = vcmp.ge.f32.partialorder %v81, 0.0
  %vm98 = vcmp.ge.f32.partialorder %v82, 0.0
  %vm99 = vcmp.ge.f32.partialorder %v83, 0.0
  %vm100 = vcmp.ge.f32.partialorder %v84, 0.0
  %vm101 = vcmp.ge.f32.partialorder %v85, 0.0
  %v102 = vmul.f32 %v70, 0.2
  %v103 = vmul.f32 %v71, 0.2
  %v104 = vmul.f32 %v72, 0.2
  %v105 = vmul.f32 %v73, 0.2
  %v106 = vmul.f32 %v74, 0.2
  %v107 = vmul.f32 %v75, 0.2
  %v108 = vmul.f32 %v76, 0.2
  %v109 = vmul.f32 %v77, 0.2
  %v110 = vmul.f32 %v78, 0.2
  %v111 = vmul.f32 %v79, 0.2
  %v112 = vmul.f32 %v80, 0.2
  %v113 = vmul.f32 %v81, 0.2
  %v114 = vmul.f32 %v82, 0.2
  %v115 = vmul.f32 %v83, 0.2
  %v116 = vmul.f32 %v84, 0.2
  %v117 = vmul.f32 %v85, 0.2
  %v118 = vsel %vm86, %v70, %v102
  %v119 = vsel %vm87, %v71, %v103
  %v120 = vsel %vm88, %v72, %v104
  %v121 = vsel %vm89, %v73, %v105
  %v122 = vsel %vm90, %v74, %v106
  %v123 = vsel %vm91, %v75, %v107
  %v124 = vsel %vm92, %v76, %v108
  %v125 = vsel %vm93, %v77, %v109
  %v126 = vsel %vm94, %v78, %v110
  %v127 = vsel %vm95, %v79, %v111
  %v128 = vsel %vm96, %v80, %v112
  %v129 = vsel %vm97, %v81, %v113
  %v130 = vsel %vm98, %v82, %v114
  %v131 = vsel %vm99, %v83, %v115
  %v132 = vsel %vm100, %v84, %v116
  %v133 = vsel %vm101, %v85, %v117
  %v134 = vpack.c.bf16 %v118, %v118
  %v135 = vpack.c.bf16 %v119, %v119
  %v136 = vpack.c.bf16 %v120, %v120
  %v137 = vpack.c.bf16 %v121, %v121
  %v138 = vpack.c.bf16 %v122, %v122
  %v139 = vpack.c.bf16 %v123, %v123
  %v140 = vpack.c.bf16 %v124, %v124
  %v141 = vpack.c.bf16 %v125, %v125
  %v142 = vpack.c.bf16 %v126, %v126
  %v143 = vpack.c.bf16 %v127, %v127
  %v144 = vpack.c.bf16 %v128, %v128
  %v145 = vpack.c.bf16 %v129, %v129
  %v146 = vpack.c.bf16 %v130, %v130
  %v147 = vpack.c.bf16 %v131, %v131
  %v148 = vpack.c.bf16 %v132, %v132
  %v149 = vpack.c.bf16 %v133, %v133
  %150 = vst [vmem:[%s3] sm:$0xf] %v134
  %151 = vst [vmem:[%s3 + $0x4] sm:$0xf] %v135
  %152 = vst [vmem:[%s3 + $0x8] sm:$0xf] %v136
  %153 = vst [vmem:[%s3 + $0xc] sm:$0xf] %v137
  %154 = vst [vmem:[%s3 + $0x10] sm:$0xf] %v138
  %155 = vst [vmem:[%s3 + $0x14] sm:$0xf] %v139
  %156 = vst [vmem:[%s3 + $0x18] sm:$0xf] %v140
  %157 = vst [vmem:[%s3 + $0x1c] sm:$0xf] %v141
  %158 = vst [vmem:[%s3 + $0x20] sm:$0xf] %v142
  %159 = vst [vmem:[%s3 + $0x24] sm:$0xf] %v143
  %160 = vst [vmem:[%s3 + $0x28] sm:$0xf] %v144
  %161 = vst [vmem:[%s3 + $0x2c] sm:$0xf] %v145
  %162 = vst [vmem:[%s3 + $0x30] sm:$0xf] %v146
  %163 = vst [vmem:[%s3 + $0x34] sm:$0xf] %v147
  %164 = vst [vmem:[%s3 + $0x38] sm:$0xf] %v148
  %165 = vst [vmem:[%s3 + $0x3c] sm:$0xf] %v149
  // Predicated region
  $region14: #{_lambda_.10} parent=0 // pred_check
    _
  $region15: #{_lambda_.10} parent=0 // pred_check_branch
    %167 = sbr.rel (0) target = $region17
  $region16: #{_lambda_.10} parent=0 // pred_region
    _
  $region17: #{_lambda_.10} parent=0 // pred_fallthru
    _
  // Predicated region
  $region18: #{_lambda_.10} parent=0 // pred_check
    _
  $region19: #{_lambda_.10} parent=0 // pred_check_branch
    %169 = sbr.rel (0) target = $region21
  $region20: #{_lambda_.10} parent=0 // pred_region
    _
  $region21: #{_lambda_.10} parent=0 // pred_fallthru
    _

// kernel: _lambda_.9
$region0: #{_lambda_.9}
  #allocation0 [shape = 'u32[]', space=smem, size = 0x4, offset = 0x4, fixed_abs, tag = 'smem constant byte address 0x4 - core index']
  #allocation1 [shape = 'u32[72,128]{1,0:T(1,128)}', space=vmem, size = 0x9000, scoped, tag = 'internal scratch']
  %s0 = inlined_call_operand.vmem [shape: bf16[128,2048], index: 0, kind: input, shape index: {}]
  %s1 = inlined_call_operand.vmem [shape: bf16[2048,128], index: 1, kind: input, shape index: {}]
  %s2 = inlined_call_operand.vmem [shape: f32[1,128], index: 2, kind: input, shape index: {}]
  %s3 = inlined_call_operand.vmem [shape: bf16[128,128], index: 3, kind: output, shape index: {0}]
  %s4 = inlined_call_operand.vmem [shape: f32[1,1,128], index: 4, kind: output, shape index: {1}]
  %s5 = inlined_call_operand.vmem [shape: f32[1,1,128], index: 5, kind: output, shape index: {2}]
  %6 = xla_tuple %s3, %s4, %s5
  %s7 = sld [smem:[#allocation0]]
  $region38: #{_lambda_.9} parent=0
    _
  %s9 = ssub.s32 1, %s7
  %s10 = scalar_select 0, %s9, %s7
  // Predicated region
  $region2: #{_lambda_.9} parent=0 // pred_check
    _
  $region3: #{_lambda_.9} parent=0 // pred_check_branch
    %12 = sbr.rel (0) target = $region5
  $region4: #{_lambda_.9} parent=0 // pred_region
    _
  $region5: #{_lambda_.9} parent=0 // pred_fallthru
    _
  // Predicated region
  $region6: #{_lambda_.9} parent=0 // pred_check
    _
  $region7: #{_lambda_.9} parent=0 // pred_check_branch
    %14 = sbr.rel (0) target = $region9
  $region8: #{_lambda_.9} parent=0 // pred_region
    _
  $region9: #{_lambda_.9} parent=0 // pred_fallthru
    _
  // Predicated region
  $region10: #{_lambda_.9} parent=0 // pred_check
    _
  $region11: #{_lambda_.9} parent=0 // pred_check_branch
    %16 = sbr.rel (0) target = $region13
  $region12: #{_lambda_.9} parent=0 // pred_region
    _
  $region13: #{_lambda_.9} parent=0 // pred_fallthru
    _
  %v17 = vld [vmem:[%s0] sm:$0xff]
  %v18 = vld [vmem:[%s0 + $0x8] sm:$0xff]
  %v19 = vld [vmem:[%s0 + $0x10] sm:$0xff]
  %v20 = vld [vmem:[%s0 + $0x18] sm:$0xff]
  %v21 = vld [vmem:[%s0 + $0x20] sm:$0xff]
  %v22 = vld [vmem:[%s0 + $0x28] sm:$0xff]
  %v23 = vld [vmem:[%s0 + $0x30] sm:$0xff]
  %v24 = vld [vmem:[%s0 + $0x38] sm:$0xff]
  %v25 = vld [vmem:[%s0 + $0x40] sm:$0xff]
  %v26 = vld [vmem:[%s0 + $0x48] sm:$0xff]
  %v27 = vld [vmem:[%s0 + $0x50] sm:$0xff]
  %v28 = vld [vmem:[%s0 + $0x58] sm:$0xff]
  %v29 = vld [vmem:[%s0 + $0x60] sm:$0xff]
  %v30 = vld [vmem:[%s0 + $0x68] sm:$0xff]
  %v31 = vld [vmem:[%s0 + $0x70] sm:$0xff]
  %v32 = vld [vmem:[%s0 + $0x78] sm:$0xff]
  %v33 = vld [vmem:[%s0 + $0x80] sm:$0xff]
  %v34 = vld [vmem:[%s0 + $0x88] sm:$0xff]
  %v35 = vld [vmem:[%s0 + $0x90] sm:$0xff]
  %v36 = vld [vmem:[%s0 + $0x98] sm:$0xff]
  %v37 = vld [vmem:[%s0 + $0xa0] sm:$0xff]
  %v38 = vld [vmem:[%s0 + $0xa8] sm:$0xff]
  %v39 = vld [vmem:[%s0 + $0xb0] sm:$0xff]
  %v40 = vld [vmem:[%s0 + $0xb8] sm:$0xff]
  %v41 = vld [vmem:[%s0 + $0xc0] sm:$0xff]
  %v42 = vld [vmem:[%s0 + $0xc8] sm:$0xff]
  %v43 = vld [vmem:[%s0 + $0xd0] sm:$0xff]
  %v44 = vld [vmem:[%s0 + $0xd8] sm:$0xff]
  %v45 = vld [vmem:[%s0 + $0xe0] sm:$0xff]
  %v46 = vld [vmem:[%s0 + $0xe8] sm:$0xff]
  %v47 = vld [vmem:[%s0 + $0xf0] sm:$0xff]
  %v48 = vld [vmem:[%s0 + $0xf8] sm:$0xff]
  %v49 = vld [vmem:[%s0 + $0x100] sm:$0xff]
  %v50 = vld [vmem:[%s0 + $0x108] sm:$0xff]
  %v51 = vld [vmem:[%s0 + $0x110] sm:$0xff]
  %v52 = vld [vmem:[%s0 + $0x118] sm:$0xff]
  %v53 = vld [vmem:[%s0 + $0x120] sm:$0xff]
  %v54 = vld [vmem:[%s0 + $0x128] sm:$0xff]
  %v55 = vld [vmem:[%s0 + $0x130] sm:$0xff]
  %v56 = vld [vmem:[%s0 + $0x138] sm:$0xff]
  %v57 = vld [vmem:[%s0 + $0x140] sm:$0xff]
  %v58 = vld [vmem:[%s0 + $0x148] sm:$0xff]
  %v59 = vld [vmem:[%s0 + $0x150] sm:$0xff]
  %v60 = vld [vmem:[%s0 + $0x158] sm:$0xff]
  %v61 = vld [vmem:[%s0 + $0x160] sm:$0xff]
  %v62 = vld [vmem:[%s0 + $0x168] sm:$0xff]
  %v63 = vld [vmem:[%s0 + $0x170] sm:$0xff]
  %v64 = vld [vmem:[%s0 + $0x178] sm:$0xff]
  %v65 = vld [vmem:[%s0 + $0x180] sm:$0xff]
  %v66 = vld [vmem:[%s0 + $0x188] sm:$0xff]
  %v67 = vld [vmem:[%s0 + $0x190] sm:$0xff]
  %v68 = vld [vmem:[%s0 + $0x198] sm:$0xff]
  %v69 = vld [vmem:[%s0 + $0x1a0] sm:$0xff]
  %v70 = vld [vmem:[%s0 + $0x1a8] sm:$0xff]
  %v71 = vld [vmem:[%s0 + $0x1b0] sm:$0xff]
  %v72 = vld [vmem:[%s0 + $0x1b8] sm:$0xff]
  %v73 = vld [vmem:[%s0 + $0x1c0] sm:$0xff]
  %v74 = vld [vmem:[%s0 + $0x1c8] sm:$0xff]
  %v75 = vld [vmem:[%s0 + $0x1d0] sm:$0xff]
  %v76 = vld [vmem:[%s0 + $0x1d8] sm:$0xff]
  %v77 = vld [vmem:[%s0 + $0x1e0] sm:$0xff]
  %v78 = vld [vmem:[%s0 + $0x1e8] sm:$0xff]
  %v79 = vld [vmem:[%s0 + $0x1f0] sm:$0xff]
  %v80 = vld [vmem:[%s0 + $0x1f8] sm:$0xff]
  %v81 = vld [vmem:[%s0 + $0x200] sm:$0xff]
  %v82 = vld [vmem:[%s0 + $0x208] sm:$0xff]
  %v83 = vld [vmem:[%s0 + $0x210] sm:$0xff]
  %v84 = vld [vmem:[%s0 + $0x218] sm:$0xff]
  %v85 = vld [vmem:[%s0 + $0x220] sm:$0xff]
  %v86 = vld [vmem:[%s0 + $0x228] sm:$0xff]
  %v87 = vld [vmem:[%s0 + $0x230] sm:$0xff]
  %v88 = vld [vmem:[%s0 + $0x238] sm:$0xff]
  %v89 = vld [vmem:[%s0 + $0x240] sm:$0xff]
  %v90 = vld [vmem:[%s0 + $0x248] sm:$0xff]
  %v91 = vld [vmem:[%s0 + $0x250] sm:$0xff]
  %v92 = vld [vmem:[%s0 + $0x258] sm:$0xff]
  %v93 = vld [vmem:[%s0 + $0x260] sm:$0xff]
  %v94 = vld [vmem:[%s0 + $0x268] sm:$0xff]
  %v95 = vld [vmem:[%s0 + $0x270] sm:$0xff]
  %v96 = vld [vmem:[%s0 + $0x278] sm:$0xff]
  %v97 = vld [vmem:[%s0 + $0x280] sm:$0xff]
  %v98 = vld [vmem:[%s0 + $0x288] sm:$0xff]
  %v99 = vld [vmem:[%s0 + $0x290] sm:$0xff]
  %v100 = vld [vmem:[%s0 + $0x298] sm:$0xff]
  %v101 = vld [vmem:[%s0 + $0x2a0] sm:$0xff]
  %v102 = vld [vmem:[%s0 + $0x2a8] sm:$0xff]
  %v103 = vld [vmem:[%s0 + $0x2b0] sm:$0xff]
  %v104 = vld [vmem:[%s0 + $0x2b8] sm:$0xff]
  %v105 = vld [vmem:[%s0 + $0x2c0] sm:$0xff]
  %v106 = vld [vmem:[%s0 + $0x2c8] sm:$0xff]
  %v107 = vld [vmem:[%s0 + $0x2d0] sm:$0xff]
  %v108 = vld [vmem:[%s0 + $0x2d8] sm:$0xff]
  %v109 = vld [vmem:[%s0 + $0x2e0] sm:$0xff]
  %v110 = vld [vmem:[%s0 + $0x2e8] sm:$0xff]
  %v111 = vld [vmem:[%s0 + $0x2f0] sm:$0xff]
  %v112 = vld [vmem:[%s0 + $0x2f8] sm:$0xff]
  %v113 = vld [vmem:[%s0 + $0x300] sm:$0xff]
  %v114 = vld [vmem:[%s0 + $0x308] sm:$0xff]
  %v115 = vld [vmem:[%s0 + $0x310] sm:$0xff]
  %v116 = vld [vmem:[%s0 + $0x318] sm:$0xff]
  %v117 = vld [vmem:[%s0 + $0x320] sm:$0xff]
  %v118 = vld [vmem:[%s0 + $0x328] sm:$0xff]
  %v119 = vld [vmem:[%s0 + $0x330] sm:$0xff]
  %v120 = vld [vmem:[%s0 + $0x338] sm:$0xff]
  %v121 = vld [vmem:[%s0 + $0x340] sm:$0xff]
  %v122 = vld [vmem:[%s0 + $0x348] sm:$0xff]
  %v123 = vld [vmem:[%s0 + $0x350] sm:$0xff]
  %v124 = vld [vmem:[%s0 + $0x358] sm:$0xff]
  %v125 = vld [vmem:[%s0 + $0x360] sm:$0xff]
  %v126 = vld [vmem:[%s0 + $0x368] sm:$0xff]
  %v127 = vld [vmem:[%s0 + $0x370] sm:$0xff]
  %v128 = vld [vmem:[%s0 + $0x378] sm:$0xff]
  %v129 = vld [vmem:[%s0 + $0x380] sm:$0xff]
  %v130 = vld [vmem:[%s0 + $0x388] sm:$0xff]
  %v131 = vld [vmem:[%s0 + $0x390] sm:$0xff]
  %v132 = vld [vmem:[%s0 + $0x398] sm:$0xff]
  %v133 = vld [vmem:[%s0 + $0x3a0] sm:$0xff]
  %v134 = vld [vmem:[%s0 + $0x3a8] sm:$0xff]
  %v135 = vld [vmem:[%s0 + $0x3b0] sm:$0xff]
  %v136 = vld [vmem:[%s0 + $0x3b8] sm:$0xff]
  %v137 = vld [vmem:[%s0 + $0x3c0] sm:$0xff]
  %v138 = vld [vmem:[%s0 + $0x3c8] sm:$0xff]
  %v139 = vld [vmem:[%s0 + $0x3d0] sm:$0xff]
  %v140 = vld [vmem:[%s0 + $0x3d8] sm:$0xff]
  %v141 = vld [vmem:[%s0 + $0x3e0] sm:$0xff]
  %v142 = vld [vmem:[%s0 + $0x3e8] sm:$0xff]
  %v143 = vld [vmem:[%s0 + $0x3f0] sm:$0xff]
  %v144 = vld [vmem:[%s0 + $0x3f8] sm:$0xff]
  %v145 = vld [vmem:[%s1] sm:$0xf]
  %v146 = vld [vmem:[%s1 + $0x4] sm:$0xf]
  %v147 = vld [vmem:[%s1 + $0x8] sm:$0xf]
  %v148 = vld [vmem:[%s1 + $0xc] sm:$0xf]
  %v149 = vld [vmem:[%s1 + $0x10] sm:$0xf]
  %v150 = vld [vmem:[%s1 + $0x14] sm:$0xf]
  %v151 = vld [vmem:[%s1 + $0x18] sm:$0xf]
  %v152 = vld [vmem:[%s1 + $0x1c] sm:$0xf]
  %v153 = vld [vmem:[%s1 + $0x20] sm:$0xf]
  %v154 = vld [vmem:[%s1 + $0x24] sm:$0xf]
  %v155 = vld [vmem:[%s1 + $0x28] sm:$0xf]
  %v156 = vld [vmem:[%s1 + $0x2c] sm:$0xf]
  %v157 = vld [vmem:[%s1 + $0x30] sm:$0xf]
  %v158 = vld [vmem:[%s1 + $0x34] sm:$0xf]
  %v159 = vld [vmem:[%s1 + $0x38] sm:$0xf]
  %v160 = vld [vmem:[%s1 + $0x3c] sm:$0xf]
  %v161 = vld [vmem:[%s1 + $0x40] sm:$0xf]
  %v162 = vld [vmem:[%s1 + $0x44] sm:$0xf]
  %v163 = vld [vmem:[%s1 + $0x48] sm:$0xf]
  %v164 = vld [vmem:[%s1 + $0x4c] sm:$0xf]
  %v165 = vld [vmem:[%s1 + $0x50] sm:$0xf]
  %v166 = vld [vmem:[%s1 + $0x54] sm:$0xf]
  %v167 = vld [vmem:[%s1 + $0x58] sm:$0xf]
  %v168 = vld [vmem:[%s1 + $0x5c] sm:$0xf]
  %v169 = vld [vmem:[%s1 + $0x60] sm:$0xf]
  %v170 = vld [vmem:[%s1 + $0x64] sm:$0xf]
  %v171 = vld [vmem:[%s1 + $0x68] sm:$0xf]
  %v172 = vld [vmem:[%s1 + $0x6c] sm:$0xf]
  %v173 = vld [vmem:[%s1 + $0x70] sm:$0xf]
  %v174 = vld [vmem:[%s1 + $0x74] sm:$0xf]
  %v175 = vld [vmem:[%s1 + $0x78] sm:$0xf]
  %v176 = vld [vmem:[%s1 + $0x7c] sm:$0xf]
  %v177 = vld [vmem:[%s1 + $0x80] sm:$0xf]
  %v178 = vld [vmem:[%s1 + $0x84] sm:$0xf]
  %v179 = vld [vmem:[%s1 + $0x88] sm:$0xf]
  %v180 = vld [vmem:[%s1 + $0x8c] sm:$0xf]
  %v181 = vld [vmem:[%s1 + $0x90] sm:$0xf]
  %v182 = vld [vmem:[%s1 + $0x94] sm:$0xf]
  %v183 = vld [vmem:[%s1 + $0x98] sm:$0xf]
  %v184 = vld [vmem:[%s1 + $0x9c] sm:$0xf]
  %v185 = vld [vmem:[%s1 + $0xa0] sm:$0xf]
  %v186 = vld [vmem:[%s1 + $0xa4] sm:$0xf]
  %v187 = vld [vmem:[%s1 + $0xa8] sm:$0xf]
  %v188 = vld [vmem:[%s1 + $0xac] sm:$0xf]
  %v189 = vld [vmem:[%s1 + $0xb0] sm:$0xf]
  %v190 = vld [vmem:[%s1 + $0xb4] sm:$0xf]
  %v191 = vld [vmem:[%s1 + $0xb8] sm:$0xf]
  %v192 = vld [vmem:[%s1 + $0xbc] sm:$0xf]
  %v193 = vld [vmem:[%s1 + $0xc0] sm:$0xf]
  %v194 = vld [vmem:[%s1 + $0xc4] sm:$0xf]
  %v195 = vld [vmem:[%s1 + $0xc8] sm:$0xf]
  %v196 = vld [vmem:[%s1 + $0xcc] sm:$0xf]
  %v197 = vld [vmem:[%s1 + $0xd0] sm:$0xf]
  %v198 = vld [vmem:[%s1 + $0xd4] sm:$0xf]
  %v199 = vld [vmem:[%s1 + $0xd8] sm:$0xf]
  %v200 = vld [vmem:[%s1 + $0xdc] sm:$0xf]
  %v201 = vld [vmem:[%s1 + $0xe0] sm:$0xf]
  %v202 = vld [vmem:[%s1 + $0xe4] sm:$0xf]
  %v203 = vld [vmem:[%s1 + $0xe8] sm:$0xf]
  %v204 = vld [vmem:[%s1 + $0xec] sm:$0xf]
  %v205 = vld [vmem:[%s1 + $0xf0] sm:$0xf]
  %v206 = vld [vmem:[%s1 + $0xf4] sm:$0xf]
  %v207 = vld [vmem:[%s1 + $0xf8] sm:$0xf]
  %v208 = vld [vmem:[%s1 + $0xfc] sm:$0xf]
  %v209 = vld [vmem:[%s1 + $0x100] sm:$0xf]
  %v210 = vld [vmem:[%s1 + $0x104] sm:$0xf]
  %v211 = vld [vmem:[%s1 + $0x108] sm:$0xf]
  %v212 = vld [vmem:[%s1 + $0x10c] sm:$0xf]
  %v213 = vld [vmem:[%s1 + $0x110] sm:$0xf]
  %v214 = vld [vmem:[%s1 + $0x114] sm:$0xf]
  %v215 = vld [vmem:[%s1 + $0x118] sm:$0xf]
  %v216 = vld [vmem:[%s1 + $0x11c] sm:$0xf]
  %v217 = vld [vmem:[%s1 + $0x120] sm:$0xf]
  %v218 = vld [vmem:[%s1 + $0x124] sm:$0xf]
  %v219 = vld [vmem:[%s1 + $0x128] sm:$0xf]
  %v220 = vld [vmem:[%s1 + $0x12c] sm:$0xf]
  %v221 = vld [vmem:[%s1 + $0x130] sm:$0xf]
  %v222 = vld [vmem:[%s1 + $0x134] sm:$0xf]
  %v223 = vld [vmem:[%s1 + $0x138] sm:$0xf]
  %v224 = vld [vmem:[%s1 + $0x13c] sm:$0xf]
  %v225 = vld [vmem:[%s1 + $0x140] sm:$0xf]
  %v226 = vld [vmem:[%s1 + $0x144] sm:$0xf]
  %v227 = vld [vmem:[%s1 + $0x148] sm:$0xf]
  %v228 = vld [vmem:[%s1 + $0x14c] sm:$0xf]
  %v229 = vld [vmem:[%s1 + $0x150] sm:$0xf]
  %v230 = vld [vmem:[%s1 + $0x154] sm:$0xf]
  %v231 = vld [vmem:[%s1 + $0x158] sm:$0xf]
  %v232 = vld [vmem:[%s1 + $0x15c] sm:$0xf]
  %v233 = vld [vmem:[%s1 + $0x160] sm:$0xf]
  %v234 = vld [vmem:[%s1 + $0x164] sm:$0xf]
  %v235 = vld [vmem:[%s1 + $0x168] sm:$0xf]
  %v236 = vld [vmem:[%s1 + $0x16c] sm:$0xf]
  %v237 = vld [vmem:[%s1 + $0x170] sm:$0xf]
  %v238 = vld [vmem:[%s1 + $0x174] sm:$0xf]
  %v239 = vld [vmem:[%s1 + $0x178] sm:$0xf]
  %v240 = vld [vmem:[%s1 + $0x17c] sm:$0xf]
  %v241 = vld [vmem:[%s1 + $0x180] sm:$0xf]
  %v242 = vld [vmem:[%s1 + $0x184] sm:$0xf]
  %v243 = vld [vmem:[%s1 + $0x188] sm:$0xf]
  %v244 = vld [vmem:[%s1 + $0x18c] sm:$0xf]
  %v245 = vld [vmem:[%s1 + $0x190] sm:$0xf]
  %v246 = vld [vmem:[%s1 + $0x194] sm:$0xf]
  %v247 = vld [vmem:[%s1 + $0x198] sm:$0xf]
  %v248 = vld [vmem:[%s1 + $0x19c] sm:$0xf]
  %v249 = vld [vmem:[%s1 + $0x1a0] sm:$0xf]
  %v250 = vld [vmem:[%s1 + $0x1a4] sm:$0xf]
  %v251 = vld [vmem:[%s1 + $0x1a8] sm:$0xf]
  %v252 = vld [vmem:[%s1 + $0x1ac] sm:$0xf]
  %v253 = vld [vmem:[%s1 + $0x1b0] sm:$0xf]
  %v254 = vld [vmem:[%s1 + $0x1b4] sm:$0xf]
  %v255 = vld [vmem:[%s1 + $0x1b8] sm:$0xf]
  %v256 = vld [vmem:[%s1 + $0x1bc] sm:$0xf]
  %v257 = vld [vmem:[%s1 + $0x1c0] sm:$0xf]
  %v258 = vld [vmem:[%s1 + $0x1c4] sm:$0xf]
  %v259 = vld [vmem:[%s1 + $0x1c8] sm:$0xf]
  %v260 = vld [vmem:[%s1 + $0x1cc] sm:$0xf]
  %v261 = vld [vmem:[%s1 + $0x1d0] sm:$0xf]
  %v262 = vld [vmem:[%s1 + $0x1d4] sm:$0xf]
  %v263 = vld [vmem:[%s1 + $0x1d8] sm:$0xf]
  %v264 = vld [vmem:[%s1 + $0x1dc] sm:$0xf]
  %v265 = vld [vmem:[%s1 + $0x1e0] sm:$0xf]
  %v266 = vld [vmem:[%s1 + $0x1e4] sm:$0xf]
  %v267 = vld [vmem:[%s1 + $0x1e8] sm:$0xf]
  %v268 = vld [vmem:[%s1 + $0x1ec] sm:$0xf]
  %v269 = vld [vmem:[%s1 + $0x1f0] sm:$0xf]
  %v270 = vld [vmem:[%s1 + $0x1f4] sm:$0xf]
  %v271 = vld [vmem:[%s1 + $0x1f8] sm:$0xf]
  %v272 = vld [vmem:[%s1 + $0x1fc] sm:$0xf]
  %v273 = vld [vmem:[%s1 + $0x200] sm:$0xf]
  %v274 = vld [vmem:[%s1 + $0x204] sm:$0xf]
  %v275 = vld [vmem:[%s1 + $0x208] sm:$0xf]
  %v276 = vld [vmem:[%s1 + $0x20c] sm:$0xf]
  %v277 = vld [vmem:[%s1 + $0x210] sm:$0xf]
  %v278 = vld [vmem:[%s1 + $0x214] sm:$0xf]
  %v279 = vld [vmem:[%s1 + $0x218] sm:$0xf]
  %v280 = vld [vmem:[%s1 + $0x21c] sm:$0xf]
  %v281 = vld [vmem:[%s1 + $0x220] sm:$0xf]
  %v282 = vld [vmem:[%s1 + $0x224] sm:$0xf]
  %v283 = vld [vmem:[%s1 + $0x228] sm:$0xf]
  %v284 = vld [vmem:[%s1 + $0x22c] sm:$0xf]
  %v285 = vld [vmem:[%s1 + $0x230] sm:$0xf]
  %v286 = vld [vmem:[%s1 + $0x234] sm:$0xf]
  %v287 = vld [vmem:[%s1 + $0x238] sm:$0xf]
  %v288 = vld [vmem:[%s1 + $0x23c] sm:$0xf]
  %v289 = vld [vmem:[%s1 + $0x240] sm:$0xf]
  %v290 = vld [vmem:[%s1 + $0x244] sm:$0xf]
  %v291 = vld [vmem:[%s1 + $0x248] sm:$0xf]
  %v292 = vld [vmem:[%s1 + $0x24c] sm:$0xf]
  %v293 = vld [vmem:[%s1 + $0x250] sm:$0xf]
  %v294 = vld [vmem:[%s1 + $0x254] sm:$0xf]
  %v295 = vld [vmem:[%s1 + $0x258] sm:$0xf]
  %v296 = vld [vmem:[%s1 + $0x25c] sm:$0xf]
  %v297 = vld [vmem:[%s1 + $0x260] sm:$0xf]
  %v298 = vld [vmem:[%s1 + $0x264] sm:$0xf]
  %v299 = vld [vmem:[%s1 + $0x268] sm:$0xf]
  %v300 = vld [vmem:[%s1 + $0x26c] sm:$0xf]
  %v301 = vld [vmem:[%s1 + $0x270] sm:$0xf]
  %v302 = vld [vmem:[%s1 + $0x274] sm:$0xf]
  %v303 = vld [vmem:[%s1 + $0x278] sm:$0xf]
  %v304 = vld [vmem:[%s1 + $0x27c] sm:$0xf]
  %v305 = vld [vmem:[%s1 + $0x280] sm:$0xf]
  %v306 = vld [vmem:[%s1 + $0x284] sm:$0xf]
  %v307 = vld [vmem:[%s1 + $0x288] sm:$0xf]
  %v308 = vld [vmem:[%s1 + $0x28c] sm:$0xf]
  %v309 = vld [vmem:[%s1 + $0x290] sm:$0xf]
  %v310 = vld [vmem:[%s1 + $0x294] sm:$0xf]
  %v311 = vld [vmem:[%s1 + $0x298] sm:$0xf]
  %v312 = vld [vmem:[%s1 + $0x29c] sm:$0xf]
  %v313 = vld [vmem:[%s1 + $0x2a0] sm:$0xf]
  %v314 = vld [vmem:[%s1 + $0x2a4] sm:$0xf]
  %v315 = vld [vmem:[%s1 + $0x2a8] sm:$0xf]
  %v316 = vld [vmem:[%s1 + $0x2ac] sm:$0xf]
  %v317 = vld [vmem:[%s1 + $0x2b0] sm:$0xf]
  %v318 = vld [vmem:[%s1 + $0x2b4] sm:$0xf]
  %v319 = vld [vmem:[%s1 + $0x2b8] sm:$0xf]
  %v320 = vld [vmem:[%s1 + $0x2bc] sm:$0xf]
  %v321 = vld [vmem:[%s1 + $0x2c0] sm:$0xf]
  %v322 = vld [vmem:[%s1 + $0x2c4] sm:$0xf]
  %v323 = vld [vmem:[%s1 + $0x2c8] sm:$0xf]
  %v324 = vld [vmem:[%s1 + $0x2cc] sm:$0xf]
  %v325 = vld [vmem:[%s1 + $0x2d0] sm:$0xf]
  %v326 = vld [vmem:[%s1 + $0x2d4] sm:$0xf]
  %v327 = vld [vmem:[%s1 + $0x2d8] sm:$0xf]
  %v328 = vld [vmem:[%s1 + $0x2dc] sm:$0xf]
  %v329 = vld [vmem:[%s1 + $0x2e0] sm:$0xf]
  %v330 = vld [vmem:[%s1 + $0x2e4] sm:$0xf]
  %v331 = vld [vmem:[%s1 + $0x2e8] sm:$0xf]
  %v332 = vld [vmem:[%s1 + $0x2ec] sm:$0xf]
  %v333 = vld [vmem:[%s1 + $0x2f0] sm:$0xf]
  %v334 = vld [vmem:[%s1 + $0x2f4] sm:$0xf]
  %v335 = vld [vmem:[%s1 + $0x2f8] sm:$0xf]
  %v336 = vld [vmem:[%s1 + $0x2fc] sm:$0xf]
  %v337 = vld [vmem:[%s1 + $0x300] sm:$0xf]
  %v338 = vld [vmem:[%s1 + $0x304] sm:$0xf]
  %v339 = vld [vmem:[%s1 + $0x308] sm:$0xf]
  %v340 = vld [vmem:[%s1 + $0x30c] sm:$0xf]
  %v341 = vld [vmem:[%s1 + $0x310] sm:$0xf]
  %v342 = vld [vmem:[%s1 + $0x314] sm:$0xf]
  %v343 = vld [vmem:[%s1 + $0x318] sm:$0xf]
  %v344 = vld [vmem:[%s1 + $0x31c] sm:$0xf]
  %v345 = vld [vmem:[%s1 + $0x320] sm:$0xf]
  %v346 = vld [vmem:[%s1 + $0x324] sm:$0xf]
  %v347 = vld [vmem:[%s1 + $0x328] sm:$0xf]
  %v348 = vld [vmem:[%s1 + $0x32c] sm:$0xf]
  %v349 = vld [vmem:[%s1 + $0x330] sm:$0xf]
  %v350 = vld [vmem:[%s1 + $0x334] sm:$0xf]
  %v351 = vld [vmem:[%s1 + $0x338] sm:$0xf]
  %v352 = vld [vmem:[%s1 + $0x33c] sm:$0xf]
  %v353 = vld [vmem:[%s1 + $0x340] sm:$0xf]
  %v354 = vld [vmem:[%s1 + $0x344] sm:$0xf]
  %v355 = vld [vmem:[%s1 + $0x348] sm:$0xf]
  %v356 = vld [vmem:[%s1 + $0x34c] sm:$0xf]
  %v357 = vld [vmem:[%s1 + $0x350] sm:$0xf]
  %v358 = vld [vmem:[%s1 + $0x354] sm:$0xf]
  %v359 = vld [vmem:[%s1 + $0x358] sm:$0xf]
  %v360 = vld [vmem:[%s1 + $0x35c] sm:$0xf]
  %v361 = vld [vmem:[%s1 + $0x360] sm:$0xf]
  %v362 = vld [vmem:[%s1 + $0x364] sm:$0xf]
  %v363 = vld [vmem:[%s1 + $0x368] sm:$0xf]
  %v364 = vld [vmem:[%s1 + $0x36c] sm:$0xf]
  %v365 = vld [vmem:[%s1 + $0x370] sm:$0xf]
  %v366 = vld [vmem:[%s1 + $0x374] sm:$0xf]
  %v367 = vld [vmem:[%s1 + $0x378] sm:$0xf]
  %v368 = vld [vmem:[%s1 + $0x37c] sm:$0xf]
  %v369 = vld [vmem:[%s1 + $0x380] sm:$0xf]
  %v370 = vld [vmem:[%s1 + $0x384] sm:$0xf]
  %v371 = vld [vmem:[%s1 + $0x388] sm:$0xf]
  %v372 = vld [vmem:[%s1 + $0x38c] sm:$0xf]
  %v373 = vld [vmem:[%s1 + $0x390] sm:$0xf]
  %v374 = vld [vmem:[%s1 + $0x394] sm:$0xf]
  %v375 = vld [vmem:[%s1 + $0x398] sm:$0xf]
  %v376 = vld [vmem:[%s1 + $0x39c] sm:$0xf]
  %v377 = vld [vmem:[%s1 + $0x3a0] sm:$0xf]
  %v378 = vld [vmem:[%s1 + $0x3a4] sm:$0xf]
  %v379 = vld [vmem:[%s1 + $0x3a8] sm:$0xf]
  %v380 = vld [vmem:[%s1 + $0x3ac] sm:$0xf]
  %v381 = vld [vmem:[%s1 + $0x3b0] sm:$0xf]
  %v382 = vld [vmem:[%s1 + $0x3b4] sm:$0xf]
  %v383 = vld [vmem:[%s1 + $0x3b8] sm:$0xf]
  %v384 = vld [vmem:[%s1 + $0x3bc] sm:$0xf]
  %v385 = vld [vmem:[%s1 + $0x3c0] sm:$0xf]
  %v386 = vld [vmem:[%s1 + $0x3c4] sm:$0xf]
  %v387 = vld [vmem:[%s1 + $0x3c8] sm:$0xf]
  %v388 = vld [vmem:[%s1 + $0x3cc] sm:$0xf]
  %v389 = vld [vmem:[%s1 + $0x3d0] sm:$0xf]
  %v390 = vld [vmem:[%s1 + $0x3d4] sm:$0xf]
  %v391 = vld [vmem:[%s1 + $0x3d8] sm:$0xf]
  %v392 = vld [vmem:[%s1 + $0x3dc] sm:$0xf]
  %v393 = vld [vmem:[%s1 + $0x3e0] sm:$0xf]
  %v394 = vld [vmem:[%s1 + $0x3e4] sm:$0xf]
  %v395 = vld [vmem:[%s1 + $0x3e8] sm:$0xf]
  %v396 = vld [vmem:[%s1 + $0x3ec] sm:$0xf]
  %v397 = vld [vmem:[%s1 + $0x3f0] sm:$0xf]
  %v398 = vld [vmem:[%s1 + $0x3f4] sm:$0xf]
  %v399 = vld [vmem:[%s1 + $0x3f8] sm:$0xf]
  %v400 = vld [vmem:[%s1 + $0x3fc] sm:$0xf]
  %v401 = vld [vmem:[%s2] sm:$0x1]
  %v403 = vperm.slane %v401, 0
  %v533 = vunpack.c.l.b16 %v17
  %v534 = vunpack.c.h.b16 %v17
  %v535 = vunpack.c.l.b16 %v18
  %v536 = vunpack.c.h.b16 %v18
  %v537 = vunpack.c.l.b16 %v19
  %v538 = vunpack.c.h.b16 %v19
  %v539 = vunpack.c.l.b16 %v20
  %v540 = vunpack.c.h.b16 %v20
  %v541 = vunpack.c.l.b16 %v21
  %v542 = vunpack.c.h.b16 %v21
  %v543 = vunpack.c.l.b16 %v22
  %v544 = vunpack.c.h.b16 %v22
  %v545 = vunpack.c.l.b16 %v23
  %v546 = vunpack.c.h.b16 %v23
  %v547 = vunpack.c.l.b16 %v24
  %v548 = vunpack.c.h.b16 %v24
  %v549 = vunpack.c.l.b16 %v25
  %v550 = vunpack.c.h.b16 %v25
  %v551 = vunpack.c.l.b16 %v26
  %v552 = vunpack.c.h.b16 %v26
  %v553 = vunpack.c.l.b16 %v27
  %v554 = vunpack.c.h.b16 %v27
  %v555 = vunpack.c.l.b16 %v28
  %v556 = vunpack.c.h.b16 %v28
  %v557 = vunpack.c.l.b16 %v29
  %v558 = vunpack.c.h.b16 %v29
  %v559 = vunpack.c.l.b16 %v30
  %v560 = vunpack.c.h.b16 %v30
  %v561 = vunpack.c.l.b16 %v31
  %v562 = vunpack.c.h.b16 %v31
  %v563 = vunpack.c.l.b16 %v32
  %v564 = vunpack.c.h.b16 %v32
  %v565 = vunpack.c.l.b16 %v33
  %v566 = vunpack.c.h.b16 %v33
  %v567 = vunpack.c.l.b16 %v34
  %v568 = vunpack.c.h.b16 %v34
  %v569 = vunpack.c.l.b16 %v35
  %v570 = vunpack.c.h.b16 %v35
  %v571 = vunpack.c.l.b16 %v36
  %v572 = vunpack.c.h.b16 %v36
  %v573 = vunpack.c.l.b16 %v37
  %v574 = vunpack.c.h.b16 %v37
  %v575 = vunpack.c.l.b16 %v38
  %v576 = vunpack.c.h.b16 %v38
  %v577 = vunpack.c.l.b16 %v39
  %v578 = vunpack.c.h.b16 %v39
  %v579 = vunpack.c.l.b16 %v40
  %v580 = vunpack.c.h.b16 %v40
  %v581 = vunpack.c.l.b16 %v41
  %v582 = vunpack.c.h.b16 %v41
  %v583 = vunpack.c.l.b16 %v42
  %v584 = vunpack.c.h.b16 %v42
  %v585 = vunpack.c.l.b16 %v43
  %v586 = vunpack.c.h.b16 %v43
  %v587 = vunpack.c.l.b16 %v44
  %v588 = vunpack.c.h.b16 %v44
  %v589 = vunpack.c.l.b16 %v45
  %v590 = vunpack.c.h.b16 %v45
  %v591 = vunpack.c.l.b16 %v46
  %v592 = vunpack.c.h.b16 %v46
  %v593 = vunpack.c.l.b16 %v47
  %v594 = vunpack.c.h.b16 %v47
  %v595 = vunpack.c.l.b16 %v48
  %v596 = vunpack.c.h.b16 %v48
  %v597 = vunpack.c.l.b16 %v49
  %v598 = vunpack.c.h.b16 %v49
  %v599 = vunpack.c.l.b16 %v50
  %v600 = vunpack.c.h.b16 %v50
  %v601 = vunpack.c.l.b16 %v51
  %v602 = vunpack.c.h.b16 %v51
  %v603 = vunpack.c.l.b16 %v52
  %v604 = vunpack.c.h.b16 %v52
  %v605 = vunpack.c.l.b16 %v53
  %v606 = vunpack.c.h.b16 %v53
  %v607 = vunpack.c.l.b16 %v54
  %v608 = vunpack.c.h.b16 %v54
  %v609 = vunpack.c.l.b16 %v55
  %v610 = vunpack.c.h.b16 %v55
  %v611 = vunpack.c.l.b16 %v56
  %v612 = vunpack.c.h.b16 %v56
  %v613 = vunpack.c.l.b16 %v57
  %v614 = vunpack.c.h.b16 %v57
  %v615 = vunpack.c.l.b16 %v58
  %v616 = vunpack.c.h.b16 %v58
  %v617 = vunpack.c.l.b16 %v59
  %v618 = vunpack.c.h.b16 %v59
  %v619 = vunpack.c.l.b16 %v60
  %v620 = vunpack.c.h.b16 %v60
  %v621 = vunpack.c.l.b16 %v61
  %v622 = vunpack.c.h.b16 %v61
  %v623 = vunpack.c.l.b16 %v62
  %v624 = vunpack.c.h.b16 %v62
  %v625 = vunpack.c.l.b16 %v63
  %v626 = vunpack.c.h.b16 %v63
  %v627 = vunpack.c.l.b16 %v64
  %v628 = vunpack.c.h.b16 %v64
  %v629 = vunpack.c.l.b16 %v65
  %v630 = vunpack.c.h.b16 %v65
  %v631 = vunpack.c.l.b16 %v66
  %v632 = vunpack.c.h.b16 %v66
  %v633 = vunpack.c.l.b16 %v67
  %v634 = vunpack.c.h.b16 %v67
  %v635 = vunpack.c.l.b16 %v68
  %v636 = vunpack.c.h.b16 %v68
  %v637 = vunpack.c.l.b16 %v69
  %v638 = vunpack.c.h.b16 %v69
  %v639 = vunpack.c.l.b16 %v70
  %v640 = vunpack.c.h.b16 %v70
  %v641 = vunpack.c.l.b16 %v71
  %v642 = vunpack.c.h.b16 %v71
  %v643 = vunpack.c.l.b16 %v72
  %v644 = vunpack.c.h.b16 %v72
  %v645 = vunpack.c.l.b16 %v73
  %v646 = vunpack.c.h.b16 %v73
  %v647 = vunpack.c.l.b16 %v74
  %v648 = vunpack.c.h.b16 %v74
  %v649 = vunpack.c.l.b16 %v75
  %v650 = vunpack.c.h.b16 %v75
  %v651 = vunpack.c.l.b16 %v76
  %v652 = vunpack.c.h.b16 %v76
  %v653 = vunpack.c.l.b16 %v77
  %v654 = vunpack.c.h.b16 %v77
  %v655 = vunpack.c.l.b16 %v78
  %v656 = vunpack.c.h.b16 %v78
  %v657 = vunpack.c.l.b16 %v79
  %v658 = vunpack.c.h.b16 %v79
  %v659 = vunpack.c.l.b16 %v80
  %v660 = vunpack.c.h.b16 %v80
  %v661 = vunpack.c.l.b16 %v81
  %v662 = vunpack.c.h.b16 %v81
  %v663 = vunpack.c.l.b16 %v82
  %v664 = vunpack.c.h.b16 %v82
  %v665 = vunpack.c.l.b16 %v83
  %v666 = vunpack.c.h.b16 %v83
  %v667 = vunpack.c.l.b16 %v84
  %v668 = vunpack.c.h.b16 %v84
  %v669 = vunpack.c.l.b16 %v85
  %v670 = vunpack.c.h.b16 %v85
  %v671 = vunpack.c.l.b16 %v86
  %v672 = vunpack.c.h.b16 %v86
  %v673 = vunpack.c.l.b16 %v87
  %v674 = vunpack.c.h.b16 %v87
  %v675 = vunpack.c.l.b16 %v88
  %v676 = vunpack.c.h.b16 %v88
  %v677 = vunpack.c.l.b16 %v89
  %v678 = vunpack.c.h.b16 %v89
  %v679 = vunpack.c.l.b16 %v90
  %v680 = vunpack.c.h.b16 %v90
  %v681 = vunpack.c.l.b16 %v91
  %v682 = vunpack.c.h.b16 %v91
  %v683 = vunpack.c.l.b16 %v92
  %v684 = vunpack.c.h.b16 %v92
  %v685 = vunpack.c.l.b16 %v93
  %v686 = vunpack.c.h.b16 %v93
  %v687 = vunpack.c.l.b16 %v94
  %v688 = vunpack.c.h.b16 %v94
  %v689 = vunpack.c.l.b16 %v95
  %v690 = vunpack.c.h.b16 %v95
  %v691 = vunpack.c.l.b16 %v96
  %v692 = vunpack.c.h.b16 %v96
  %v693 = vunpack.c.l.b16 %v97
  %v694 = vunpack.c.h.b16 %v97
  %v695 = vunpack.c.l.b16 %v98
  %v696 = vunpack.c.h.b16 %v98
  %v697 = vunpack.c.l.b16 %v99
  %v698 = vunpack.c.h.b16 %v99
  %v699 = vunpack.c.l.b16 %v100
  %v700 = vunpack.c.h.b16 %v100
  %v701 = vunpack.c.l.b16 %v101
  %v702 = vunpack.c.h.b16 %v101
  %v703 = vunpack.c.l.b16 %v102
  %v704 = vunpack.c.h.b16 %v102
  %v705 = vunpack.c.l.b16 %v103
  %v706 = vunpack.c.h.b16 %v103
  %v707 = vunpack.c.l.b16 %v104
  %v708 = vunpack.c.h.b16 %v104
  %v709 = vunpack.c.l.b16 %v105
  %v710 = vunpack.c.h.b16 %v105
  %v711 = vunpack.c.l.b16 %v106
  %v712 = vunpack.c.h.b16 %v106
  %v713 = vunpack.c.l.b16 %v107
  %v714 = vunpack.c.h.b16 %v107
  %v715 = vunpack.c.l.b16 %v108
  %v716 = vunpack.c.h.b16 %v108
  %v717 = vunpack.c.l.b16 %v109
  %v718 = vunpack.c.h.b16 %v109
  %v719 = vunpack.c.l.b16 %v110
  %v720 = vunpack.c.h.b16 %v110
  %v721 = vunpack.c.l.b16 %v111
  %v722 = vunpack.c.h.b16 %v111
  %v723 = vunpack.c.l.b16 %v112
  %v724 = vunpack.c.h.b16 %v112
  %v725 = vunpack.c.l.b16 %v113
  %v726 = vunpack.c.h.b16 %v113
  %v727 = vunpack.c.l.b16 %v114
  %v728 = vunpack.c.h.b16 %v114
  %v729 = vunpack.c.l.b16 %v115
  %v730 = vunpack.c.h.b16 %v115
  %v731 = vunpack.c.l.b16 %v116
  %v732 = vunpack.c.h.b16 %v116
  %v733 = vunpack.c.l.b16 %v117
  %v734 = vunpack.c.h.b16 %v117
  %v735 = vunpack.c.l.b16 %v118
  %v736 = vunpack.c.h.b16 %v118
  %v737 = vunpack.c.l.b16 %v119
  %v738 = vunpack.c.h.b16 %v119
  %v739 = vunpack.c.l.b16 %v120
  %v740 = vunpack.c.h.b16 %v120
  %v741 = vunpack.c.l.b16 %v121
  %v742 = vunpack.c.h.b16 %v121
  %v743 = vunpack.c.l.b16 %v122
  %v744 = vunpack.c.h.b16 %v122
  %v745 = vunpack.c.l.b16 %v123
  %v746 = vunpack.c.h.b16 %v123
  %v747 = vunpack.c.l.b16 %v124
  %v748 = vunpack.c.h.b16 %v124
  %v749 = vunpack.c.l.b16 %v125
  %v750 = vunpack.c.h.b16 %v125
  %v751 = vunpack.c.l.b16 %v126
  %v752 = vunpack.c.h.b16 %v126
  %v753 = vunpack.c.l.b16 %v127
  %v754 = vunpack.c.h.b16 %v127
  %v755 = vunpack.c.l.b16 %v128
  %v756 = vunpack.c.h.b16 %v128
  %v757 = vunpack.c.l.b16 %v129
  %v758 = vunpack.c.h.b16 %v129
  %v759 = vunpack.c.l.b16 %v130
  %v760 = vunpack.c.h.b16 %v130
  %v761 = vunpack.c.l.b16 %v131
  %v762 = vunpack.c.h.b16 %v131
  %v763 = vunpack.c.l.b16 %v132
  %v764 = vunpack.c.h.b16 %v132
  %v765 = vunpack.c.l.b16 %v133
  %v766 = vunpack.c.h.b16 %v133
  %v767 = vunpack.c.l.b16 %v134
  %v768 = vunpack.c.h.b16 %v134
  %v769 = vunpack.c.l.b16 %v135
  %v770 = vunpack.c.h.b16 %v135
  %v771 = vunpack.c.l.b16 %v136
  %v772 = vunpack.c.h.b16 %v136
  %v773 = vunpack.c.l.b16 %v137
  %v774 = vunpack.c.h.b16 %v137
  %v775 = vunpack.c.l.b16 %v138
  %v776 = vunpack.c.h.b16 %v138
  %v777 = vunpack.c.l.b16 %v139
  %v778 = vunpack.c.h.b16 %v139
  %v779 = vunpack.c.l.b16 %v140
  %v780 = vunpack.c.h.b16 %v140
  %v781 = vunpack.c.l.b16 %v141
  %v782 = vunpack.c.h.b16 %v141
  %v783 = vunpack.c.l.b16 %v142
  %v784 = vunpack.c.h.b16 %v142
  %v785 = vunpack.c.l.b16 %v143
  %v786 = vunpack.c.h.b16 %v143
  %v787 = vunpack.c.l.b16 %v144
  %v788 = vunpack.c.h.b16 %v144
  %v789 = vpack.c.b16 %v549, %v533
  %v790 = vpack.c.b16 %v550, %v534
  %v791 = vpack.c.b16 %v551, %v535
  %v792 = vpack.c.b16 %v552, %v536
  %v793 = vpack.c.b16 %v553, %v537
  %v794 = vpack.c.b16 %v554, %v538
  %v795 = vpack.c.b16 %v555, %v539
  %v796 = vpack.c.b16 %v556, %v540
  %v797 = vpack.c.b16 %v557, %v541
  %v798 = vpack.c.b16 %v558, %v542
  %v799 = vpack.c.b16 %v559, %v543
  %v800 = vpack.c.b16 %v560, %v544
  %v801 = vpack.c.b16 %v561, %v545
  %v802 = vpack.c.b16 %v562, %v546
  %v803 = vpack.c.b16 %v563, %v547
  %v804 = vpack.c.b16 %v564, %v548
  %v805 = vpack.c.b16 %v581, %v565
  %v806 = vpack.c.b16 %v582, %v566
  %v807 = vpack.c.b16 %v583, %v567
  %v808 = vpack.c.b16 %v584, %v568
  %v809 = vpack.c.b16 %v585, %v569
  %v810 = vpack.c.b16 %v586, %v570
  %v811 = vpack.c.b16 %v587, %v571
  %v812 = vpack.c.b16 %v588, %v572
  %v813 = vpack.c.b16 %v589, %v573
  %v814 = vpack.c.b16 %v590, %v574
  %v815 = vpack.c.b16 %v591, %v575
  %v816 = vpack.c.b16 %v592, %v576
  %v817 = vpack.c.b16 %v593, %v577
  %v818 = vpack.c.b16 %v594, %v578
  %v819 = vpack.c.b16 %v595, %v579
  %v820 = vpack.c.b16 %v596, %v580
  %v821 = vpack.c.b16 %v613, %v597
  %v822 = vpack.c.b16 %v614, %v598
  %v823 = vpack.c.b16 %v615, %v599
  %v824 = vpack.c.b16 %v616, %v600
  %v825 = vpack.c.b16 %v617, %v601
  %v826 = vpack.c.b16 %v618, %v602
  %v827 = vpack.c.b16 %v619, %v603
  %v828 = vpack.c.b16 %v620, %v604
  %v829 = vpack.c.b16 %v621, %v605
  %v830 = vpack.c.b16 %v622, %v606
  %v831 = vpack.c.b16 %v623, %v607
  %v832 = vpack.c.b16 %v624, %v608
  %v833 = vpack.c.b16 %v625, %v609
  %v834 = vpack.c.b16 %v626, %v610
  %v835 = vpack.c.b16 %v627, %v611
  %v836 = vpack.c.b16 %v628, %v612
  %v837 = vpack.c.b16 %v645, %v629
  %v838 = vpack.c.b16 %v646, %v630
  %v839 = vpack.c.b16 %v647, %v631
  %v840 = vpack.c.b16 %v648, %v632
  %v841 = vpack.c.b16 %v649, %v633
  %v842 = vpack.c.b16 %v650, %v634
  %v843 = vpack.c.b16 %v651, %v635
  %v844 = vpack.c.b16 %v652, %v636
  %v845 = vpack.c.b16 %v653, %v637
  %v846 = vpack.c.b16 %v654, %v638
  %v847 = vpack.c.b16 %v655, %v639
  %v848 = vpack.c.b16 %v656, %v640
  %v849 = vpack.c.b16 %v657, %v641
  %v850 = vpack.c.b16 %v658, %v642
  %v851 = vpack.c.b16 %v659, %v643
  %v852 = vpack.c.b16 %v660, %v644
  %v853 = vpack.c.b16 %v677, %v661
  %v854 = vpack.c.b16 %v678, %v662
  %v855 = vpack.c.b16 %v679, %v663
  %v856 = vpack.c.b16 %v680, %v664
  %v857 = vpack.c.b16 %v681, %v665
  %v858 = vpack.c.b16 %v682, %v666
  %v859 = vpack.c.b16 %v683, %v667
  %v860 = vpack.c.b16 %v684, %v668
  %v861 = vpack.c.b16 %v685, %v669
  %v862 = vpack.c.b16 %v686, %v670
  %v863 = vpack.c.b16 %v687, %v671
  %v864 = vpack.c.b16 %v688, %v672
  %v865 = vpack.c.b16 %v689, %v673
  %v866 = vpack.c.b16 %v690, %v674
  %v867 = vpack.c.b16 %v691, %v675
  %v868 = vpack.c.b16 %v692, %v676
  %v869 = vpack.c.b16 %v709, %v693
  %v870 = vpack.c.b16 %v710, %v694
  %v871 = vpack.c.b16 %v711, %v695
  %v872 = vpack.c.b16 %v712, %v696
  %v873 = vpack.c.b16 %v713, %v697
  %v874 = vpack.c.b16 %v714, %v698
  %v875 = vpack.c.b16 %v715, %v699
  %v876 = vpack.c.b16 %v716, %v700
  %v877 = vpack.c.b16 %v717, %v701
  %v878 = vpack.c.b16 %v718, %v702
  %v879 = vpack.c.b16 %v719, %v703
  %v880 = vpack.c.b16 %v720, %v704
  %v881 = vpack.c.b16 %v721, %v705
  %v882 = vpack.c.b16 %v722, %v706
  %v883 = vpack.c.b16 %v723, %v707
  %v884 = vpack.c.b16 %v724, %v708
  %v885 = vpack.c.b16 %v741, %v725
  %v886 = vpack.c.b16 %v742, %v726
  %v887 = vpack.c.b16 %v743, %v727
  %v888 = vpack.c.b16 %v744, %v728
  %v889 = vpack.c.b16 %v745, %v729
  %v890 = vpack.c.b16 %v746, %v730
  %v891 = vpack.c.b16 %v747, %v731
  %v892 = vpack.c.b16 %v748, %v732
  %v893 = vpack.c.b16 %v749, %v733
  %v894 = vpack.c.b16 %v750, %v734
  %v895 = vpack.c.b16 %v751, %v735
  %v896 = vpack.c.b16 %v752, %v736
  %v897 = vpack.c.b16 %v753, %v737
  %v898 = vpack.c.b16 %v754, %v738
  %v899 = vpack.c.b16 %v755, %v739
  %v900 = vpack.c.b16 %v756, %v740
  %v901 = vpack.c.b16 %v773, %v757
  %v902 = vpack.c.b16 %v774, %v758
  %v903 = vpack.c.b16 %v775, %v759
  %v904 = vpack.c.b16 %v776, %v760
  %v905 = vpack.c.b16 %v777, %v761
  %v906 = vpack.c.b16 %v778, %v762
  %v907 = vpack.c.b16 %v779, %v763
  %v908 = vpack.c.b16 %v780, %v764
  %v909 = vpack.c.b16 %v781, %v765
  %v910 = vpack.c.b16 %v782, %v766
  %v911 = vpack.c.b16 %v783, %v767
  %v912 = vpack.c.b16 %v784, %v768
  %v913 = vpack.c.b16 %v785, %v769
  %v914 = vpack.c.b16 %v786, %v770
  %v915 = vpack.c.b16 %v787, %v771
  %v916 = vpack.c.b16 %v788, %v772
  %v1301 = vunpack.c.l.b16 %v145
  %v1302 = vunpack.c.l.b16 %v146
  %v1303 = vunpack.c.l.b16 %v147
  %v1304 = vunpack.c.l.b16 %v148
  %v1305 = vunpack.c.l.b16 %v149
  %v1306 = vunpack.c.l.b16 %v150
  %v1307 = vunpack.c.l.b16 %v151
  %v1308 = vunpack.c.l.b16 %v152
  %v1309 = vunpack.c.l.b16 %v153
  %v1310 = vunpack.c.l.b16 %v154
  %v1311 = vunpack.c.l.b16 %v155
  %v1312 = vunpack.c.l.b16 %v156
  %v1313 = vunpack.c.l.b16 %v157
  %v1314 = vunpack.c.l.b16 %v158
  %v1315 = vunpack.c.l.b16 %v159
  %v1316 = vunpack.c.l.b16 %v160
  %v1317 = vunpack.c.l.b16 %v161
  %v1318 = vunpack.c.l.b16 %v162
  %v1319 = vunpack.c.l.b16 %v163
  %v1320 = vunpack.c.l.b16 %v164
  %v1321 = vunpack.c.l.b16 %v165
  %v1322 = vunpack.c.l.b16 %v166
  %v1323 = vunpack.c.l.b16 %v167
  %v1324 = vunpack.c.l.b16 %v168
  %v1325 = vunpack.c.l.b16 %v169
  %v1326 = vunpack.c.l.b16 %v170
  %v1327 = vunpack.c.l.b16 %v171
  %v1328 = vunpack.c.l.b16 %v172
  %v1329 = vunpack.c.l.b16 %v173
  %v1330 = vunpack.c.l.b16 %v174
  %v1331 = vunpack.c.l.b16 %v175
  %v1332 = vunpack.c.l.b16 %v176
  %v1333 = vunpack.c.l.b16 %v177
  %v1334 = vunpack.c.l.b16 %v178
  %v1335 = vunpack.c.l.b16 %v179
  %v1336 = vunpack.c.l.b16 %v180
  %v1337 = vunpack.c.l.b16 %v181
  %v1338 = vunpack.c.l.b16 %v182
  %v1339 = vunpack.c.l.b16 %v183
  %v1340 = vunpack.c.l.b16 %v184
  %v1341 = vunpack.c.l.b16 %v185
  %v1342 = vunpack.c.l.b16 %v186
  %v1343 = vunpack.c.l.b16 %v187
  %v1344 = vunpack.c.l.b16 %v188
  %v1345 = vunpack.c.l.b16 %v189
  %v1346 = vunpack.c.l.b16 %v190
  %v1347 = vunpack.c.l.b16 %v191
  %v1348 = vunpack.c.l.b16 %v192
  %v1349 = vunpack.c.l.b16 %v193
  %v1350 = vunpack.c.l.b16 %v194
  %v1351 = vunpack.c.l.b16 %v195
  %v1352 = vunpack.c.l.b16 %v196
  %v1353 = vunpack.c.l.b16 %v197
  %v1354 = vunpack.c.l.b16 %v198
  %v1355 = vunpack.c.l.b16 %v199
  %v1356 = vunpack.c.l.b16 %v200
  %v1357 = vunpack.c.l.b16 %v201
  %v1358 = vunpack.c.l.b16 %v202
  %v1359 = vunpack.c.l.b16 %v203
  %v1360 = vunpack.c.l.b16 %v204
  %v1361 = vunpack.c.l.b16 %v205
  %v1362 = vunpack.c.l.b16 %v206
  %v1363 = vunpack.c.l.b16 %v207
  %v1364 = vunpack.c.l.b16 %v208
  %v1365 = vunpack.c.l.b16 %v209
  %v1366 = vunpack.c.l.b16 %v210
  %v1367 = vunpack.c.l.b16 %v211
  %v1368 = vunpack.c.l.b16 %v212
  %v1369 = vunpack.c.l.b16 %v213
  %v1370 = vunpack.c.l.b16 %v214
  %v1371 = vunpack.c.l.b16 %v215
  %v1372 = vunpack.c.l.b16 %v216
  %v1373 = vunpack.c.l.b16 %v217
  %v1374 = vunpack.c.l.b16 %v218
  %v1375 = vunpack.c.l.b16 %v219
  %v1376 = vunpack.c.l.b16 %v220
  %v1377 = vunpack.c.l.b16 %v221
  %v1378 = vunpack.c.l.b16 %v222
  %v1379 = vunpack.c.l.b16 %v223
  %v1380 = vunpack.c.l.b16 %v224
  %v1381 = vunpack.c.l.b16 %v225
  %v1382 = vunpack.c.l.b16 %v226
  %v1383 = vunpack.c.l.b16 %v227
  %v1384 = vunpack.c.l.b16 %v228
  %v1385 = vunpack.c.l.b16 %v229
  %v1386 = vunpack.c.l.b16 %v230
  %v1387 = vunpack.c.l.b16 %v231
  %v1388 = vunpack.c.l.b16 %v232
  %v1389 = vunpack.c.l.b16 %v233
  %v1390 = vunpack.c.l.b16 %v234
  %v1391 = vunpack.c.l.b16 %v235
  %v1392 = vunpack.c.l.b16 %v236
  %v1393 = vunpack.c.l.b16 %v237
  %v1394 = vunpack.c.l.b16 %v238
  %v1395 = vunpack.c.l.b16 %v239
  %v1396 = vunpack.c.l.b16 %v240
  %v1397 = vunpack.c.l.b16 %v241
  %v1398 = vunpack.c.l.b16 %v242
  %v1399 = vunpack.c.l.b16 %v243
  %v1400 = vunpack.c.l.b16 %v244
  %v1401 = vunpack.c.l.b16 %v245
  %v1402 = vunpack.c.l.b16 %v246
  %v1403 = vunpack.c.l.b16 %v247
  %v1404 = vunpack.c.l.b16 %v248
  %v1405 = vunpack.c.l.b16 %v249
  %v1406 = vunpack.c.l.b16 %v250
  %v1407 = vunpack.c.l.b16 %v251
  %v1408 = vunpack.c.l.b16 %v252
  %v1409 = vunpack.c.l.b16 %v253
  %v1410 = vunpack.c.l.b16 %v254
  %v1411 = vunpack.c.l.b16 %v255
  %v1412 = vunpack.c.l.b16 %v256
  %v1413 = vunpack.c.l.b16 %v257
  %v1414 = vunpack.c.l.b16 %v258
  %v1415 = vunpack.c.l.b16 %v259
  %v1416 = vunpack.c.l.b16 %v260
  %v1417 = vunpack.c.l.b16 %v261
  %v1418 = vunpack.c.l.b16 %v262
  %v1419 = vunpack.c.l.b16 %v263
  %v1420 = vunpack.c.l.b16 %v264
  %v1421 = vunpack.c.l.b16 %v265
  %v1422 = vunpack.c.l.b16 %v266
  %v1423 = vunpack.c.l.b16 %v267
  %v1424 = vunpack.c.l.b16 %v268
  %v1425 = vunpack.c.l.b16 %v269
  %v1426 = vunpack.c.l.b16 %v270
  %v1427 = vunpack.c.l.b16 %v271
  %v1428 = vunpack.c.l.b16 %v272
  %v1429 = vunpack.c.l.b16 %v273
  %v1430 = vunpack.c.l.b16 %v274
  %v1431 = vunpack.c.l.b16 %v275
  %v1432 = vunpack.c.l.b16 %v276
  %v1433 = vunpack.c.l.b16 %v277
  %v1434 = vunpack.c.l.b16 %v278
  %v1435 = vunpack.c.l.b16 %v279
  %v1436 = vunpack.c.l.b16 %v280
  %v1437 = vunpack.c.l.b16 %v281
  %v1438 = vunpack.c.l.b16 %v282
  %v1439 = vunpack.c.l.b16 %v283
  %v1440 = vunpack.c.l.b16 %v284
  %v1441 = vunpack.c.l.b16 %v285
  %v1442 = vunpack.c.l.b16 %v286
  %v1443 = vunpack.c.l.b16 %v287
  %v1444 = vunpack.c.l.b16 %v288
  %v1445 = vunpack.c.l.b16 %v289
  %v1446 = vunpack.c.l.b16 %v290
  %v1447 = vunpack.c.l.b16 %v291
  %v1448 = vunpack.c.l.b16 %v292
  %v1449 = vunpack.c.l.b16 %v293
  %v1450 = vunpack.c.l.b16 %v294
  %v1451 = vunpack.c.l.b16 %v295
  %v1452 = vunpack.c.l.b16 %v296
  %v1453 = vunpack.c.l.b16 %v297
  %v1454 = vunpack.c.l.b16 %v298
  %v1455 = vunpack.c.l.b16 %v299
  %v1456 = vunpack.c.l.b16 %v300
  %v1457 = vunpack.c.l.b16 %v301
  %v1458 = vunpack.c.l.b16 %v302
  %v1459 = vunpack.c.l.b16 %v303
  %v1460 = vunpack.c.l.b16 %v304
  %v1461 = vunpack.c.l.b16 %v305
  %v1462 = vunpack.c.l.b16 %v306
  %v1463 = vunpack.c.l.b16 %v307
  %v1464 = vunpack.c.l.b16 %v308
  %v1465 = vunpack.c.l.b16 %v309
  %v1466 = vunpack.c.l.b16 %v310
  %v1467 = vunpack.c.l.b16 %v311
  %v1468 = vunpack.c.l.b16 %v312
  %v1469 = vunpack.c.l.b16 %v313
  %v1470 = vunpack.c.l.b16 %v314
  %v1471 = vunpack.c.l.b16 %v315
  %v1472 = vunpack.c.l.b16 %v316
  %v1473 = vunpack.c.l.b16 %v317
  %v1474 = vunpack.c.l.b16 %v318
  %v1475 = vunpack.c.l.b16 %v319
  %v1476 = vunpack.c.l.b16 %v320
  %v1477 = vunpack.c.l.b16 %v321
  %v1478 = vunpack.c.l.b16 %v322
  %v1479 = vunpack.c.l.b16 %v323
  %v1480 = vunpack.c.l.b16 %v324
  %v1481 = vunpack.c.l.b16 %v325
  %v1482 = vunpack.c.l.b16 %v326
  %v1483 = vunpack.c.l.b16 %v327
  %v1484 = vunpack.c.l.b16 %v328
  %v1485 = vunpack.c.l.b16 %v329
  %v1486 = vunpack.c.l.b16 %v330
  %v1487 = vunpack.c.l.b16 %v331
  %v1488 = vunpack.c.l.b16 %v332
  %v1489 = vunpack.c.l.b16 %v333
  %v1490 = vunpack.c.l.b16 %v334
  %v1491 = vunpack.c.l.b16 %v335
  %v1492 = vunpack.c.l.b16 %v336
  %v1493 = vunpack.c.l.b16 %v337
  %v1494 = vunpack.c.l.b16 %v338
  %v1495 = vunpack.c.l.b16 %v339
  %v1496 = vunpack.c.l.b16 %v340
  %v1497 = vunpack.c.l.b16 %v341
  %v1498 = vunpack.c.l.b16 %v342
  %v1499 = vunpack.c.l.b16 %v343
  %v1500 = vunpack.c.l.b16 %v344
  %v1501 = vunpack.c.l.b16 %v345
  %v1502 = vunpack.c.l.b16 %v346
  %v1503 = vunpack.c.l.b16 %v347
  %v1504 = vunpack.c.l.b16 %v348
  %v1505 = vunpack.c.l.b16 %v349
  %v1506 = vunpack.c.l.b16 %v350
  %v1507 = vunpack.c.l.b16 %v351
  %v1508 = vunpack.c.l.b16 %v352
  %v1509 = vunpack.c.l.b16 %v353
  %v1510 = vunpack.c.l.b16 %v354
  %v1511 = vunpack.c.l.b16 %v355
  %v1512 = vunpack.c.l.b16 %v356
  %v1513 = vunpack.c.l.b16 %v357
  %v1514 = vunpack.c.l.b16 %v358
  %v1515 = vunpack.c.l.b16 %v359
  %v1516 = vunpack.c.l.b16 %v360
  %v1517 = vunpack.c.l.b16 %v361
  %v1518 = vunpack.c.l.b16 %v362
  %v1519 = vunpack.c.l.b16 %v363
  %v1520 = vunpack.c.l.b16 %v364
  %v1521 = vunpack.c.l.b16 %v365
  %v1522 = vunpack.c.l.b16 %v366
  %v1523 = vunpack.c.l.b16 %v367
  %v1524 = vunpack.c.l.b16 %v368
  %v1525 = vunpack.c.l.b16 %v369
  %v1526 = vunpack.c.l.b16 %v370
  %v1527 = vunpack.c.l.b16 %v371
  %v1528 = vunpack.c.l.b16 %v372
  %v1529 = vunpack.c.l.b16 %v373
  %v1530 = vunpack.c.l.b16 %v374
  %v1531 = vunpack.c.l.b16 %v375
  %v1532 = vunpack.c.l.b16 %v376
  %v1533 = vunpack.c.l.b16 %v377
  %v1534 = vunpack.c.l.b16 %v378
  %v1535 = vunpack.c.l.b16 %v379
  %v1536 = vunpack.c.l.b16 %v380
  %v1537 = vunpack.c.l.b16 %v381
  %v1538 = vunpack.c.l.b16 %v382
  %v1539 = vunpack.c.l.b16 %v383
  %v1540 = vunpack.c.l.b16 %v384
  %v1541 = vunpack.c.l.b16 %v385
  %v1542 = vunpack.c.l.b16 %v386
  %v1543 = vunpack.c.l.b16 %v387
  %v1544 = vunpack.c.l.b16 %v388
  %v1545 = vunpack.c.l.b16 %v389
  %v1546 = vunpack.c.l.b16 %v390
  %v1547 = vunpack.c.l.b16 %v391
  %v1548 = vunpack.c.l.b16 %v392
  %v1549 = vunpack.c.l.b16 %v393
  %v1550 = vunpack.c.l.b16 %v394
  %v1551 = vunpack.c.l.b16 %v395
  %v1552 = vunpack.c.l.b16 %v396
  %v1553 = vunpack.c.l.b16 %v397
  %v1554 = vunpack.c.l.b16 %v398
  %v1555 = vunpack.c.l.b16 %v399
  %v1556 = vunpack.c.l.b16 %v400
  %v1557 = vpack.c.b16 %v1302, %v1301
  %v1558 = vpack.c.b16 %v1304, %v1303
  %v1559 = vpack.c.b16 %v1306, %v1305
  %v1560 = vpack.c.b16 %v1308, %v1307
  %v1561 = vpack.c.b16 %v1310, %v1309
  %v1562 = vpack.c.b16 %v1312, %v1311
  %v1563 = vpack.c.b16 %v1314, %v1313
  %v1564 = vpack.c.b16 %v1316, %v1315
  %v1565 = vpack.c.b16 %v1318, %v1317
  %v1566 = vpack.c.b16 %v1320, %v1319
  %v1567 = vpack.c.b16 %v1322, %v1321
  %v1568 = vpack.c.b16 %v1324, %v1323
  %v1569 = vpack.c.b16 %v1326, %v1325
  %v1570 = vpack.c.b16 %v1328, %v1327
  %v1571 = vpack.c.b16 %v1330, %v1329
  %v1572 = vpack.c.b16 %v1332, %v1331
  %v1573 = vpack.c.b16 %v1334, %v1333
  %v1574 = vpack.c.b16 %v1336, %v1335
  %v1575 = vpack.c.b16 %v1338, %v1337
  %v1576 = vpack.c.b16 %v1340, %v1339
  %v1577 = vpack.c.b16 %v1342, %v1341
  %v1578 = vpack.c.b16 %v1344, %v1343
  %v1579 = vpack.c.b16 %v1346, %v1345
  %v1580 = vpack.c.b16 %v1348, %v1347
  %v1581 = vpack.c.b16 %v1350, %v1349
  %v1582 = vpack.c.b16 %v1352, %v1351
  %v1583 = vpack.c.b16 %v1354, %v1353
  %v1584 = vpack.c.b16 %v1356, %v1355
  %v1585 = vpack.c.b16 %v1358, %v1357
  %v1586 = vpack.c.b16 %v1360, %v1359
  %v1587 = vpack.c.b16 %v1362, %v1361
  %v1588 = vpack.c.b16 %v1364, %v1363
  %v1589 = vpack.c.b16 %v1366, %v1365
  %v1590 = vpack.c.b16 %v1368, %v1367
  %v1591 = vpack.c.b16 %v1370, %v1369
  %v1592 = vpack.c.b16 %v1372, %v1371
  %v1593 = vpack.c.b16 %v1374, %v1373
  %v1594 = vpack.c.b16 %v1376, %v1375
  %v1595 = vpack.c.b16 %v1378, %v1377
  %v1596 = vpack.c.b16 %v1380, %v1379
  %v1597 = vpack.c.b16 %v1382, %v1381
  %v1598 = vpack.c.b16 %v1384, %v1383
  %v1599 = vpack.c.b16 %v1386, %v1385
  %v1600 = vpack.c.b16 %v1388, %v1387
  %v1601 = vpack.c.b16 %v1390, %v1389
  %v1602 = vpack.c.b16 %v1392, %v1391
  %v1603 = vpack.c.b16 %v1394, %v1393
  %v1604 = vpack.c.b16 %v1396, %v1395
  %v1605 = vpack.c.b16 %v1398, %v1397
  %v1606 = vpack.c.b16 %v1400, %v1399
  %v1607 = vpack.c.b16 %v1402, %v1401
  %v1608 = vpack.c.b16 %v1404, %v1403
  %v1609 = vpack.c.b16 %v1406, %v1405
  %v1610 = vpack.c.b16 %v1408, %v1407
  %v1611 = vpack.c.b16 %v1410, %v1409
  %v1612 = vpack.c.b16 %v1412, %v1411
  %v1613 = vpack.c.b16 %v1414, %v1413
  %v1614 = vpack.c.b16 %v1416, %v1415
  %v1615 = vpack.c.b16 %v1418, %v1417
  %v1616 = vpack.c.b16 %v1420, %v1419
  %v1617 = vpack.c.b16 %v1422, %v1421
  %v1618 = vpack.c.b16 %v1424, %v1423
  %v1619 = vpack.c.b16 %v1426, %v1425
  %v1620 = vpack.c.b16 %v1428, %v1427
  %v1621 = vpack.c.b16 %v1430, %v1429
  %v1622 = vpack.c.b16 %v1432, %v1431
  %v1623 = vpack.c.b16 %v1434, %v1433
  %v1624 = vpack.c.b16 %v1436, %v1435
  %v1625 = vpack.c.b16 %v1438, %v1437
  %v1626 = vpack.c.b16 %v1440, %v1439
  %v1627 = vpack.c.b16 %v1442, %v1441
  %v1628 = vpack.c.b16 %v1444, %v1443
  %v1629 = vpack.c.b16 %v1446, %v1445
  %v1630 = vpack.c.b16 %v1448, %v1447
  %v1631 = vpack.c.b16 %v1450, %v1449
  %v1632 = vpack.c.b16 %v1452, %v1451
  %v1633 = vpack.c.b16 %v1454, %v1453
  %v1634 = vpack.c.b16 %v1456, %v1455
  %v1635 = vpack.c.b16 %v1458, %v1457
  %v1636 = vpack.c.b16 %v1460, %v1459
  %v1637 = vpack.c.b16 %v1462, %v1461
  %v1638 = vpack.c.b16 %v1464, %v1463
  %v1639 = vpack.c.b16 %v1466, %v1465
  %v1640 = vpack.c.b16 %v1468, %v1467
  %v1641 = vpack.c.b16 %v1470, %v1469
  %v1642 = vpack.c.b16 %v1472, %v1471
  %v1643 = vpack.c.b16 %v1474, %v1473
  %v1644 = vpack.c.b16 %v1476, %v1475
  %v1645 = vpack.c.b16 %v1478, %v1477
  %v1646 = vpack.c.b16 %v1480, %v1479
  %v1647 = vpack.c.b16 %v1482, %v1481
  %v1648 = vpack.c.b16 %v1484, %v1483
  %v1649 = vpack.c.b16 %v1486, %v1485
  %v1650 = vpack.c.b16 %v1488, %v1487
  %v1651 = vpack.c.b16 %v1490, %v1489
  %v1652 = vpack.c.b16 %v1492, %v1491
  %v1653 = vpack.c.b16 %v1494, %v1493
  %v1654 = vpack.c.b16 %v1496, %v1495
  %v1655 = vpack.c.b16 %v1498, %v1497
  %v1656 = vpack.c.b16 %v1500, %v1499
  %v1657 = vpack.c.b16 %v1502, %v1501
  %v1658 = vpack.c.b16 %v1504, %v1503
  %v1659 = vpack.c.b16 %v1506, %v1505
  %v1660 = vpack.c.b16 %v1508, %v1507
  %v1661 = vpack.c.b16 %v1510, %v1509
  %v1662 = vpack.c.b16 %v1512, %v1511
  %v1663 = vpack.c.b16 %v1514, %v1513
  %v1664 = vpack.c.b16 %v1516, %v1515
  %v1665 = vpack.c.b16 %v1518, %v1517
  %v1666 = vpack.c.b16 %v1520, %v1519
  %v1667 = vpack.c.b16 %v1522, %v1521
  %v1668 = vpack.c.b16 %v1524, %v1523
  %v1669 = vpack.c.b16 %v1526, %v1525
  %v1670 = vpack.c.b16 %v1528, %v1527
  %v1671 = vpack.c.b16 %v1530, %v1529
  %v1672 = vpack.c.b16 %v1532, %v1531
  %v1673 = vpack.c.b16 %v1534, %v1533
  %v1674 = vpack.c.b16 %v1536, %v1535
  %v1675 = vpack.c.b16 %v1538, %v1537
  %v1676 = vpack.c.b16 %v1540, %v1539
  %v1677 = vpack.c.b16 %v1542, %v1541
  %v1678 = vpack.c.b16 %v1544, %v1543
  %v1679 = vpack.c.b16 %v1546, %v1545
  %v1680 = vpack.c.b16 %v1548, %v1547
  %v1681 = vpack.c.b16 %v1550, %v1549
  %v1682 = vpack.c.b16 %v1552, %v1551
  %v1683 = vpack.c.b16 %v1554, %v1553
  %v1684 = vpack.c.b16 %v1556, %v1555
  %1813 = vmatpush.bf16.msra.mxu0 %v1564
  %1814 = vmatpush.bf16.msra.mxu0 %v1563
  %1815 = vmatpush.bf16.msra.mxu0 %v1562
  %1816 = vmatpush.bf16.msra.mxu0 %v1561
  %1817 = vmatpush.bf16.msra.mxu0 %v1560
  %1818 = vmatpush.bf16.msra.mxu0 %v1559
  %1819 = vmatpush.bf16.msra.mxu0 %v1558
  %1820 = vmatpush.bf16.msra.mxu0 %v1557
  %1821 = vmatmul.bf16.gmra.mxu0 %v789
  %v1822 = vpop.f32.mrf.mxu0
  %v1823 = vadd.f32 %v403, %v1822
  %v1824 = vpop.f32.mrf.mxu0
  %v1825 = vadd.f32 %v403, %v1824
  %1826 = vmatmul.bf16.gmra.mxu0 %v805
  %v1827 = vpop.f32.mrf.mxu0
  %v1828 = vadd.f32 %v403, %v1827
  %v1829 = vpop.f32.mrf.mxu0
  %v1830 = vadd.f32 %v403, %v1829
  %1831 = vmatmul.bf16.gmra.mxu0 %v821
  %v1832 = vpop.f32.mrf.mxu0
  %v1833 = vadd.f32 %v403, %v1832
  %v1834 = vpop.f32.mrf.mxu0
  %v1835 = vadd.f32 %v403, %v1834
  %1836 = vmatmul.bf16.gmra.mxu0 %v837
  %v1837 = vpop.f32.mrf.mxu0
  %v1838 = vadd.f32 %v403, %v1837
  %v1839 = vpop.f32.mrf.mxu0
  %v1840 = vadd.f32 %v403, %v1839
  %1841 = vmatmul.bf16.gmra.mxu0 %v853
  %v1842 = vpop.f32.mrf.mxu0
  %v1843 = vadd.f32 %v403, %v1842
  %v1844 = vpop.f32.mrf.mxu0
  %v1845 = vadd.f32 %v403, %v1844
  %1846 = vmatmul.bf16.gmra.mxu0 %v869
  %v1847 = vpop.f32.mrf.mxu0
  %v1848 = vadd.f32 %v403, %v1847
  %v1849 = vpop.f32.mrf.mxu0
  %v1850 = vadd.f32 %v403, %v1849
  %1851 = vmatmul.bf16.gmra.mxu0 %v885
  %v1852 = vpop.f32.mrf.mxu0
  %v1853 = vadd.f32 %v403, %v1852
  %v1854 = vpop.f32.mrf.mxu0
  %v1855 = vadd.f32 %v403, %v1854
  %1856 = vmatmul.bf16.gmra.mxu0 %v901
  %v1857 = vpop.f32.mrf.mxu0
  %v1858 = vadd.f32 %v403, %v1857
  %v1859 = vpop.f32.mrf.mxu0
  %v1860 = vadd.f32 %v403, %v1859
  %1861 = vdwg.mxu0
  %1862 = vmatpush.bf16.msra.mxu0 %v1572
  %1863 = vmatpush.bf16.msra.mxu0 %v1571
  %1864 = vmatpush.bf16.msra.mxu0 %v1570
  %1865 = vmatpush.bf16.msra.mxu0 %v1569
  %1866 = vmatpush.bf16.msra.mxu0 %v1568
  %1867 = vmatpush.bf16.msra.mxu0 %v1567
  %1868 = vmatpush.bf16.msra.mxu0 %v1566
  %1869 = vmatpush.bf16.msra.mxu0 %v1565
  %1870 = vmatmul.bf16.gmra.mxu0 %v790
  %v1871 = vpop.f32.mrf.mxu0
  %v1872 = vadd.f32 %v1823, %v1871
  %v1873 = vpop.f32.mrf.mxu0
  %v1874 = vadd.f32 %v1825, %v1873
  %1875 = vmatmul.bf16.gmra.mxu0 %v806
  %v1876 = vpop.f32.mrf.mxu0
  %v1877 = vadd.f32 %v1828, %v1876
  %v1878 = vpop.f32.mrf.mxu0
  %v1879 = vadd.f32 %v1830, %v1878
  %1880 = vmatmul.bf16.gmra.mxu0 %v822
  %v1881 = vpop.f32.mrf.mxu0
  %v1882 = vadd.f32 %v1833, %v1881
  %v1883 = vpop.f32.mrf.mxu0
  %v1884 = vadd.f32 %v1835, %v1883
  %1885 = vmatmul.bf16.gmra.mxu0 %v838
  %v1886 = vpop.f32.mrf.mxu0
  %v1887 = vadd.f32 %v1838, %v1886
  %v1888 = vpop.f32.mrf.mxu0
  %v1889 = vadd.f32 %v1840, %v1888
  %1890 = vmatmul.bf16.gmra.mxu0 %v854
  %v1891 = vpop.f32.mrf.mxu0
  %v1892 = vadd.f32 %v1843, %v1891
  %v1893 = vpop.f32.mrf.mxu0
  %v1894 = vadd.f32 %v1845, %v1893
  %1895 = vmatmul.bf16.gmra.mxu0 %v870
  %v1896 = vpop.f32.mrf.mxu0
  %v1897 = vadd.f32 %v1848, %v1896
  %v1898 = vpop.f32.mrf.mxu0
  %v1899 = vadd.f32 %v1850, %v1898
  %1900 = vmatmul.bf16.gmra.mxu0 %v886
  %v1901 = vpop.f32.mrf.mxu0
  %v1902 = vadd.f32 %v1853, %v1901
  %v1903 = vpop.f32.mrf.mxu0
  %v1904 = vadd.f32 %v1855, %v1903
  %1905 = vmatmul.bf16.gmra.mxu0 %v902
  %v1906 = vpop.f32.mrf.mxu0
  %v1907 = vadd.f32 %v1858, %v1906
  %v1908 = vpop.f32.mrf.mxu0
  %v1909 = vadd.f32 %v1860, %v1908
  %1910 = vdwg.mxu0
  %1911 = vmatpush.bf16.msra.mxu0 %v1580
  %1912 = vmatpush.bf16.msra.mxu0 %v1579
  %1913 = vmatpush.bf16.msra.mxu0 %v1578
  %1914 = vmatpush.bf16.msra.mxu0 %v1577
  %1915 = vmatpush.bf16.msra.mxu0 %v1576
  %1916 = vmatpush.bf16.msra.mxu0 %v1575
  %1917 = vmatpush.bf16.msra.mxu0 %v1574
  %1918 = vmatpush.bf16.msra.mxu0 %v1573
  %1919 = vmatmul.bf16.gmra.mxu0 %v791
  %v1920 = vpop.f32.mrf.mxu0
  %v1921 = vadd.f32 %v1872, %v1920
  %v1922 = vpop.f32.mrf.mxu0
  %v1923 = vadd.f32 %v1874, %v1922
  %1924 = vmatmul.bf16.gmra.mxu0 %v807
  %v1925 = vpop.f32.mrf.mxu0
  %v1926 = vadd.f32 %v1877, %v1925
  %v1927 = vpop.f32.mrf.mxu0
  %v1928 = vadd.f32 %v1879, %v1927
  %1929 = vmatmul.bf16.gmra.mxu0 %v823
  %v1930 = vpop.f32.mrf.mxu0
  %v1931 = vadd.f32 %v1882, %v1930
  %v1932 = vpop.f32.mrf.mxu0
  %v1933 = vadd.f32 %v1884, %v1932
  %1934 = vmatmul.bf16.gmra.mxu0 %v839
  %v1935 = vpop.f32.mrf.mxu0
  %v1936 = vadd.f32 %v1887, %v1935
  %v1937 = vpop.f32.mrf.mxu0
  %v1938 = vadd.f32 %v1889, %v1937
  %1939 = vmatmul.bf16.gmra.mxu0 %v855
  %v1940 = vpop.f32.mrf.mxu0
  %v1941 = vadd.f32 %v1892, %v1940
  %v1942 = vpop.f32.mrf.mxu0
  %v1943 = vadd.f32 %v1894, %v1942
  %1944 = vmatmul.bf16.gmra.mxu0 %v871
  %v1945 = vpop.f32.mrf.mxu0
  %v1946 = vadd.f32 %v1897, %v1945
  %v1947 = vpop.f32.mrf.mxu0
  %v1948 = vadd.f32 %v1899, %v1947
  %1949 = vmatmul.bf16.gmra.mxu0 %v887
  %v1950 = vpop.f32.mrf.mxu0
  %v1951 = vadd.f32 %v1902, %v1950
  %v1952 = vpop.f32.mrf.mxu0
  %v1953 = vadd.f32 %v1904, %v1952
  %1954 = vmatmul.bf16.gmra.mxu0 %v903
  %v1955 = vpop.f32.mrf.mxu0
  %v1956 = vadd.f32 %v1907, %v1955
  %v1957 = vpop.f32.mrf.mxu0
  %v1958 = vadd.f32 %v1909, %v1957
  %1959 = vdwg.mxu0
  %1960 = vmatpush.bf16.msra.mxu0 %v1588
  %1961 = vmatpush.bf16.msra.mxu0 %v1587
  %1962 = vmatpush.bf16.msra.mxu0 %v1586
  %1963 = vmatpush.bf16.msra.mxu0 %v1585
  %1964 = vmatpush.bf16.msra.mxu0 %v1584
  %1965 = vmatpush.bf16.msra.mxu0 %v1583
  %1966 = vmatpush.bf16.msra.mxu0 %v1582
  %1967 = vmatpush.bf16.msra.mxu0 %v1581
  %1968 = vmatmul.bf16.gmra.mxu0 %v792
  %v1969 = vpop.f32.mrf.mxu0
  %v1970 = vadd.f32 %v1921, %v1969
  %v1971 = vpop.f32.mrf.mxu0
  %v1972 = vadd.f32 %v1923, %v1971
  %1973 = vmatmul.bf16.gmra.mxu0 %v808
  %v1974 = vpop.f32.mrf.mxu0
  %v1975 = vadd.f32 %v1926, %v1974
  %v1976 = vpop.f32.mrf.mxu0
  %v1977 = vadd.f32 %v1928, %v1976
  %1978 = vmatmul.bf16.gmra.mxu0 %v824
  %v1979 = vpop.f32.mrf.mxu0
  %v1980 = vadd.f32 %v1931, %v1979
  %v1981 = vpop.f32.mrf.mxu0
  %v1982 = vadd.f32 %v1933, %v1981
  %1983 = vmatmul.bf16.gmra.mxu0 %v840
  %v1984 = vpop.f32.mrf.mxu0
  %v1985 = vadd.f32 %v1936, %v1984
  %v1986 = vpop.f32.mrf.mxu0
  %v1987 = vadd.f32 %v1938, %v1986
  %1988 = vmatmul.bf16.gmra.mxu0 %v856
  %v1989 = vpop.f32.mrf.mxu0
  %v1990 = vadd.f32 %v1941, %v1989
  %v1991 = vpop.f32.mrf.mxu0
  %v1992 = vadd.f32 %v1943, %v1991
  %1993 = vmatmul.bf16.gmra.mxu0 %v872
  %v1994 = vpop.f32.mrf.mxu0
  %v1995 = vadd.f32 %v1946, %v1994
  %v1996 = vpop.f32.mrf.mxu0
  %v1997 = vadd.f32 %v1948, %v1996
  %1998 = vmatmul.bf16.gmra.mxu0 %v888
  %v1999 = vpop.f32.mrf.mxu0
  %v2000 = vadd.f32 %v1951, %v1999
  %v2001 = vpop.f32.mrf.mxu0
  %v2002 = vadd.f32 %v1953, %v2001
  %2003 = vmatmul.bf16.gmra.mxu0 %v904
  %v2004 = vpop.f32.mrf.mxu0
  %v2005 = vadd.f32 %v1956, %v2004
  %v2006 = vpop.f32.mrf.mxu0
  %v2007 = vadd.f32 %v1958, %v2006
  %2008 = vdwg.mxu0
  %2009 = vmatpush.bf16.msra.mxu0 %v1596
  %2010 = vmatpush.bf16.msra.mxu0 %v1595
  %2011 = vmatpush.bf16.msra.mxu0 %v1594
  %2012 = vmatpush.bf16.msra.mxu0 %v1593
  %2013 = vmatpush.bf16.msra.mxu0 %v1592
  %2014 = vmatpush.bf16.msra.mxu0 %v1591
  %2015 = vmatpush.bf16.msra.mxu0 %v1590
  %2016 = vmatpush.bf16.msra.mxu0 %v1589
  %2017 = vmatmul.bf16.gmra.mxu0 %v793
  %v2018 = vpop.f32.mrf.mxu0
  %v2019 = vadd.f32 %v1970, %v2018
  %v2020 = vpop.f32.mrf.mxu0
  %v2021 = vadd.f32 %v1972, %v2020
  %2022 = vmatmul.bf16.gmra.mxu0 %v809
  %v2023 = vpop.f32.mrf.mxu0
  %v2024 = vadd.f32 %v1975, %v2023
  %v2025 = vpop.f32.mrf.mxu0
  %v2026 = vadd.f32 %v1977, %v2025
  %2027 = vmatmul.bf16.gmra.mxu0 %v825
  %v2028 = vpop.f32.mrf.mxu0
  %v2029 = vadd.f32 %v1980, %v2028
  %v2030 = vpop.f32.mrf.mxu0
  %v2031 = vadd.f32 %v1982, %v2030
  %2032 = vmatmul.bf16.gmra.mxu0 %v841
  %v2033 = vpop.f32.mrf.mxu0
  %v2034 = vadd.f32 %v1985, %v2033
  %v2035 = vpop.f32.mrf.mxu0
  %v2036 = vadd.f32 %v1987, %v2035
  %2037 = vmatmul.bf16.gmra.mxu0 %v857
  %v2038 = vpop.f32.mrf.mxu0
  %v2039 = vadd.f32 %v1990, %v2038
  %v2040 = vpop.f32.mrf.mxu0
  %v2041 = vadd.f32 %v1992, %v2040
  %2042 = vmatmul.bf16.gmra.mxu0 %v873
  %v2043 = vpop.f32.mrf.mxu0
  %v2044 = vadd.f32 %v1995, %v2043
  %v2045 = vpop.f32.mrf.mxu0
  %v2046 = vadd.f32 %v1997, %v2045
  %2047 = vmatmul.bf16.gmra.mxu0 %v889
  %v2048 = vpop.f32.mrf.mxu0
  %v2049 = vadd.f32 %v2000, %v2048
  %v2050 = vpop.f32.mrf.mxu0
  %v2051 = vadd.f32 %v2002, %v2050
  %2052 = vmatmul.bf16.gmra.mxu0 %v905
  %v2053 = vpop.f32.mrf.mxu0
  %v2054 = vadd.f32 %v2005, %v2053
  %v2055 = vpop.f32.mrf.mxu0
  %v2056 = vadd.f32 %v2007, %v2055
  %2057 = vdwg.mxu0
  %2058 = vmatpush.bf16.msra.mxu0 %v1604
  %2059 = vmatpush.bf16.msra.mxu0 %v1603
  %2060 = vmatpush.bf16.msra.mxu0 %v1602
  %2061 = vmatpush.bf16.msra.mxu0 %v1601
  %2062 = vmatpush.bf16.msra.mxu0 %v1600
  %2063 = vmatpush.bf16.msra.mxu0 %v1599
  %2064 = vmatpush.bf16.msra.mxu0 %v1598
  %2065 = vmatpush.bf16.msra.mxu0 %v1597
  %2066 = vmatmul.bf16.gmra.mxu0 %v794
  %v2067 = vpop.f32.mrf.mxu0
  %v2068 = vadd.f32 %v2019, %v2067
  %v2069 = vpop.f32.mrf.mxu0
  %v2070 = vadd.f32 %v2021, %v2069
  %2071 = vmatmul.bf16.gmra.mxu0 %v810
  %v2072 = vpop.f32.mrf.mxu0
  %v2073 = vadd.f32 %v2024, %v2072
  %v2074 = vpop.f32.mrf.mxu0
  %v2075 = vadd.f32 %v2026, %v2074
  %2076 = vmatmul.bf16.gmra.mxu0 %v826
  %v2077 = vpop.f32.mrf.mxu0
  %v2078 = vadd.f32 %v2029, %v2077
  %v2079 = vpop.f32.mrf.mxu0
  %v2080 = vadd.f32 %v2031, %v2079
  %2081 = vmatmul.bf16.gmra.mxu0 %v842
  %v2082 = vpop.f32.mrf.mxu0
  %v2083 = vadd.f32 %v2034, %v2082
  %v2084 = vpop.f32.mrf.mxu0
  %v2085 = vadd.f32 %v2036, %v2084
  %2086 = vmatmul.bf16.gmra.mxu0 %v858
  %v2087 = vpop.f32.mrf.mxu0
  %v2088 = vadd.f32 %v2039, %v2087
  %v2089 = vpop.f32.mrf.mxu0
  %v2090 = vadd.f32 %v2041, %v2089
  %2091 = vmatmul.bf16.gmra.mxu0 %v874
  %v2092 = vpop.f32.mrf.mxu0
  %v2093 = vadd.f32 %v2044, %v2092
  %v2094 = vpop.f32.mrf.mxu0
  %v2095 = vadd.f32 %v2046, %v2094
  %2096 = vmatmul.bf16.gmra.mxu0 %v890
  %v2097 = vpop.f32.mrf.mxu0
  %v2098 = vadd.f32 %v2049, %v2097
  %v2099 = vpop.f32.mrf.mxu0
  %v2100 = vadd.f32 %v2051, %v2099
  %2101 = vmatmul.bf16.gmra.mxu0 %v906
  %v2102 = vpop.f32.mrf.mxu0
  %v2103 = vadd.f32 %v2054, %v2102
  %v2104 = vpop.f32.mrf.mxu0
  %v2105 = vadd.f32 %v2056, %v2104
  %2106 = vdwg.mxu0
  %2107 = vmatpush.bf16.msra.mxu0 %v1612
  %2108 = vmatpush.bf16.msra.mxu0 %v1611
  %2109 = vmatpush.bf16.msra.mxu0 %v1610
  %2110 = vmatpush.bf16.msra.mxu0 %v1609
  %2111 = vmatpush.bf16.msra.mxu0 %v1608
  %2112 = vmatpush.bf16.msra.mxu0 %v1607
  %2113 = vmatpush.bf16.msra.mxu0 %v1606
  %2114 = vmatpush.bf16.msra.mxu0 %v1605
  %2115 = vmatmul.bf16.gmra.mxu0 %v795
  %v2116 = vpop.f32.mrf.mxu0
  %v2117 = vadd.f32 %v2068, %v2116
  %v2118 = vpop.f32.mrf.mxu0
  %v2119 = vadd.f32 %v2070, %v2118
  %2120 = vmatmul.bf16.gmra.mxu0 %v811
  %v2121 = vpop.f32.mrf.mxu0
  %v2122 = vadd.f32 %v2073, %v2121
  %v2123 = vpop.f32.mrf.mxu0
  %v2124 = vadd.f32 %v2075, %v2123
  %2125 = vmatmul.bf16.gmra.mxu0 %v827
  %v2126 = vpop.f32.mrf.mxu0
  %v2127 = vadd.f32 %v2078, %v2126
  %v2128 = vpop.f32.mrf.mxu0
  %v2129 = vadd.f32 %v2080, %v2128
  %2130 = vmatmul.bf16.gmra.mxu0 %v843
  %v2131 = vpop.f32.mrf.mxu0
  %v2132 = vadd.f32 %v2083, %v2131
  %v2133 = vpop.f32.mrf.mxu0
  %v2134 = vadd.f32 %v2085, %v2133
  %2135 = vmatmul.bf16.gmra.mxu0 %v859
  %v2136 = vpop.f32.mrf.mxu0
  %v2137 = vadd.f32 %v2088, %v2136
  %v2138 = vpop.f32.mrf.mxu0
  %v2139 = vadd.f32 %v2090, %v2138
  %2140 = vmatmul.bf16.gmra.mxu0 %v875
  %v2141 = vpop.f32.mrf.mxu0
  %v2142 = vadd.f32 %v2093, %v2141
  %v2143 = vpop.f32.mrf.mxu0
  %v2144 = vadd.f32 %v2095, %v2143
  %2145 = vmatmul.bf16.gmra.mxu0 %v891
  %v2146 = vpop.f32.mrf.mxu0
  %v2147 = vadd.f32 %v2098, %v2146
  %v2148 = vpop.f32.mrf.mxu0
  %v2149 = vadd.f32 %v2100, %v2148
  %2150 = vmatmul.bf16.gmra.mxu0 %v907
  %v2151 = vpop.f32.mrf.mxu0
  %v2152 = vadd.f32 %v2103, %v2151
  %v2153 = vpop.f32.mrf.mxu0
  %v2154 = vadd.f32 %v2105, %v2153
  %2155 = vdwg.mxu0
  %2156 = vmatpush.bf16.msra.mxu0 %v1620
  %2157 = vmatpush.bf16.msra.mxu0 %v1619
  %2158 = vmatpush.bf16.msra.mxu0 %v1618
  %2159 = vmatpush.bf16.msra.mxu0 %v1617
  %2160 = vmatpush.bf16.msra.mxu0 %v1616
  %2161 = vmatpush.bf16.msra.mxu0 %v1615
  %2162 = vmatpush.bf16.msra.mxu0 %v1614
  %2163 = vmatpush.bf16.msra.mxu0 %v1613
  %2164 = vmatmul.bf16.gmra.mxu0 %v796
  %v2165 = vpop.f32.mrf.mxu0
  %v2166 = vadd.f32 %v2117, %v2165
  %v2167 = vpop.f32.mrf.mxu0
  %v2168 = vadd.f32 %v2119, %v2167
  %2169 = vmatmul.bf16.gmra.mxu0 %v812
  %v2170 = vpop.f32.mrf.mxu0
  %v2171 = vadd.f32 %v2122, %v2170
  %v2172 = vpop.f32.mrf.mxu0
  %v2173 = vadd.f32 %v2124, %v2172
  %2174 = vmatmul.bf16.gmra.mxu0 %v828
  %v2175 = vpop.f32.mrf.mxu0
  %v2176 = vadd.f32 %v2127, %v2175
  %v2177 = vpop.f32.mrf.mxu0
  %v2178 = vadd.f32 %v2129, %v2177
  %2179 = vmatmul.bf16.gmra.mxu0 %v844
  %v2180 = vpop.f32.mrf.mxu0
  %v2181 = vadd.f32 %v2132, %v2180
  %v2182 = vpop.f32.mrf.mxu0
  %v2183 = vadd.f32 %v2134, %v2182
  %2184 = vmatmul.bf16.gmra.mxu0 %v860
  %v2185 = vpop.f32.mrf.mxu0
  %v2186 = vadd.f32 %v2137, %v2185
  %v2187 = vpop.f32.mrf.mxu0
  %v2188 = vadd.f32 %v2139, %v2187
  %2189 = vmatmul.bf16.gmra.mxu0 %v876
  %v2190 = vpop.f32.mrf.mxu0
  %v2191 = vadd.f32 %v2142, %v2190
  %v2192 = vpop.f32.mrf.mxu0
  %v2193 = vadd.f32 %v2144, %v2192
  %2194 = vmatmul.bf16.gmra.mxu0 %v892
  %v2195 = vpop.f32.mrf.mxu0
  %v2196 = vadd.f32 %v2147, %v2195
  %v2197 = vpop.f32.mrf.mxu0
  %v2198 = vadd.f32 %v2149, %v2197
  %2199 = vmatmul.bf16.gmra.mxu0 %v908
  %v2200 = vpop.f32.mrf.mxu0
  %v2201 = vadd.f32 %v2152, %v2200
  %v2202 = vpop.f32.mrf.mxu0
  %v2203 = vadd.f32 %v2154, %v2202
  %2204 = vdwg.mxu0
  %2205 = vmatpush.bf16.msra.mxu0 %v1628
  %2206 = vmatpush.bf16.msra.mxu0 %v1627
  %2207 = vmatpush.bf16.msra.mxu0 %v1626
  %2208 = vmatpush.bf16.msra.mxu0 %v1625
  %2209 = vmatpush.bf16.msra.mxu0 %v1624
  %2210 = vmatpush.bf16.msra.mxu0 %v1623
  %2211 = vmatpush.bf16.msra.mxu0 %v1622
  %2212 = vmatpush.bf16.msra.mxu0 %v1621
  %2213 = vmatmul.bf16.gmra.mxu0 %v797
  %v2214 = vpop.f32.mrf.mxu0
  %v2215 = vadd.f32 %v2166, %v2214
  %v2216 = vpop.f32.mrf.mxu0
  %v2217 = vadd.f32 %v2168, %v2216
  %2218 = vmatmul.bf16.gmra.mxu0 %v813
  %v2219 = vpop.f32.mrf.mxu0
  %v2220 = vadd.f32 %v2171, %v2219
  %v2221 = vpop.f32.mrf.mxu0
  %v2222 = vadd.f32 %v2173, %v2221
  %2223 = vmatmul.bf16.gmra.mxu0 %v829
  %v2224 = vpop.f32.mrf.mxu0
  %v2225 = vadd.f32 %v2176, %v2224
  %v2226 = vpop.f32.mrf.mxu0
  %v2227 = vadd.f32 %v2178, %v2226
  %2228 = vmatmul.bf16.gmra.mxu0 %v845
  %v2229 = vpop.f32.mrf.mxu0
  %v2230 = vadd.f32 %v2181, %v2229
  %v2231 = vpop.f32.mrf.mxu0
  %v2232 = vadd.f32 %v2183, %v2231
  %2233 = vmatmul.bf16.gmra.mxu0 %v861
  %v2234 = vpop.f32.mrf.mxu0
  %v2235 = vadd.f32 %v2186, %v2234
  %v2236 = vpop.f32.mrf.mxu0
  %v2237 = vadd.f32 %v2188, %v2236
  %2238 = vmatmul.bf16.gmra.mxu0 %v877
  %v2239 = vpop.f32.mrf.mxu0
  %v2240 = vadd.f32 %v2191, %v2239
  %v2241 = vpop.f32.mrf.mxu0
  %v2242 = vadd.f32 %v2193, %v2241
  %2243 = vmatmul.bf16.gmra.mxu0 %v893
  %v2244 = vpop.f32.mrf.mxu0
  %v2245 = vadd.f32 %v2196, %v2244
  %v2246 = vpop.f32.mrf.mxu0
  %v2247 = vadd.f32 %v2198, %v2246
  %2248 = vmatmul.bf16.gmra.mxu0 %v909
  %v2249 = vpop.f32.mrf.mxu0
  %v2250 = vadd.f32 %v2201, %v2249
  %v2251 = vpop.f32.mrf.mxu0
  %v2252 = vadd.f32 %v2203, %v2251
  %2253 = vdwg.mxu0
  %2254 = vmatpush.bf16.msra.mxu0 %v1636
  %2255 = vmatpush.bf16.msra.mxu0 %v1635
  %2256 = vmatpush.bf16.msra.mxu0 %v1634
  %2257 = vmatpush.bf16.msra.mxu0 %v1633
  %2258 = vmatpush.bf16.msra.mxu0 %v1632
  %2259 = vmatpush.bf16.msra.mxu0 %v1631
  %2260 = vmatpush.bf16.msra.mxu0 %v1630
  %2261 = vmatpush.bf16.msra.mxu0 %v1629
  %2262 = vmatmul.bf16.gmra.mxu0 %v798
  %v2263 = vpop.f32.mrf.mxu0
  %v2264 = vadd.f32 %v2215, %v2263
  %v2265 = vpop.f32.mrf.mxu0
  %v2266 = vadd.f32 %v2217, %v2265
  %2267 = vmatmul.bf16.gmra.mxu0 %v814
  %v2268 = vpop.f32.mrf.mxu0
  %v2269 = vadd.f32 %v2220, %v2268
  %v2270 = vpop.f32.mrf.mxu0
  %v2271 = vadd.f32 %v2222, %v2270
  %2272 = vmatmul.bf16.gmra.mxu0 %v830
  %v2273 = vpop.f32.mrf.mxu0
  %v2274 = vadd.f32 %v2225, %v2273
  %v2275 = vpop.f32.mrf.mxu0
  %v2276 = vadd.f32 %v2227, %v2275
  %2277 = vmatmul.bf16.gmra.mxu0 %v846
  %v2278 = vpop.f32.mrf.mxu0
  %v2279 = vadd.f32 %v2230, %v2278
  %v2280 = vpop.f32.mrf.mxu0
  %v2281 = vadd.f32 %v2232, %v2280
  %2282 = vmatmul.bf16.gmra.mxu0 %v862
  %v2283 = vpop.f32.mrf.mxu0
  %v2284 = vadd.f32 %v2235, %v2283
  %v2285 = vpop.f32.mrf.mxu0
  %v2286 = vadd.f32 %v2237, %v2285
  %2287 = vmatmul.bf16.gmra.mxu0 %v878
  %v2288 = vpop.f32.mrf.mxu0
  %v2289 = vadd.f32 %v2240, %v2288
  %v2290 = vpop.f32.mrf.mxu0
  %v2291 = vadd.f32 %v2242, %v2290
  %2292 = vmatmul.bf16.gmra.mxu0 %v894
  %v2293 = vpop.f32.mrf.mxu0
  %v2294 = vadd.f32 %v2245, %v2293
  %v2295 = vpop.f32.mrf.mxu0
  %v2296 = vadd.f32 %v2247, %v2295
  %2297 = vmatmul.bf16.gmra.mxu0 %v910
  %v2298 = vpop.f32.mrf.mxu0
  %v2299 = vadd.f32 %v2250, %v2298
  %v2300 = vpop.f32.mrf.mxu0
  %v2301 = vadd.f32 %v2252, %v2300
  %2302 = vdwg.mxu0
  %2303 = vmatpush.bf16.msra.mxu0 %v1644
  %2304 = vmatpush.bf16.msra.mxu0 %v1643
  %2305 = vmatpush.bf16.msra.mxu0 %v1642
  %2306 = vmatpush.bf16.msra.mxu0 %v1641
  %2307 = vmatpush.bf16.msra.mxu0 %v1640
  %2308 = vmatpush.bf16.msra.mxu0 %v1639
  %2309 = vmatpush.bf16.msra.mxu0 %v1638
  %2310 = vmatpush.bf16.msra.mxu0 %v1637
  %2311 = vmatmul.bf16.gmra.mxu0 %v799
  %v2312 = vpop.f32.mrf.mxu0
  %v2313 = vadd.f32 %v2264, %v2312
  %v2314 = vpop.f32.mrf.mxu0
  %v2315 = vadd.f32 %v2266, %v2314
  %2316 = vmatmul.bf16.gmra.mxu0 %v815
  %v2317 = vpop.f32.mrf.mxu0
  %v2318 = vadd.f32 %v2269, %v2317
  %v2319 = vpop.f32.mrf.mxu0
  %v2320 = vadd.f32 %v2271, %v2319
  %2321 = vmatmul.bf16.gmra.mxu0 %v831
  %v2322 = vpop.f32.mrf.mxu0
  %v2323 = vadd.f32 %v2274, %v2322
  %v2324 = vpop.f32.mrf.mxu0
  %v2325 = vadd.f32 %v2276, %v2324
  %2326 = vmatmul.bf16.gmra.mxu0 %v847
  %v2327 = vpop.f32.mrf.mxu0
  %v2328 = vadd.f32 %v2279, %v2327
  %v2329 = vpop.f32.mrf.mxu0
  %v2330 = vadd.f32 %v2281, %v2329
  %2331 = vmatmul.bf16.gmra.mxu0 %v863
  %v2332 = vpop.f32.mrf.mxu0
  %v2333 = vadd.f32 %v2284, %v2332
  %v2334 = vpop.f32.mrf.mxu0
  %v2335 = vadd.f32 %v2286, %v2334
  %2336 = vmatmul.bf16.gmra.mxu0 %v879
  %v2337 = vpop.f32.mrf.mxu0
  %v2338 = vadd.f32 %v2289, %v2337
  %v2339 = vpop.f32.mrf.mxu0
  %v2340 = vadd.f32 %v2291, %v2339
  %2341 = vmatmul.bf16.gmra.mxu0 %v895
  %v2342 = vpop.f32.mrf.mxu0
  %v2343 = vadd.f32 %v2294, %v2342
  %v2344 = vpop.f32.mrf.mxu0
  %v2345 = vadd.f32 %v2296, %v2344
  %2346 = vmatmul.bf16.gmra.mxu0 %v911
  %v2347 = vpop.f32.mrf.mxu0
  %v2348 = vadd.f32 %v2299, %v2347
  %v2349 = vpop.f32.mrf.mxu0
  %v2350 = vadd.f32 %v2301, %v2349
  %2351 = vdwg.mxu0
  %2352 = vmatpush.bf16.msra.mxu0 %v1652
  %2353 = vmatpush.bf16.msra.mxu0 %v1651
  %2354 = vmatpush.bf16.msra.mxu0 %v1650
  %2355 = vmatpush.bf16.msra.mxu0 %v1649
  %2356 = vmatpush.bf16.msra.mxu0 %v1648
  %2357 = vmatpush.bf16.msra.mxu0 %v1647
  %2358 = vmatpush.bf16.msra.mxu0 %v1646
  %2359 = vmatpush.bf16.msra.mxu0 %v1645
  %2360 = vmatmul.bf16.gmra.mxu0 %v800
  %v2361 = vpop.f32.mrf.mxu0
  %v2362 = vadd.f32 %v2313, %v2361
  %v2363 = vpop.f32.mrf.mxu0
  %v2364 = vadd.f32 %v2315, %v2363
  %2365 = vmatmul.bf16.gmra.mxu0 %v816
  %v2366 = vpop.f32.mrf.mxu0
  %v2367 = vadd.f32 %v2318, %v2366
  %v2368 = vpop.f32.mrf.mxu0
  %v2369 = vadd.f32 %v2320, %v2368
  %2370 = vmatmul.bf16.gmra.mxu0 %v832
  %v2371 = vpop.f32.mrf.mxu0
  %v2372 = vadd.f32 %v2323, %v2371
  %v2373 = vpop.f32.mrf.mxu0
  %v2374 = vadd.f32 %v2325, %v2373
  %2375 = vmatmul.bf16.gmra.mxu0 %v848
  %v2376 = vpop.f32.mrf.mxu0
  %v2377 = vadd.f32 %v2328, %v2376
  %v2378 = vpop.f32.mrf.mxu0
  %v2379 = vadd.f32 %v2330, %v2378
  %2380 = vmatmul.bf16.gmra.mxu0 %v864
  %v2381 = vpop.f32.mrf.mxu0
  %v2382 = vadd.f32 %v2333, %v2381
  %v2383 = vpop.f32.mrf.mxu0
  %v2384 = vadd.f32 %v2335, %v2383
  %2385 = vmatmul.bf16.gmra.mxu0 %v880
  %v2386 = vpop.f32.mrf.mxu0
  %v2387 = vadd.f32 %v2338, %v2386
  %v2388 = vpop.f32.mrf.mxu0
  %v2389 = vadd.f32 %v2340, %v2388
  %2390 = vmatmul.bf16.gmra.mxu0 %v896
  %v2391 = vpop.f32.mrf.mxu0
  %v2392 = vadd.f32 %v2343, %v2391
  %v2393 = vpop.f32.mrf.mxu0
  %v2394 = vadd.f32 %v2345, %v2393
  %2395 = vmatmul.bf16.gmra.mxu0 %v912
  %v2396 = vpop.f32.mrf.mxu0
  %v2397 = vadd.f32 %v2348, %v2396
  %v2398 = vpop.f32.mrf.mxu0
  %v2399 = vadd.f32 %v2350, %v2398
  %2400 = vdwg.mxu0
  %2401 = vmatpush.bf16.msra.mxu0 %v1660
  %2402 = vmatpush.bf16.msra.mxu0 %v1659
  %2403 = vmatpush.bf16.msra.mxu0 %v1658
  %2404 = vmatpush.bf16.msra.mxu0 %v1657
  %2405 = vmatpush.bf16.msra.mxu0 %v1656
  %2406 = vmatpush.bf16.msra.mxu0 %v1655
  %2407 = vmatpush.bf16.msra.mxu0 %v1654
  %2408 = vmatpush.bf16.msra.mxu0 %v1653
  %2409 = vmatmul.bf16.gmra.mxu0 %v801
  %v2410 = vpop.f32.mrf.mxu0
  %v2411 = vadd.f32 %v2362, %v2410
  %v2412 = vpop.f32.mrf.mxu0
  %v2413 = vadd.f32 %v2364, %v2412
  %2414 = vmatmul.bf16.gmra.mxu0 %v817
  %v2415 = vpop.f32.mrf.mxu0
  %v2416 = vadd.f32 %v2367, %v2415
  %v2417 = vpop.f32.mrf.mxu0
  %v2418 = vadd.f32 %v2369, %v2417
  %2419 = vmatmul.bf16.gmra.mxu0 %v833
  %v2420 = vpop.f32.mrf.mxu0
  %v2421 = vadd.f32 %v2372, %v2420
  %v2422 = vpop.f32.mrf.mxu0
  %v2423 = vadd.f32 %v2374, %v2422
  %2424 = vmatmul.bf16.gmra.mxu0 %v849
  %v2425 = vpop.f32.mrf.mxu0
  %v2426 = vadd.f32 %v2377, %v2425
  %v2427 = vpop.f32.mrf.mxu0
  %v2428 = vadd.f32 %v2379, %v2427
  %2429 = vmatmul.bf16.gmra.mxu0 %v865
  %v2430 = vpop.f32.mrf.mxu0
  %v2431 = vadd.f32 %v2382, %v2430
  %v2432 = vpop.f32.mrf.mxu0
  %v2433 = vadd.f32 %v2384, %v2432
  %2434 = vmatmul.bf16.gmra.mxu0 %v881
  %v2435 = vpop.f32.mrf.mxu0
  %v2436 = vadd.f32 %v2387, %v2435
  %v2437 = vpop.f32.mrf.mxu0
  %v2438 = vadd.f32 %v2389, %v2437
  %2439 = vmatmul.bf16.gmra.mxu0 %v897
  %v2440 = vpop.f32.mrf.mxu0
  %v2441 = vadd.f32 %v2392, %v2440
  %v2442 = vpop.f32.mrf.mxu0
  %v2443 = vadd.f32 %v2394, %v2442
  %2444 = vmatmul.bf16.gmra.mxu0 %v913
  %v2445 = vpop.f32.mrf.mxu0
  %v2446 = vadd.f32 %v2397, %v2445
  %v2447 = vpop.f32.mrf.mxu0
  %v2448 = vadd.f32 %v2399, %v2447
  %2449 = vdwg.mxu0
  %2450 = vmatpush.bf16.msra.mxu0 %v1668
  %2451 = vmatpush.bf16.msra.mxu0 %v1667
  %2452 = vmatpush.bf16.msra.mxu0 %v1666
  %2453 = vmatpush.bf16.msra.mxu0 %v1665
  %2454 = vmatpush.bf16.msra.mxu0 %v1664
  %2455 = vmatpush.bf16.msra.mxu0 %v1663
  %2456 = vmatpush.bf16.msra.mxu0 %v1662
  %2457 = vmatpush.bf16.msra.mxu0 %v1661
  %2458 = vmatmul.bf16.gmra.mxu0 %v802
  %v2459 = vpop.f32.mrf.mxu0
  %v2460 = vadd.f32 %v2411, %v2459
  %v2461 = vpop.f32.mrf.mxu0
  %v2462 = vadd.f32 %v2413, %v2461
  %2463 = vmatmul.bf16.gmra.mxu0 %v818
  %v2464 = vpop.f32.mrf.mxu0
  %v2465 = vadd.f32 %v2416, %v2464
  %v2466 = vpop.f32.mrf.mxu0
  %v2467 = vadd.f32 %v2418, %v2466
  %2468 = vmatmul.bf16.gmra.mxu0 %v834
  %v2469 = vpop.f32.mrf.mxu0
  %v2470 = vadd.f32 %v2421, %v2469
  %v2471 = vpop.f32.mrf.mxu0
  %v2472 = vadd.f32 %v2423, %v2471
  %2473 = vmatmul.bf16.gmra.mxu0 %v850
  %v2474 = vpop.f32.mrf.mxu0
  %v2475 = vadd.f32 %v2426, %v2474
  %v2476 = vpop.f32.mrf.mxu0
  %v2477 = vadd.f32 %v2428, %v2476
  %2478 = vmatmul.bf16.gmra.mxu0 %v866
  %v2479 = vpop.f32.mrf.mxu0
  %v2480 = vadd.f32 %v2431, %v2479
  %v2481 = vpop.f32.mrf.mxu0
  %v2482 = vadd.f32 %v2433, %v2481
  %2483 = vmatmul.bf16.gmra.mxu0 %v882
  %v2484 = vpop.f32.mrf.mxu0
  %v2485 = vadd.f32 %v2436, %v2484
  %v2486 = vpop.f32.mrf.mxu0
  %v2487 = vadd.f32 %v2438, %v2486
  %2488 = vmatmul.bf16.gmra.mxu0 %v898
  %v2489 = vpop.f32.mrf.mxu0
  %v2490 = vadd.f32 %v2441, %v2489
  %v2491 = vpop.f32.mrf.mxu0
  %v2492 = vadd.f32 %v2443, %v2491
  %2493 = vmatmul.bf16.gmra.mxu0 %v914
  %v2494 = vpop.f32.mrf.mxu0
  %v2495 = vadd.f32 %v2446, %v2494
  %v2496 = vpop.f32.mrf.mxu0
  %v2497 = vadd.f32 %v2448, %v2496
  %2498 = vdwg.mxu0
  %2499 = vmatpush.bf16.msra.mxu0 %v1676
  %2500 = vmatpush.bf16.msra.mxu0 %v1675
  %2501 = vmatpush.bf16.msra.mxu0 %v1674
  %2502 = vmatpush.bf16.msra.mxu0 %v1673
  %2503 = vmatpush.bf16.msra.mxu0 %v1672
  %2504 = vmatpush.bf16.msra.mxu0 %v1671
  %2505 = vmatpush.bf16.msra.mxu0 %v1670
  %2506 = vmatpush.bf16.msra.mxu0 %v1669
  %2507 = vmatmul.bf16.gmra.mxu0 %v803
  %v2508 = vpop.f32.mrf.mxu0
  %v2509 = vadd.f32 %v2460, %v2508
  %v2510 = vpop.f32.mrf.mxu0
  %v2511 = vadd.f32 %v2462, %v2510
  %2512 = vmatmul.bf16.gmra.mxu0 %v819
  %v2513 = vpop.f32.mrf.mxu0
  %v2514 = vadd.f32 %v2465, %v2513
  %v2515 = vpop.f32.mrf.mxu0
  %v2516 = vadd.f32 %v2467, %v2515
  %2517 = vmatmul.bf16.gmra.mxu0 %v835
  %v2518 = vpop.f32.mrf.mxu0
  %v2519 = vadd.f32 %v2470, %v2518
  %v2520 = vpop.f32.mrf.mxu0
  %v2521 = vadd.f32 %v2472, %v2520
  %2522 = vmatmul.bf16.gmra.mxu0 %v851
  %v2523 = vpop.f32.mrf.mxu0
  %v2524 = vadd.f32 %v2475, %v2523
  %v2525 = vpop.f32.mrf.mxu0
  %v2526 = vadd.f32 %v2477, %v2525
  %2527 = vmatmul.bf16.gmra.mxu0 %v867
  %v2528 = vpop.f32.mrf.mxu0
  %v2529 = vadd.f32 %v2480, %v2528
  %v2530 = vpop.f32.mrf.mxu0
  %v2531 = vadd.f32 %v2482, %v2530
  %2532 = vmatmul.bf16.gmra.mxu0 %v883
  %v2533 = vpop.f32.mrf.mxu0
  %v2534 = vadd.f32 %v2485, %v2533
  %v2535 = vpop.f32.mrf.mxu0
  %v2536 = vadd.f32 %v2487, %v2535
  %2537 = vmatmul.bf16.gmra.mxu0 %v899
  %v2538 = vpop.f32.mrf.mxu0
  %v2539 = vadd.f32 %v2490, %v2538
  %v2540 = vpop.f32.mrf.mxu0
  %v2541 = vadd.f32 %v2492, %v2540
  %2542 = vmatmul.bf16.gmra.mxu0 %v915
  %v2543 = vpop.f32.mrf.mxu0
  %v2544 = vadd.f32 %v2495, %v2543
  %v2545 = vpop.f32.mrf.mxu0
  %v2546 = vadd.f32 %v2497, %v2545
  %2547 = vdwg.mxu0
  %2548 = vmatpush.bf16.msra.mxu0 %v1684
  %2549 = vmatpush.bf16.msra.mxu0 %v1683
  %2550 = vmatpush.bf16.msra.mxu0 %v1682
  %2551 = vmatpush.bf16.msra.mxu0 %v1681
  %2552 = vmatpush.bf16.msra.mxu0 %v1680
  %2553 = vmatpush.bf16.msra.mxu0 %v1679
  %2554 = vmatpush.bf16.msra.mxu0 %v1678
  %2555 = vmatpush.bf16.msra.mxu0 %v1677
  %2556 = vmatmul.bf16.gmra.mxu0 %v804
  %v2557 = vpop.f32.mrf.mxu0
  %v2558 = vadd.f32 %v2509, %v2557
  %v2559 = vpop.f32.mrf.mxu0
  %v2560 = vadd.f32 %v2511, %v2559
  %2561 = vmatmul.bf16.gmra.mxu0 %v820
  %v2562 = vpop.f32.mrf.mxu0
  %v2563 = vadd.f32 %v2514, %v2562
  %v2564 = vpop.f32.mrf.mxu0
  %v2565 = vadd.f32 %v2516, %v2564
  %2566 = vmatmul.bf16.gmra.mxu0 %v836
  %v2567 = vpop.f32.mrf.mxu0
  %v2568 = vadd.f32 %v2519, %v2567
  %v2569 = vpop.f32.mrf.mxu0
  %v2570 = vadd.f32 %v2521, %v2569
  %2571 = vmatmul.bf16.gmra.mxu0 %v852
  %v2572 = vpop.f32.mrf.mxu0
  %v2573 = vadd.f32 %v2524, %v2572
  %v2574 = vpop.f32.mrf.mxu0
  %v2575 = vadd.f32 %v2526, %v2574
  %2576 = vmatmul.bf16.gmra.mxu0 %v868
  %v2577 = vpop.f32.mrf.mxu0
  %v2578 = vadd.f32 %v2529, %v2577
  %v2579 = vpop.f32.mrf.mxu0
  %v2580 = vadd.f32 %v2531, %v2579
  %2581 = vmatmul.bf16.gmra.mxu0 %v884
  %v2582 = vpop.f32.mrf.mxu0
  %v2583 = vadd.f32 %v2534, %v2582
  %v2584 = vpop.f32.mrf.mxu0
  %v2585 = vadd.f32 %v2536, %v2584
  %2586 = vmatmul.bf16.gmra.mxu0 %v900
  %v2587 = vpop.f32.mrf.mxu0
  %v2588 = vadd.f32 %v2539, %v2587
  %v2589 = vpop.f32.mrf.mxu0
  %v2590 = vadd.f32 %v2541, %v2589
  %2591 = vmatmul.bf16.gmra.mxu0 %v916
  %v2592 = vpop.f32.mrf.mxu0
  %v2593 = vadd.f32 %v2544, %v2592
  %v2594 = vpop.f32.mrf.mxu0
  %v2595 = vadd.f32 %v2546, %v2594
  %2596 = vdwg.mxu0
  %v2597 = vpack.c.bf16 %v2558, %v2558
  %v2598 = vpack.c.bf16 %v2560, %v2560
  %v2599 = vpack.c.bf16 %v2563, %v2563
  %v2600 = vpack.c.bf16 %v2565, %v2565
  %v2601 = vpack.c.bf16 %v2568, %v2568
  %v2602 = vpack.c.bf16 %v2570, %v2570
  %v2603 = vpack.c.bf16 %v2573, %v2573
  %v2604 = vpack.c.bf16 %v2575, %v2575
  %v2605 = vpack.c.bf16 %v2578, %v2578
  %v2606 = vpack.c.bf16 %v2580, %v2580
  %v2607 = vpack.c.bf16 %v2583, %v2583
  %v2608 = vpack.c.bf16 %v2585, %v2585
  %v2609 = vpack.c.bf16 %v2588, %v2588
  %v2610 = vpack.c.bf16 %v2590, %v2590
  %v2611 = vpack.c.bf16 %v2593, %v2593
  %v2612 = vpack.c.bf16 %v2595, %v2595
  %2613 = vst [vmem:[%s3] sm:$0xf] %v2597
  %2614 = vst [vmem:[%s3 + $0x4] sm:$0xf] %v2598
  %2615 = vst [vmem:[%s3 + $0x8] sm:$0xf] %v2599
  %2616 = vst [vmem:[%s3 + $0xc] sm:$0xf] %v2600
  %2617 = vst [vmem:[%s3 + $0x10] sm:$0xf] %v2601
  %2618 = vst [vmem:[%s3 + $0x14] sm:$0xf] %v2602
  %2619 = vst [vmem:[%s3 + $0x18] sm:$0xf] %v2603
  %2620 = vst [vmem:[%s3 + $0x1c] sm:$0xf] %v2604
  %2621 = vst [vmem:[%s3 + $0x20] sm:$0xf] %v2605
  %2622 = vst [vmem:[%s3 + $0x24] sm:$0xf] %v2606
  %2623 = vst [vmem:[%s3 + $0x28] sm:$0xf] %v2607
  %2624 = vst [vmem:[%s3 + $0x2c] sm:$0xf] %v2608
  %2625 = vst [vmem:[%s3 + $0x30] sm:$0xf] %v2609
  %2626 = vst [vmem:[%s3 + $0x34] sm:$0xf] %v2610
  %2627 = vst [vmem:[%s3 + $0x38] sm:$0xf] %v2611
  %2628 = vst [vmem:[%s3 + $0x3c] sm:$0xf] %v2612
  %v2629 = vadd.f32 %v2558, %v2560
  %v2630 = vadd.f32 %v2629, %v2563
  %v2631 = vadd.f32 %v2630, %v2565
  %v2632 = vadd.f32 %v2631, %v2568
  %v2633 = vadd.f32 %v2632, %v2570
  %v2634 = vadd.f32 %v2633, %v2573
  %v2635 = vadd.f32 %v2634, %v2575
  %v2636 = vadd.f32 %v2635, %v2578
  %v2637 = vadd.f32 %v2636, %v2580
  %v2638 = vadd.f32 %v2637, %v2583
  %v2639 = vadd.f32 %v2638, %v2585
  %v2640 = vadd.f32 %v2639, %v2588
  %v2641 = vadd.f32 %v2640, %v2590
  %v2642 = vadd.f32 %v2641, %v2593
  %v2643 = vadd.f32 %v2642, %v2595
  %v2644 = vrot.slane %v2643, 4
  %v2645 = vadd.f32 %v2643, %v2644
  %v2646 = vrot.slane %v2645, 2
  %v2647 = vadd.f32 %v2645, %v2646
  %v2648 = vrot.slane %v2647, 1
  %v2649 = vadd.f32 %v2647, %v2648
  %2650 = vst [vmem:[%s4] sm:$0x1] %v2649
  %v2651 = vmul.f32 %v2558, %v2558
  %v2652 = vmul.f32 %v2560, %v2560
  %v2653 = vmul.f32 %v2563, %v2563
  %v2654 = vmul.f32 %v2565, %v2565
  %v2655 = vmul.f32 %v2568, %v2568
  %v2656 = vmul.f32 %v2570, %v2570
  %v2657 = vmul.f32 %v2573, %v2573
  %v2658 = vmul.f32 %v2575, %v2575
  %v2659 = vmul.f32 %v2578, %v2578
  %v2660 = vmul.f32 %v2580, %v2580
  %v2661 = vmul.f32 %v2583, %v2583
  %v2662 = vmul.f32 %v2585, %v2585
  %v2663 = vmul.f32 %v2588, %v2588
  %v2664 = vmul.f32 %v2590, %v2590
  %v2665 = vmul.f32 %v2593, %v2593
  %v2666 = vmul.f32 %v2595, %v2595
  %v2667 = vadd.f32 %v2651, %v2652
  %v2668 = vadd.f32 %v2667, %v2653
  %v2669 = vadd.f32 %v2668, %v2654
  %v2670 = vadd.f32 %v2669, %v2655
  %v2671 = vadd.f32 %v2670, %v2656
  %v2672 = vadd.f32 %v2671, %v2657
  %v2673 = vadd.f32 %v2672, %v2658
  %v2674 = vadd.f32 %v2673, %v2659
  %v2675 = vadd.f32 %v2674, %v2660
  %v2676 = vadd.f32 %v2675, %v2661
  %v2677 = vadd.f32 %v2676, %v2662
  %v2678 = vadd.f32 %v2677, %v2663
  %v2679 = vadd.f32 %v2678, %v2664
  %v2680 = vadd.f32 %v2679, %v2665
  %v2681 = vadd.f32 %v2680, %v2666
  %v2682 = vrot.slane %v2681, 4
  %v2683 = vadd.f32 %v2681, %v2682
  %v2684 = vrot.slane %v2683, 2
  %v2685 = vadd.f32 %v2683, %v2684
  %v2686 = vrot.slane %v2685, 1
  %v2687 = vadd.f32 %v2685, %v2686
  %2688 = vst [vmem:[%s5] sm:$0x1] %v2687
  // Predicated region
  $region14: #{_lambda_.9} parent=0 // pred_check
    _
  $region15: #{_lambda_.9} parent=0 // pred_check_branch
    %2690 = sbr.rel (0) target = $region17
  $region16: #{_lambda_.9} parent=0 // pred_region
    _
  $region17: #{_lambda_.9} parent=0 // pred_fallthru
    _
  // Predicated region
  $region18: #{_lambda_.9} parent=0 // pred_check
    _
  $region19: #{_lambda_.9} parent=0 // pred_check_branch
    %2692 = sbr.rel (0) target = $region21
  $region20: #{_lambda_.9} parent=0 // pred_region
    _
  $region21: #{_lambda_.9} parent=0 // pred_fallthru
    _
  // Predicated region
  $region22: #{_lambda_.9} parent=0 // pred_check
    _
  $region23: #{_lambda_.9} parent=0 // pred_check_branch
    %2694 = sbr.rel (0) target = $region25
  $region24: #{_lambda_.9} parent=0 // pred_region
    _
  $region25: #{_lambda_.9} parent=0 // pred_fallthru
    _
  // Predicated region
  $region26: #{_lambda_.9} parent=0 // pred_check
    _
  $region27: #{_lambda_.9} parent=0 // pred_check_branch
    %2696 = sbr.rel (0) target = $region29
  $region28: #{_lambda_.9} parent=0 // pred_region
    _
  $region29: #{_lambda_.9} parent=0 // pred_fallthru
    _
  // Predicated region
  $region30: #{_lambda_.9} parent=0 // pred_check
    _
  $region31: #{_lambda_.9} parent=0 // pred_check_branch
    %2698 = sbr.rel (0) target = $region33
  $region32: #{_lambda_.9} parent=0 // pred_region
    _
  $region33: #{_lambda_.9} parent=0 // pred_fallthru
    _
  // Predicated region
  $region34: #{_lambda_.9} parent=0 // pred_check
    _
  $region35: #{_lambda_.9} parent=0 // pred_check_branch
    %2700 = sbr.rel (0) target = $region37
  $region36: #{_lambda_.9} parent=0 // pred_region
    _
  $region37: #{_lambda_.9} parent=0 // pred_fallthru
    _

// kernel: _lambda_.12
$region0: #{_lambda_.12}
  #allocation0 [shape = 'u32[]', space=smem, size = 0x4, offset = 0x4, fixed_abs, tag = 'smem constant byte address 0x4 - core index']
  #allocation1 [shape = 'u32[72,128]{1,0:T(1,128)}', space=vmem, size = 0x9000, scoped, tag = 'internal scratch']
  %s0 = inlined_call_operand.vmem [shape: bf16[32,128], index: 0, kind: input, shape index: {}]
  %s1 = inlined_call_operand.vmem [shape: f32[1,128], index: 1, kind: input, shape index: {}]
  %s2 = inlined_call_operand.vmem [shape: f32[1,128], index: 2, kind: input, shape index: {}]
  %s3 = inlined_call_operand.vmem [shape: bf16[32,128], index: 3, kind: output, shape index: {}]
  %s4 = sld [smem:[#allocation0]]
  $region22: #{_lambda_.12} parent=0
    _
  %s6 = ssub.s32 1, %s4
  %s7 = scalar_select 0, %s6, %s4
  // Predicated region
  $region2: #{_lambda_.12} parent=0 // pred_check
    _
  $region3: #{_lambda_.12} parent=0 // pred_check_branch
    %9 = sbr.rel (0) target = $region5
  $region4: #{_lambda_.12} parent=0 // pred_region
    _
  $region5: #{_lambda_.12} parent=0 // pred_fallthru
    _
  // Predicated region
  $region6: #{_lambda_.12} parent=0 // pred_check
    _
  $region7: #{_lambda_.12} parent=0 // pred_check_branch
    %11 = sbr.rel (0) target = $region9
  $region8: #{_lambda_.12} parent=0 // pred_region
    _
  $region9: #{_lambda_.12} parent=0 // pred_fallthru
    _
  // Predicated region
  $region10: #{_lambda_.12} parent=0 // pred_check
    _
  $region11: #{_lambda_.12} parent=0 // pred_check_branch
    %13 = sbr.rel (0) target = $region13
  $region12: #{_lambda_.12} parent=0 // pred_region
    _
  $region13: #{_lambda_.12} parent=0 // pred_fallthru
    _
  %v14 = vld [vmem:[%s0] sm:$0xf]
  %v15 = vld [vmem:[%s0 + $0x4] sm:$0xf]
  %v16 = vld [vmem:[%s0 + $0x8] sm:$0xf]
  %v17 = vld [vmem:[%s0 + $0xc] sm:$0xf]
  %v18 = vunpack.c.l.bf16 %v14
  %v19 = vunpack.c.l.bf16 %v15
  %v20 = vunpack.c.l.bf16 %v16
  %v21 = vunpack.c.l.bf16 %v17
  %v22 = vld [vmem:[%s1] sm:$0x1]
  %v24 = vperm.slane %v22, 0
  %v26 = vmul.f32 %v18, %v24
  %v27 = vmul.f32 %v19, %v24
  %v28 = vmul.f32 %v20, %v24
  %v29 = vmul.f32 %v21, %v24
  %v30 = vld [vmem:[%s2] sm:$0x1]
  %v32 = vperm.slane %v30, 0
  %v34 = vadd.f32 %v26, %v32
  %v35 = vadd.f32 %v27, %v32
  %v36 = vadd.f32 %v28, %v32
  %v37 = vadd.f32 %v29, %v32
  %vm38 = vcmp.ge.f32.partialorder %v34, 0.0
  %vm39 = vcmp.ge.f32.partialorder %v35, 0.0
  %vm40 = vcmp.ge.f32.partialorder %v36, 0.0
  %vm41 = vcmp.ge.f32.partialorder %v37, 0.0
  %v42 = vmul.f32 %v34, 0.2
  %v43 = vmul.f32 %v35, 0.2
  %v44 = vmul.f32 %v36, 0.2
  %v45 = vmul.f32 %v37, 0.2
  %v46 = vsel %vm38, %v34, %v42
  %v47 = vsel %vm39, %v35, %v43
  %v48 = vsel %vm40, %v36, %v44
  %v49 = vsel %vm41, %v37, %v45
  %v50 = vpack.c.bf16 %v46, %v46
  %v51 = vpack.c.bf16 %v47, %v47
  %v52 = vpack.c.bf16 %v48, %v48
  %v53 = vpack.c.bf16 %v49, %v49
  %54 = vst [vmem:[%s3] sm:$0xf] %v50
  %55 = vst [vmem:[%s3 + $0x4] sm:$0xf] %v51
  %56 = vst [vmem:[%s3 + $0x8] sm:$0xf] %v52
  %57 = vst [vmem:[%s3 + $0xc] sm:$0xf] %v53
  // Predicated region
  $region14: #{_lambda_.12} parent=0 // pred_check
    _
  $region15: #{_lambda_.12} parent=0 // pred_check_branch
    %59 = sbr.rel (0) target = $region17
  $region16: #{_lambda_.12} parent=0 // pred_region
    _
  $region17: #{_lambda_.12} parent=0 // pred_fallthru
    _
  // Predicated region
  $region18: #{_lambda_.12} parent=0 // pred_check
    _
  $region19: #{_lambda_.12} parent=0 // pred_check_branch
    %61 = sbr.rel (0) target = $region21
  $region20: #{_lambda_.12} parent=0 // pred_region
    _
  $region21: #{_lambda_.12} parent=0 // pred_fallthru
    _

// kernel: _lambda_.11
$region0: #{_lambda_.11}
  #allocation0 [shape = 'u32[]', space=smem, size = 0x4, offset = 0x4, fixed_abs, tag = 'smem constant byte address 0x4 - core index']
  #allocation1 [shape = 'u32[72,128]{1,0:T(1,128)}', space=vmem, size = 0x9000, scoped, tag = 'internal scratch']
  %s0 = inlined_call_operand.vmem [shape: bf16[32,2048], index: 0, kind: input, shape index: {}]
  %s1 = inlined_call_operand.vmem [shape: bf16[2048,128], index: 1, kind: input, shape index: {}]
  %s2 = inlined_call_operand.vmem [shape: f32[1,128], index: 2, kind: input, shape index: {}]
  %s3 = inlined_call_operand.vmem [shape: bf16[32,128], index: 3, kind: output, shape index: {0}]
  %s4 = inlined_call_operand.vmem [shape: f32[1,1,128], index: 4, kind: output, shape index: {1}]
  %s5 = inlined_call_operand.vmem [shape: f32[1,1,128], index: 5, kind: output, shape index: {2}]
  %6 = xla_tuple %s3, %s4, %s5
  %s7 = sld [smem:[#allocation0]]
  $region38: #{_lambda_.11} parent=0
    _
  %s9 = ssub.s32 1, %s7
  %s10 = scalar_select 0, %s9, %s7
  // Predicated region
  $region2: #{_lambda_.11} parent=0 // pred_check
    _
  $region3: #{_lambda_.11} parent=0 // pred_check_branch
    %12 = sbr.rel (0) target = $region5
  $region4: #{_lambda_.11} parent=0 // pred_region
    _
  $region5: #{_lambda_.11} parent=0 // pred_fallthru
    _
  // Predicated region
  $region6: #{_lambda_.11} parent=0 // pred_check
    _
  $region7: #{_lambda_.11} parent=0 // pred_check_branch
    %14 = sbr.rel (0) target = $region9
  $region8: #{_lambda_.11} parent=0 // pred_region
    _
  $region9: #{_lambda_.11} parent=0 // pred_fallthru
    _
  // Predicated region
  $region10: #{_lambda_.11} parent=0 // pred_check
    _
  $region11: #{_lambda_.11} parent=0 // pred_check_branch
    %16 = sbr.rel (0) target = $region13
  $region12: #{_lambda_.11} parent=0 // pred_region
    _
  $region13: #{_lambda_.11} parent=0 // pred_fallthru
    _
  %v17 = vld [vmem:[%s0] sm:$0xff]
  %v18 = vld [vmem:[%s0 + $0x8] sm:$0xff]
  %v19 = vld [vmem:[%s0 + $0x10] sm:$0xff]
  %v20 = vld [vmem:[%s0 + $0x18] sm:$0xff]
  %v21 = vld [vmem:[%s0 + $0x20] sm:$0xff]
  %v22 = vld [vmem:[%s0 + $0x28] sm:$0xff]
  %v23 = vld [vmem:[%s0 + $0x30] sm:$0xff]
  %v24 = vld [vmem:[%s0 + $0x38] sm:$0xff]
  %v25 = vld [vmem:[%s0 + $0x40] sm:$0xff]
  %v26 = vld [vmem:[%s0 + $0x48] sm:$0xff]
  %v27 = vld [vmem:[%s0 + $0x50] sm:$0xff]
  %v28 = vld [vmem:[%s0 + $0x58] sm:$0xff]
  %v29 = vld [vmem:[%s0 + $0x60] sm:$0xff]
  %v30 = vld [vmem:[%s0 + $0x68] sm:$0xff]
  %v31 = vld [vmem:[%s0 + $0x70] sm:$0xff]
  %v32 = vld [vmem:[%s0 + $0x78] sm:$0xff]
  %v33 = vld [vmem:[%s0 + $0x80] sm:$0xff]
  %v34 = vld [vmem:[%s0 + $0x88] sm:$0xff]
  %v35 = vld [vmem:[%s0 + $0x90] sm:$0xff]
  %v36 = vld [vmem:[%s0 + $0x98] sm:$0xff]
  %v37 = vld [vmem:[%s0 + $0xa0] sm:$0xff]
  %v38 = vld [vmem:[%s0 + $0xa8] sm:$0xff]
  %v39 = vld [vmem:[%s0 + $0xb0] sm:$0xff]
  %v40 = vld [vmem:[%s0 + $0xb8] sm:$0xff]
  %v41 = vld [vmem:[%s0 + $0xc0] sm:$0xff]
  %v42 = vld [vmem:[%s0 + $0xc8] sm:$0xff]
  %v43 = vld [vmem:[%s0 + $0xd0] sm:$0xff]
  %v44 = vld [vmem:[%s0 + $0xd8] sm:$0xff]
  %v45 = vld [vmem:[%s0 + $0xe0] sm:$0xff]
  %v46 = vld [vmem:[%s0 + $0xe8] sm:$0xff]
  %v47 = vld [vmem:[%s0 + $0xf0] sm:$0xff]
  %v48 = vld [vmem:[%s0 + $0xf8] sm:$0xff]
  %v49 = vld [vmem:[%s1] sm:$0xf]
  %v50 = vld [vmem:[%s1 + $0x4] sm:$0xf]
  %v51 = vld [vmem:[%s1 + $0x8] sm:$0xf]
  %v52 = vld [vmem:[%s1 + $0xc] sm:$0xf]
  %v53 = vld [vmem:[%s1 + $0x10] sm:$0xf]
  %v54 = vld [vmem:[%s1 + $0x14] sm:$0xf]
  %v55 = vld [vmem:[%s1 + $0x18] sm:$0xf]
  %v56 = vld [vmem:[%s1 + $0x1c] sm:$0xf]
  %v57 = vld [vmem:[%s1 + $0x20] sm:$0xf]
  %v58 = vld [vmem:[%s1 + $0x24] sm:$0xf]
  %v59 = vld [vmem:[%s1 + $0x28] sm:$0xf]
  %v60 = vld [vmem:[%s1 + $0x2c] sm:$0xf]
  %v61 = vld [vmem:[%s1 + $0x30] sm:$0xf]
  %v62 = vld [vmem:[%s1 + $0x34] sm:$0xf]
  %v63 = vld [vmem:[%s1 + $0x38] sm:$0xf]
  %v64 = vld [vmem:[%s1 + $0x3c] sm:$0xf]
  %v65 = vld [vmem:[%s1 + $0x40] sm:$0xf]
  %v66 = vld [vmem:[%s1 + $0x44] sm:$0xf]
  %v67 = vld [vmem:[%s1 + $0x48] sm:$0xf]
  %v68 = vld [vmem:[%s1 + $0x4c] sm:$0xf]
  %v69 = vld [vmem:[%s1 + $0x50] sm:$0xf]
  %v70 = vld [vmem:[%s1 + $0x54] sm:$0xf]
  %v71 = vld [vmem:[%s1 + $0x58] sm:$0xf]
  %v72 = vld [vmem:[%s1 + $0x5c] sm:$0xf]
  %v73 = vld [vmem:[%s1 + $0x60] sm:$0xf]
  %v74 = vld [vmem:[%s1 + $0x64] sm:$0xf]
  %v75 = vld [vmem:[%s1 + $0x68] sm:$0xf]
  %v76 = vld [vmem:[%s1 + $0x6c] sm:$0xf]
  %v77 = vld [vmem:[%s1 + $0x70] sm:$0xf]
  %v78 = vld [vmem:[%s1 + $0x74] sm:$0xf]
  %v79 = vld [vmem:[%s1 + $0x78] sm:$0xf]
  %v80 = vld [vmem:[%s1 + $0x7c] sm:$0xf]
  %v81 = vld [vmem:[%s1 + $0x80] sm:$0xf]
  %v82 = vld [vmem:[%s1 + $0x84] sm:$0xf]
  %v83 = vld [vmem:[%s1 + $0x88] sm:$0xf]
  %v84 = vld [vmem:[%s1 + $0x8c] sm:$0xf]
  %v85 = vld [vmem:[%s1 + $0x90] sm:$0xf]
  %v86 = vld [vmem:[%s1 + $0x94] sm:$0xf]
  %v87 = vld [vmem:[%s1 + $0x98] sm:$0xf]
  %v88 = vld [vmem:[%s1 + $0x9c] sm:$0xf]
  %v89 = vld [vmem:[%s1 + $0xa0] sm:$0xf]
  %v90 = vld [vmem:[%s1 + $0xa4] sm:$0xf]
  %v91 = vld [vmem:[%s1 + $0xa8] sm:$0xf]
  %v92 = vld [vmem:[%s1 + $0xac] sm:$0xf]
  %v93 = vld [vmem:[%s1 + $0xb0] sm:$0xf]
  %v94 = vld [vmem:[%s1 + $0xb4] sm:$0xf]
  %v95 = vld [vmem:[%s1 + $0xb8] sm:$0xf]
  %v96 = vld [vmem:[%s1 + $0xbc] sm:$0xf]
  %v97 = vld [vmem:[%s1 + $0xc0] sm:$0xf]
  %v98 = vld [vmem:[%s1 + $0xc4] sm:$0xf]
  %v99 = vld [vmem:[%s1 + $0xc8] sm:$0xf]
  %v100 = vld [vmem:[%s1 + $0xcc] sm:$0xf]
  %v101 = vld [vmem:[%s1 + $0xd0] sm:$0xf]
  %v102 = vld [vmem:[%s1 + $0xd4] sm:$0xf]
  %v103 = vld [vmem:[%s1 + $0xd8] sm:$0xf]
  %v104 = vld [vmem:[%s1 + $0xdc] sm:$0xf]
  %v105 = vld [vmem:[%s1 + $0xe0] sm:$0xf]
  %v106 = vld [vmem:[%s1 + $0xe4] sm:$0xf]
  %v107 = vld [vmem:[%s1 + $0xe8] sm:$0xf]
  %v108 = vld [vmem:[%s1 + $0xec] sm:$0xf]
  %v109 = vld [vmem:[%s1 + $0xf0] sm:$0xf]
  %v110 = vld [vmem:[%s1 + $0xf4] sm:$0xf]
  %v111 = vld [vmem:[%s1 + $0xf8] sm:$0xf]
  %v112 = vld [vmem:[%s1 + $0xfc] sm:$0xf]
  %v113 = vld [vmem:[%s1 + $0x100] sm:$0xf]
  %v114 = vld [vmem:[%s1 + $0x104] sm:$0xf]
  %v115 = vld [vmem:[%s1 + $0x108] sm:$0xf]
  %v116 = vld [vmem:[%s1 + $0x10c] sm:$0xf]
  %v117 = vld [vmem:[%s1 + $0x110] sm:$0xf]
  %v118 = vld [vmem:[%s1 + $0x114] sm:$0xf]
  %v119 = vld [vmem:[%s1 + $0x118] sm:$0xf]
  %v120 = vld [vmem:[%s1 + $0x11c] sm:$0xf]
  %v121 = vld [vmem:[%s1 + $0x120] sm:$0xf]
  %v122 = vld [vmem:[%s1 + $0x124] sm:$0xf]
  %v123 = vld [vmem:[%s1 + $0x128] sm:$0xf]
  %v124 = vld [vmem:[%s1 + $0x12c] sm:$0xf]
  %v125 = vld [vmem:[%s1 + $0x130] sm:$0xf]
  %v126 = vld [vmem:[%s1 + $0x134] sm:$0xf]
  %v127 = vld [vmem:[%s1 + $0x138] sm:$0xf]
  %v128 = vld [vmem:[%s1 + $0x13c] sm:$0xf]
  %v129 = vld [vmem:[%s1 + $0x140] sm:$0xf]
  %v130 = vld [vmem:[%s1 + $0x144] sm:$0xf]
  %v131 = vld [vmem:[%s1 + $0x148] sm:$0xf]
  %v132 = vld [vmem:[%s1 + $0x14c] sm:$0xf]
  %v133 = vld [vmem:[%s1 + $0x150] sm:$0xf]
  %v134 = vld [vmem:[%s1 + $0x154] sm:$0xf]
  %v135 = vld [vmem:[%s1 + $0x158] sm:$0xf]
  %v136 = vld [vmem:[%s1 + $0x15c] sm:$0xf]
  %v137 = vld [vmem:[%s1 + $0x160] sm:$0xf]
  %v138 = vld [vmem:[%s1 + $0x164] sm:$0xf]
  %v139 = vld [vmem:[%s1 + $0x168] sm:$0xf]
  %v140 = vld [vmem:[%s1 + $0x16c] sm:$0xf]
  %v141 = vld [vmem:[%s1 + $0x170] sm:$0xf]
  %v142 = vld [vmem:[%s1 + $0x174] sm:$0xf]
  %v143 = vld [vmem:[%s1 + $0x178] sm:$0xf]
  %v144 = vld [vmem:[%s1 + $0x17c] sm:$0xf]
  %v145 = vld [vmem:[%s1 + $0x180] sm:$0xf]
  %v146 = vld [vmem:[%s1 + $0x184] sm:$0xf]
  %v147 = vld [vmem:[%s1 + $0x188] sm:$0xf]
  %v148 = vld [vmem:[%s1 + $0x18c] sm:$0xf]
  %v149 = vld [vmem:[%s1 + $0x190] sm:$0xf]
  %v150 = vld [vmem:[%s1 + $0x194] sm:$0xf]
  %v151 = vld [vmem:[%s1 + $0x198] sm:$0xf]
  %v152 = vld [vmem:[%s1 + $0x19c] sm:$0xf]
  %v153 = vld [vmem:[%s1 + $0x1a0] sm:$0xf]
  %v154 = vld [vmem:[%s1 + $0x1a4] sm:$0xf]
  %v155 = vld [vmem:[%s1 + $0x1a8] sm:$0xf]
  %v156 = vld [vmem:[%s1 + $0x1ac] sm:$0xf]
  %v157 = vld [vmem:[%s1 + $0x1b0] sm:$0xf]
  %v158 = vld [vmem:[%s1 + $0x1b4] sm:$0xf]
  %v159 = vld [vmem:[%s1 + $0x1b8] sm:$0xf]
  %v160 = vld [vmem:[%s1 + $0x1bc] sm:$0xf]
  %v161 = vld [vmem:[%s1 + $0x1c0] sm:$0xf]
  %v162 = vld [vmem:[%s1 + $0x1c4] sm:$0xf]
  %v163 = vld [vmem:[%s1 + $0x1c8] sm:$0xf]
  %v164 = vld [vmem:[%s1 + $0x1cc] sm:$0xf]
  %v165 = vld [vmem:[%s1 + $0x1d0] sm:$0xf]
  %v166 = vld [vmem:[%s1 + $0x1d4] sm:$0xf]
  %v167 = vld [vmem:[%s1 + $0x1d8] sm:$0xf]
  %v168 = vld [vmem:[%s1 + $0x1dc] sm:$0xf]
  %v169 = vld [vmem:[%s1 + $0x1e0] sm:$0xf]
  %v170 = vld [vmem:[%s1 + $0x1e4] sm:$0xf]
  %v171 = vld [vmem:[%s1 + $0x1e8] sm:$0xf]
  %v172 = vld [vmem:[%s1 + $0x1ec] sm:$0xf]
  %v173 = vld [vmem:[%s1 + $0x1f0] sm:$0xf]
  %v174 = vld [vmem:[%s1 + $0x1f4] sm:$0xf]
  %v175 = vld [vmem:[%s1 + $0x1f8] sm:$0xf]
  %v176 = vld [vmem:[%s1 + $0x1fc] sm:$0xf]
  %v177 = vld [vmem:[%s1 + $0x200] sm:$0xf]
  %v178 = vld [vmem:[%s1 + $0x204] sm:$0xf]
  %v179 = vld [vmem:[%s1 + $0x208] sm:$0xf]
  %v180 = vld [vmem:[%s1 + $0x20c] sm:$0xf]
  %v181 = vld [vmem:[%s1 + $0x210] sm:$0xf]
  %v182 = vld [vmem:[%s1 + $0x214] sm:$0xf]
  %v183 = vld [vmem:[%s1 + $0x218] sm:$0xf]
  %v184 = vld [vmem:[%s1 + $0x21c] sm:$0xf]
  %v185 = vld [vmem:[%s1 + $0x220] sm:$0xf]
  %v186 = vld [vmem:[%s1 + $0x224] sm:$0xf]
  %v187 = vld [vmem:[%s1 + $0x228] sm:$0xf]
  %v188 = vld [vmem:[%s1 + $0x22c] sm:$0xf]
  %v189 = vld [vmem:[%s1 + $0x230] sm:$0xf]
  %v190 = vld [vmem:[%s1 + $0x234] sm:$0xf]
  %v191 = vld [vmem:[%s1 + $0x238] sm:$0xf]
  %v192 = vld [vmem:[%s1 + $0x23c] sm:$0xf]
  %v193 = vld [vmem:[%s1 + $0x240] sm:$0xf]
  %v194 = vld [vmem:[%s1 + $0x244] sm:$0xf]
  %v195 = vld [vmem:[%s1 + $0x248] sm:$0xf]
  %v196 = vld [vmem:[%s1 + $0x24c] sm:$0xf]
  %v197 = vld [vmem:[%s1 + $0x250] sm:$0xf]
  %v198 = vld [vmem:[%s1 + $0x254] sm:$0xf]
  %v199 = vld [vmem:[%s1 + $0x258] sm:$0xf]
  %v200 = vld [vmem:[%s1 + $0x25c] sm:$0xf]
  %v201 = vld [vmem:[%s1 + $0x260] sm:$0xf]
  %v202 = vld [vmem:[%s1 + $0x264] sm:$0xf]
  %v203 = vld [vmem:[%s1 + $0x268] sm:$0xf]
  %v204 = vld [vmem:[%s1 + $0x26c] sm:$0xf]
  %v205 = vld [vmem:[%s1 + $0x270] sm:$0xf]
  %v206 = vld [vmem:[%s1 + $0x274] sm:$0xf]
  %v207 = vld [vmem:[%s1 + $0x278] sm:$0xf]
  %v208 = vld [vmem:[%s1 + $0x27c] sm:$0xf]
  %v209 = vld [vmem:[%s1 + $0x280] sm:$0xf]
  %v210 = vld [vmem:[%s1 + $0x284] sm:$0xf]
  %v211 = vld [vmem:[%s1 + $0x288] sm:$0xf]
  %v212 = vld [vmem:[%s1 + $0x28c] sm:$0xf]
  %v213 = vld [vmem:[%s1 + $0x290] sm:$0xf]
  %v214 = vld [vmem:[%s1 + $0x294] sm:$0xf]
  %v215 = vld [vmem:[%s1 + $0x298] sm:$0xf]
  %v216 = vld [vmem:[%s1 + $0x29c] sm:$0xf]
  %v217 = vld [vmem:[%s1 + $0x2a0] sm:$0xf]
  %v218 = vld [vmem:[%s1 + $0x2a4] sm:$0xf]
  %v219 = vld [vmem:[%s1 + $0x2a8] sm:$0xf]
  %v220 = vld [vmem:[%s1 + $0x2ac] sm:$0xf]
  %v221 = vld [vmem:[%s1 + $0x2b0] sm:$0xf]
  %v222 = vld [vmem:[%s1 + $0x2b4] sm:$0xf]
  %v223 = vld [vmem:[%s1 + $0x2b8] sm:$0xf]
  %v224 = vld [vmem:[%s1 + $0x2bc] sm:$0xf]
  %v225 = vld [vmem:[%s1 + $0x2c0] sm:$0xf]
  %v226 = vld [vmem:[%s1 + $0x2c4] sm:$0xf]
  %v227 = vld [vmem:[%s1 + $0x2c8] sm:$0xf]
  %v228 = vld [vmem:[%s1 + $0x2cc] sm:$0xf]
  %v229 = vld [vmem:[%s1 + $0x2d0] sm:$0xf]
  %v230 = vld [vmem:[%s1 + $0x2d4] sm:$0xf]
  %v231 = vld [vmem:[%s1 + $0x2d8] sm:$0xf]
  %v232 = vld [vmem:[%s1 + $0x2dc] sm:$0xf]
  %v233 = vld [vmem:[%s1 + $0x2e0] sm:$0xf]
  %v234 = vld [vmem:[%s1 + $0x2e4] sm:$0xf]
  %v235 = vld [vmem:[%s1 + $0x2e8] sm:$0xf]
  %v236 = vld [vmem:[%s1 + $0x2ec] sm:$0xf]
  %v237 = vld [vmem:[%s1 + $0x2f0] sm:$0xf]
  %v238 = vld [vmem:[%s1 + $0x2f4] sm:$0xf]
  %v239 = vld [vmem:[%s1 + $0x2f8] sm:$0xf]
  %v240 = vld [vmem:[%s1 + $0x2fc] sm:$0xf]
  %v241 = vld [vmem:[%s1 + $0x300] sm:$0xf]
  %v242 = vld [vmem:[%s1 + $0x304] sm:$0xf]
  %v243 = vld [vmem:[%s1 + $0x308] sm:$0xf]
  %v244 = vld [vmem:[%s1 + $0x30c] sm:$0xf]
  %v245 = vld [vmem:[%s1 + $0x310] sm:$0xf]
  %v246 = vld [vmem:[%s1 + $0x314] sm:$0xf]
  %v247 = vld [vmem:[%s1 + $0x318] sm:$0xf]
  %v248 = vld [vmem:[%s1 + $0x31c] sm:$0xf]
  %v249 = vld [vmem:[%s1 + $0x320] sm:$0xf]
  %v250 = vld [vmem:[%s1 + $0x324] sm:$0xf]
  %v251 = vld [vmem:[%s1 + $0x328] sm:$0xf]
  %v252 = vld [vmem:[%s1 + $0x32c] sm:$0xf]
  %v253 = vld [vmem:[%s1 + $0x330] sm:$0xf]
  %v254 = vld [vmem:[%s1 + $0x334] sm:$0xf]
  %v255 = vld [vmem:[%s1 + $0x338] sm:$0xf]
  %v256 = vld [vmem:[%s1 + $0x33c] sm:$0xf]
  %v257 = vld [vmem:[%s1 + $0x340] sm:$0xf]
  %v258 = vld [vmem:[%s1 + $0x344] sm:$0xf]
  %v259 = vld [vmem:[%s1 + $0x348] sm:$0xf]
  %v260 = vld [vmem:[%s1 + $0x34c] sm:$0xf]
  %v261 = vld [vmem:[%s1 + $0x350] sm:$0xf]
  %v262 = vld [vmem:[%s1 + $0x354] sm:$0xf]
  %v263 = vld [vmem:[%s1 + $0x358] sm:$0xf]
  %v264 = vld [vmem:[%s1 + $0x35c] sm:$0xf]
  %v265 = vld [vmem:[%s1 + $0x360] sm:$0xf]
  %v266 = vld [vmem:[%s1 + $0x364] sm:$0xf]
  %v267 = vld [vmem:[%s1 + $0x368] sm:$0xf]
  %v268 = vld [vmem:[%s1 + $0x36c] sm:$0xf]
  %v269 = vld [vmem:[%s1 + $0x370] sm:$0xf]
  %v270 = vld [vmem:[%s1 + $0x374] sm:$0xf]
  %v271 = vld [vmem:[%s1 + $0x378] sm:$0xf]
  %v272 = vld [vmem:[%s1 + $0x37c] sm:$0xf]
  %v273 = vld [vmem:[%s1 + $0x380] sm:$0xf]
  %v274 = vld [vmem:[%s1 + $0x384] sm:$0xf]
  %v275 = vld [vmem:[%s1 + $0x388] sm:$0xf]
  %v276 = vld [vmem:[%s1 + $0x38c] sm:$0xf]
  %v277 = vld [vmem:[%s1 + $0x390] sm:$0xf]
  %v278 = vld [vmem:[%s1 + $0x394] sm:$0xf]
  %v279 = vld [vmem:[%s1 + $0x398] sm:$0xf]
  %v280 = vld [vmem:[%s1 + $0x39c] sm:$0xf]
  %v281 = vld [vmem:[%s1 + $0x3a0] sm:$0xf]
  %v282 = vld [vmem:[%s1 + $0x3a4] sm:$0xf]
  %v283 = vld [vmem:[%s1 + $0x3a8] sm:$0xf]
  %v284 = vld [vmem:[%s1 + $0x3ac] sm:$0xf]
  %v285 = vld [vmem:[%s1 + $0x3b0] sm:$0xf]
  %v286 = vld [vmem:[%s1 + $0x3b4] sm:$0xf]
  %v287 = vld [vmem:[%s1 + $0x3b8] sm:$0xf]
  %v288 = vld [vmem:[%s1 + $0x3bc] sm:$0xf]
  %v289 = vld [vmem:[%s1 + $0x3c0] sm:$0xf]
  %v290 = vld [vmem:[%s1 + $0x3c4] sm:$0xf]
  %v291 = vld [vmem:[%s1 + $0x3c8] sm:$0xf]
  %v292 = vld [vmem:[%s1 + $0x3cc] sm:$0xf]
  %v293 = vld [vmem:[%s1 + $0x3d0] sm:$0xf]
  %v294 = vld [vmem:[%s1 + $0x3d4] sm:$0xf]
  %v295 = vld [vmem:[%s1 + $0x3d8] sm:$0xf]
  %v296 = vld [vmem:[%s1 + $0x3dc] sm:$0xf]
  %v297 = vld [vmem:[%s1 + $0x3e0] sm:$0xf]
  %v298 = vld [vmem:[%s1 + $0x3e4] sm:$0xf]
  %v299 = vld [vmem:[%s1 + $0x3e8] sm:$0xf]
  %v300 = vld [vmem:[%s1 + $0x3ec] sm:$0xf]
  %v301 = vld [vmem:[%s1 + $0x3f0] sm:$0xf]
  %v302 = vld [vmem:[%s1 + $0x3f4] sm:$0xf]
  %v303 = vld [vmem:[%s1 + $0x3f8] sm:$0xf]
  %v304 = vld [vmem:[%s1 + $0x3fc] sm:$0xf]
  %v305 = vld [vmem:[%s2] sm:$0x1]
  %v307 = vperm.slane %v305, 0
  %v341 = vunpack.c.l.b16 %v17
  %v342 = vunpack.c.h.b16 %v17
  %v343 = vunpack.c.l.b16 %v18
  %v344 = vunpack.c.h.b16 %v18
  %v345 = vunpack.c.l.b16 %v19
  %v346 = vunpack.c.h.b16 %v19
  %v347 = vunpack.c.l.b16 %v20
  %v348 = vunpack.c.h.b16 %v20
  %v349 = vunpack.c.l.b16 %v21
  %v350 = vunpack.c.h.b16 %v21
  %v351 = vunpack.c.l.b16 %v22
  %v352 = vunpack.c.h.b16 %v22
  %v353 = vunpack.c.l.b16 %v23
  %v354 = vunpack.c.h.b16 %v23
  %v355 = vunpack.c.l.b16 %v24
  %v356 = vunpack.c.h.b16 %v24
  %v357 = vunpack.c.l.b16 %v25
  %v358 = vunpack.c.h.b16 %v25
  %v359 = vunpack.c.l.b16 %v26
  %v360 = vunpack.c.h.b16 %v26
  %v361 = vunpack.c.l.b16 %v27
  %v362 = vunpack.c.h.b16 %v27
  %v363 = vunpack.c.l.b16 %v28
  %v364 = vunpack.c.h.b16 %v28
  %v365 = vunpack.c.l.b16 %v29
  %v366 = vunpack.c.h.b16 %v29
  %v367 = vunpack.c.l.b16 %v30
  %v368 = vunpack.c.h.b16 %v30
  %v369 = vunpack.c.l.b16 %v31
  %v370 = vunpack.c.h.b16 %v31
  %v371 = vunpack.c.l.b16 %v32
  %v372 = vunpack.c.h.b16 %v32
  %v373 = vunpack.c.l.b16 %v33
  %v374 = vunpack.c.h.b16 %v33
  %v375 = vunpack.c.l.b16 %v34
  %v376 = vunpack.c.h.b16 %v34
  %v377 = vunpack.c.l.b16 %v35
  %v378 = vunpack.c.h.b16 %v35
  %v379 = vunpack.c.l.b16 %v36
  %v380 = vunpack.c.h.b16 %v36
  %v381 = vunpack.c.l.b16 %v37
  %v382 = vunpack.c.h.b16 %v37
  %v383 = vunpack.c.l.b16 %v38
  %v384 = vunpack.c.h.b16 %v38
  %v385 = vunpack.c.l.b16 %v39
  %v386 = vunpack.c.h.b16 %v39
  %v387 = vunpack.c.l.b16 %v40
  %v388 = vunpack.c.h.b16 %v40
  %v389 = vunpack.c.l.b16 %v41
  %v390 = vunpack.c.h.b16 %v41
  %v391 = vunpack.c.l.b16 %v42
  %v392 = vunpack.c.h.b16 %v42
  %v393 = vunpack.c.l.b16 %v43
  %v394 = vunpack.c.h.b16 %v43
  %v395 = vunpack.c.l.b16 %v44
  %v396 = vunpack.c.h.b16 %v44
  %v397 = vunpack.c.l.b16 %v45
  %v398 = vunpack.c.h.b16 %v45
  %v399 = vunpack.c.l.b16 %v46
  %v400 = vunpack.c.h.b16 %v46
  %v401 = vunpack.c.l.b16 %v47
  %v402 = vunpack.c.h.b16 %v47
  %v403 = vunpack.c.l.b16 %v48
  %v404 = vunpack.c.h.b16 %v48
  %v405 = vpack.c.b16 %v357, %v341
  %v406 = vpack.c.b16 %v358, %v342
  %v407 = vpack.c.b16 %v359, %v343
  %v408 = vpack.c.b16 %v360, %v344
  %v409 = vpack.c.b16 %v361, %v345
  %v410 = vpack.c.b16 %v362, %v346
  %v411 = vpack.c.b16 %v363, %v347
  %v412 = vpack.c.b16 %v364, %v348
  %v413 = vpack.c.b16 %v365, %v349
  %v414 = vpack.c.b16 %v366, %v350
  %v415 = vpack.c.b16 %v367, %v351
  %v416 = vpack.c.b16 %v368, %v352
  %v417 = vpack.c.b16 %v369, %v353
  %v418 = vpack.c.b16 %v370, %v354
  %v419 = vpack.c.b16 %v371, %v355
  %v420 = vpack.c.b16 %v372, %v356
  %v421 = vpack.c.b16 %v389, %v373
  %v422 = vpack.c.b16 %v390, %v374
  %v423 = vpack.c.b16 %v391, %v375
  %v424 = vpack.c.b16 %v392, %v376
  %v425 = vpack.c.b16 %v393, %v377
  %v426 = vpack.c.b16 %v394, %v378
  %v427 = vpack.c.b16 %v395, %v379
  %v428 = vpack.c.b16 %v396, %v380
  %v429 = vpack.c.b16 %v397, %v381
  %v430 = vpack.c.b16 %v398, %v382
  %v431 = vpack.c.b16 %v399, %v383
  %v432 = vpack.c.b16 %v400, %v384
  %v433 = vpack.c.b16 %v401, %v385
  %v434 = vpack.c.b16 %v402, %v386
  %v435 = vpack.c.b16 %v403, %v387
  %v436 = vpack.c.b16 %v404, %v388
  %v725 = vunpack.c.l.b16 %v49
  %v726 = vunpack.c.l.b16 %v50
  %v727 = vunpack.c.l.b16 %v51
  %v728 = vunpack.c.l.b16 %v52
  %v729 = vunpack.c.l.b16 %v53
  %v730 = vunpack.c.l.b16 %v54
  %v731 = vunpack.c.l.b16 %v55
  %v732 = vunpack.c.l.b16 %v56
  %v733 = vunpack.c.l.b16 %v57
  %v734 = vunpack.c.l.b16 %v58
  %v735 = vunpack.c.l.b16 %v59
  %v736 = vunpack.c.l.b16 %v60
  %v737 = vunpack.c.l.b16 %v61
  %v738 = vunpack.c.l.b16 %v62
  %v739 = vunpack.c.l.b16 %v63
  %v740 = vunpack.c.l.b16 %v64
  %v741 = vunpack.c.l.b16 %v65
  %v742 = vunpack.c.l.b16 %v66
  %v743 = vunpack.c.l.b16 %v67
  %v744 = vunpack.c.l.b16 %v68
  %v745 = vunpack.c.l.b16 %v69
  %v746 = vunpack.c.l.b16 %v70
  %v747 = vunpack.c.l.b16 %v71
  %v748 = vunpack.c.l.b16 %v72
  %v749 = vunpack.c.l.b16 %v73
  %v750 = vunpack.c.l.b16 %v74
  %v751 = vunpack.c.l.b16 %v75
  %v752 = vunpack.c.l.b16 %v76
  %v753 = vunpack.c.l.b16 %v77
  %v754 = vunpack.c.l.b16 %v78
  %v755 = vunpack.c.l.b16 %v79
  %v756 = vunpack.c.l.b16 %v80
  %v757 = vunpack.c.l.b16 %v81
  %v758 = vunpack.c.l.b16 %v82
  %v759 = vunpack.c.l.b16 %v83
  %v760 = vunpack.c.l.b16 %v84
  %v761 = vunpack.c.l.b16 %v85
  %v762 = vunpack.c.l.b16 %v86
  %v763 = vunpack.c.l.b16 %v87
  %v764 = vunpack.c.l.b16 %v88
  %v765 = vunpack.c.l.b16 %v89
  %v766 = vunpack.c.l.b16 %v90
  %v767 = vunpack.c.l.b16 %v91
  %v768 = vunpack.c.l.b16 %v92
  %v769 = vunpack.c.l.b16 %v93
  %v770 = vunpack.c.l.b16 %v94
  %v771 = vunpack.c.l.b16 %v95
  %v772 = vunpack.c.l.b16 %v96
  %v773 = vunpack.c.l.b16 %v97
  %v774 = vunpack.c.l.b16 %v98
  %v775 = vunpack.c.l.b16 %v99
  %v776 = vunpack.c.l.b16 %v100
  %v777 = vunpack.c.l.b16 %v101
  %v778 = vunpack.c.l.b16 %v102
  %v779 = vunpack.c.l.b16 %v103
  %v780 = vunpack.c.l.b16 %v104
  %v781 = vunpack.c.l.b16 %v105
  %v782 = vunpack.c.l.b16 %v106
  %v783 = vunpack.c.l.b16 %v107
  %v784 = vunpack.c.l.b16 %v108
  %v785 = vunpack.c.l.b16 %v109
  %v786 = vunpack.c.l.b16 %v110
  %v787 = vunpack.c.l.b16 %v111
  %v788 = vunpack.c.l.b16 %v112
  %v789 = vunpack.c.l.b16 %v113
  %v790 = vunpack.c.l.b16 %v114
  %v791 = vunpack.c.l.b16 %v115
  %v792 = vunpack.c.l.b16 %v116
  %v793 = vunpack.c.l.b16 %v117
  %v794 = vunpack.c.l.b16 %v118
  %v795 = vunpack.c.l.b16 %v119
  %v796 = vunpack.c.l.b16 %v120
  %v797 = vunpack.c.l.b16 %v121
  %v798 = vunpack.c.l.b16 %v122
  %v799 = vunpack.c.l.b16 %v123
  %v800 = vunpack.c.l.b16 %v124
  %v801 = vunpack.c.l.b16 %v125
  %v802 = vunpack.c.l.b16 %v126
  %v803 = vunpack.c.l.b16 %v127
  %v804 = vunpack.c.l.b16 %v128
  %v805 = vunpack.c.l.b16 %v129
  %v806 = vunpack.c.l.b16 %v130
  %v807 = vunpack.c.l.b16 %v131
  %v808 = vunpack.c.l.b16 %v132
  %v809 = vunpack.c.l.b16 %v133
  %v810 = vunpack.c.l.b16 %v134
  %v811 = vunpack.c.l.b16 %v135
  %v812 = vunpack.c.l.b16 %v136
  %v813 = vunpack.c.l.b16 %v137
  %v814 = vunpack.c.l.b16 %v138
  %v815 = vunpack.c.l.b16 %v139
  %v816 = vunpack.c.l.b16 %v140
  %v817 = vunpack.c.l.b16 %v141
  %v818 = vunpack.c.l.b16 %v142
  %v819 = vunpack.c.l.b16 %v143
  %v820 = vunpack.c.l.b16 %v144
  %v821 = vunpack.c.l.b16 %v145
  %v822 = vunpack.c.l.b16 %v146
  %v823 = vunpack.c.l.b16 %v147
  %v824 = vunpack.c.l.b16 %v148
  %v825 = vunpack.c.l.b16 %v149
  %v826 = vunpack.c.l.b16 %v150
  %v827 = vunpack.c.l.b16 %v151
  %v828 = vunpack.c.l.b16 %v152
  %v829 = vunpack.c.l.b16 %v153
  %v830 = vunpack.c.l.b16 %v154
  %v831 = vunpack.c.l.b16 %v155
  %v832 = vunpack.c.l.b16 %v156
  %v833 = vunpack.c.l.b16 %v157
  %v834 = vunpack.c.l.b16 %v158
  %v835 = vunpack.c.l.b16 %v159
  %v836 = vunpack.c.l.b16 %v160
  %v837 = vunpack.c.l.b16 %v161
  %v838 = vunpack.c.l.b16 %v162
  %v839 = vunpack.c.l.b16 %v163
  %v840 = vunpack.c.l.b16 %v164
  %v841 = vunpack.c.l.b16 %v165
  %v842 = vunpack.c.l.b16 %v166
  %v843 = vunpack.c.l.b16 %v167
  %v844 = vunpack.c.l.b16 %v168
  %v845 = vunpack.c.l.b16 %v169
  %v846 = vunpack.c.l.b16 %v170
  %v847 = vunpack.c.l.b16 %v171
  %v848 = vunpack.c.l.b16 %v172
  %v849 = vunpack.c.l.b16 %v173
  %v850 = vunpack.c.l.b16 %v174
  %v851 = vunpack.c.l.b16 %v175
  %v852 = vunpack.c.l.b16 %v176
  %v853 = vunpack.c.l.b16 %v177
  %v854 = vunpack.c.l.b16 %v178
  %v855 = vunpack.c.l.b16 %v179
  %v856 = vunpack.c.l.b16 %v180
  %v857 = vunpack.c.l.b16 %v181
  %v858 = vunpack.c.l.b16 %v182
  %v859 = vunpack.c.l.b16 %v183
  %v860 = vunpack.c.l.b16 %v184
  %v861 = vunpack.c.l.b16 %v185
  %v862 = vunpack.c.l.b16 %v186
  %v863 = vunpack.c.l.b16 %v187
  %v864 = vunpack.c.l.b16 %v188
  %v865 = vunpack.c.l.b16 %v189
  %v866 = vunpack.c.l.b16 %v190
  %v867 = vunpack.c.l.b16 %v191
  %v868 = vunpack.c.l.b16 %v192
  %v869 = vunpack.c.l.b16 %v193
  %v870 = vunpack.c.l.b16 %v194
  %v871 = vunpack.c.l.b16 %v195
  %v872 = vunpack.c.l.b16 %v196
  %v873 = vunpack.c.l.b16 %v197
  %v874 = vunpack.c.l.b16 %v198
  %v875 = vunpack.c.l.b16 %v199
  %v876 = vunpack.c.l.b16 %v200
  %v877 = vunpack.c.l.b16 %v201
  %v878 = vunpack.c.l.b16 %v202
  %v879 = vunpack.c.l.b16 %v203
  %v880 = vunpack.c.l.b16 %v204
  %v881 = vunpack.c.l.b16 %v205
  %v882 = vunpack.c.l.b16 %v206
  %v883 = vunpack.c.l.b16 %v207
  %v884 = vunpack.c.l.b16 %v208
  %v885 = vunpack.c.l.b16 %v209
  %v886 = vunpack.c.l.b16 %v210
  %v887 = vunpack.c.l.b16 %v211
  %v888 = vunpack.c.l.b16 %v212
  %v889 = vunpack.c.l.b16 %v213
  %v890 = vunpack.c.l.b16 %v214
  %v891 = vunpack.c.l.b16 %v215
  %v892 = vunpack.c.l.b16 %v216
  %v893 = vunpack.c.l.b16 %v217
  %v894 = vunpack.c.l.b16 %v218
  %v895 = vunpack.c.l.b16 %v219
  %v896 = vunpack.c.l.b16 %v220
  %v897 = vunpack.c.l.b16 %v221
  %v898 = vunpack.c.l.b16 %v222
  %v899 = vunpack.c.l.b16 %v223
  %v900 = vunpack.c.l.b16 %v224
  %v901 = vunpack.c.l.b16 %v225
  %v902 = vunpack.c.l.b16 %v226
  %v903 = vunpack.c.l.b16 %v227
  %v904 = vunpack.c.l.b16 %v228
  %v905 = vunpack.c.l.b16 %v229
  %v906 = vunpack.c.l.b16 %v230
  %v907 = vunpack.c.l.b16 %v231
  %v908 = vunpack.c.l.b16 %v232
  %v909 = vunpack.c.l.b16 %v233
  %v910 = vunpack.c.l.b16 %v234
  %v911 = vunpack.c.l.b16 %v235
  %v912 = vunpack.c.l.b16 %v236
  %v913 = vunpack.c.l.b16 %v237
  %v914 = vunpack.c.l.b16 %v238
  %v915 = vunpack.c.l.b16 %v239
  %v916 = vunpack.c.l.b16 %v240
  %v917 = vunpack.c.l.b16 %v241
  %v918 = vunpack.c.l.b16 %v242
  %v919 = vunpack.c.l.b16 %v243
  %v920 = vunpack.c.l.b16 %v244
  %v921 = vunpack.c.l.b16 %v245
  %v922 = vunpack.c.l.b16 %v246
  %v923 = vunpack.c.l.b16 %v247
  %v924 = vunpack.c.l.b16 %v248
  %v925 = vunpack.c.l.b16 %v249
  %v926 = vunpack.c.l.b16 %v250
  %v927 = vunpack.c.l.b16 %v251
  %v928 = vunpack.c.l.b16 %v252
  %v929 = vunpack.c.l.b16 %v253
  %v930 = vunpack.c.l.b16 %v254
  %v931 = vunpack.c.l.b16 %v255
  %v932 = vunpack.c.l.b16 %v256
  %v933 = vunpack.c.l.b16 %v257
  %v934 = vunpack.c.l.b16 %v258
  %v935 = vunpack.c.l.b16 %v259
  %v936 = vunpack.c.l.b16 %v260
  %v937 = vunpack.c.l.b16 %v261
  %v938 = vunpack.c.l.b16 %v262
  %v939 = vunpack.c.l.b16 %v263
  %v940 = vunpack.c.l.b16 %v264
  %v941 = vunpack.c.l.b16 %v265
  %v942 = vunpack.c.l.b16 %v266
  %v943 = vunpack.c.l.b16 %v267
  %v944 = vunpack.c.l.b16 %v268
  %v945 = vunpack.c.l.b16 %v269
  %v946 = vunpack.c.l.b16 %v270
  %v947 = vunpack.c.l.b16 %v271
  %v948 = vunpack.c.l.b16 %v272
  %v949 = vunpack.c.l.b16 %v273
  %v950 = vunpack.c.l.b16 %v274
  %v951 = vunpack.c.l.b16 %v275
  %v952 = vunpack.c.l.b16 %v276
  %v953 = vunpack.c.l.b16 %v277
  %v954 = vunpack.c.l.b16 %v278
  %v955 = vunpack.c.l.b16 %v279
  %v956 = vunpack.c.l.b16 %v280
  %v957 = vunpack.c.l.b16 %v281
  %v958 = vunpack.c.l.b16 %v282
  %v959 = vunpack.c.l.b16 %v283
  %v960 = vunpack.c.l.b16 %v284
  %v961 = vunpack.c.l.b16 %v285
  %v962 = vunpack.c.l.b16 %v286
  %v963 = vunpack.c.l.b16 %v287
  %v964 = vunpack.c.l.b16 %v288
  %v965 = vunpack.c.l.b16 %v289
  %v966 = vunpack.c.l.b16 %v290
  %v967 = vunpack.c.l.b16 %v291
  %v968 = vunpack.c.l.b16 %v292
  %v969 = vunpack.c.l.b16 %v293
  %v970 = vunpack.c.l.b16 %v294
  %v971 = vunpack.c.l.b16 %v295
  %v972 = vunpack.c.l.b16 %v296
  %v973 = vunpack.c.l.b16 %v297
  %v974 = vunpack.c.l.b16 %v298
  %v975 = vunpack.c.l.b16 %v299
  %v976 = vunpack.c.l.b16 %v300
  %v977 = vunpack.c.l.b16 %v301
  %v978 = vunpack.c.l.b16 %v302
  %v979 = vunpack.c.l.b16 %v303
  %v980 = vunpack.c.l.b16 %v304
  %v981 = vpack.c.b16 %v726, %v725
  %v982 = vpack.c.b16 %v728, %v727
  %v983 = vpack.c.b16 %v730, %v729
  %v984 = vpack.c.b16 %v732, %v731
  %v985 = vpack.c.b16 %v734, %v733
  %v986 = vpack.c.b16 %v736, %v735
  %v987 = vpack.c.b16 %v738, %v737
  %v988 = vpack.c.b16 %v740, %v739
  %v989 = vpack.c.b16 %v742, %v741
  %v990 = vpack.c.b16 %v744, %v743
  %v991 = vpack.c.b16 %v746, %v745
  %v992 = vpack.c.b16 %v748, %v747
  %v993 = vpack.c.b16 %v750, %v749
  %v994 = vpack.c.b16 %v752, %v751
  %v995 = vpack.c.b16 %v754, %v753
  %v996 = vpack.c.b16 %v756, %v755
  %v997 = vpack.c.b16 %v758, %v757
  %v998 = vpack.c.b16 %v760, %v759
  %v999 = vpack.c.b16 %v762, %v761
  %v1000 = vpack.c.b16 %v764, %v763
  %v1001 = vpack.c.b16 %v766, %v765
  %v1002 = vpack.c.b16 %v768, %v767
  %v1003 = vpack.c.b16 %v770, %v769
  %v1004 = vpack.c.b16 %v772, %v771
  %v1005 = vpack.c.b16 %v774, %v773
  %v1006 = vpack.c.b16 %v776, %v775
  %v1007 = vpack.c.b16 %v778, %v777
  %v1008 = vpack.c.b16 %v780, %v779
  %v1009 = vpack.c.b16 %v782, %v781
  %v1010 = vpack.c.b16 %v784, %v783
  %v1011 = vpack.c.b16 %v786, %v785
  %v1012 = vpack.c.b16 %v788, %v787
  %v1013 = vpack.c.b16 %v790, %v789
  %v1014 = vpack.c.b16 %v792, %v791
  %v1015 = vpack.c.b16 %v794, %v793
  %v1016 = vpack.c.b16 %v796, %v795
  %v1017 = vpack.c.b16 %v798, %v797
  %v1018 = vpack.c.b16 %v800, %v799
  %v1019 = vpack.c.b16 %v802, %v801
  %v1020 = vpack.c.b16 %v804, %v803
  %v1021 = vpack.c.b16 %v806, %v805
  %v1022 = vpack.c.b16 %v808, %v807
  %v1023 = vpack.c.b16 %v810, %v809
  %v1024 = vpack.c.b16 %v812, %v811
  %v1025 = vpack.c.b16 %v814, %v813
  %v1026 = vpack.c.b16 %v816, %v815
  %v1027 = vpack.c.b16 %v818, %v817
  %v1028 = vpack.c.b16 %v820, %v819
  %v1029 = vpack.c.b16 %v822, %v821
  %v1030 = vpack.c.b16 %v824, %v823
  %v1031 = vpack.c.b16 %v826, %v825
  %v1032 = vpack.c.b16 %v828, %v827
  %v1033 = vpack.c.b16 %v830, %v829
  %v1034 = vpack.c.b16 %v832, %v831
  %v1035 = vpack.c.b16 %v834, %v833
  %v1036 = vpack.c.b16 %v836, %v835
  %v1037 = vpack.c.b16 %v838, %v837
  %v1038 = vpack.c.b16 %v840, %v839
  %v1039 = vpack.c.b16 %v842, %v841
  %v1040 = vpack.c.b16 %v844, %v843
  %v1041 = vpack.c.b16 %v846, %v845
  %v1042 = vpack.c.b16 %v848, %v847
  %v1043 = vpack.c.b16 %v850, %v849
  %v1044 = vpack.c.b16 %v852, %v851
  %v1045 = vpack.c.b16 %v854, %v853
  %v1046 = vpack.c.b16 %v856, %v855
  %v1047 = vpack.c.b16 %v858, %v857
  %v1048 = vpack.c.b16 %v860, %v859
  %v1049 = vpack.c.b16 %v862, %v861
  %v1050 = vpack.c.b16 %v864, %v863
  %v1051 = vpack.c.b16 %v866, %v865
  %v1052 = vpack.c.b16 %v868, %v867
  %v1053 = vpack.c.b16 %v870, %v869
  %v1054 = vpack.c.b16 %v872, %v871
  %v1055 = vpack.c.b16 %v874, %v873
  %v1056 = vpack.c.b16 %v876, %v875
  %v1057 = vpack.c.b16 %v878, %v877
  %v1058 = vpack.c.b16 %v880, %v879
  %v1059 = vpack.c.b16 %v882, %v881
  %v1060 = vpack.c.b16 %v884, %v883
  %v1061 = vpack.c.b16 %v886, %v885
  %v1062 = vpack.c.b16 %v888, %v887
  %v1063 = vpack.c.b16 %v890, %v889
  %v1064 = vpack.c.b16 %v892, %v891
  %v1065 = vpack.c.b16 %v894, %v893
  %v1066 = vpack.c.b16 %v896, %v895
  %v1067 = vpack.c.b16 %v898, %v897
  %v1068 = vpack.c.b16 %v900, %v899
  %v1069 = vpack.c.b16 %v902, %v901
  %v1070 = vpack.c.b16 %v904, %v903
  %v1071 = vpack.c.b16 %v906, %v905
  %v1072 = vpack.c.b16 %v908, %v907
  %v1073 = vpack.c.b16 %v910, %v909
  %v1074 = vpack.c.b16 %v912, %v911
  %v1075 = vpack.c.b16 %v914, %v913
  %v1076 = vpack.c.b16 %v916, %v915
  %v1077 = vpack.c.b16 %v918, %v917
  %v1078 = vpack.c.b16 %v920, %v919
  %v1079 = vpack.c.b16 %v922, %v921
  %v1080 = vpack.c.b16 %v924, %v923
  %v1081 = vpack.c.b16 %v926, %v925
  %v1082 = vpack.c.b16 %v928, %v927
  %v1083 = vpack.c.b16 %v930, %v929
  %v1084 = vpack.c.b16 %v932, %v931
  %v1085 = vpack.c.b16 %v934, %v933
  %v1086 = vpack.c.b16 %v936, %v935
  %v1087 = vpack.c.b16 %v938, %v937
  %v1088 = vpack.c.b16 %v940, %v939
  %v1089 = vpack.c.b16 %v942, %v941
  %v1090 = vpack.c.b16 %v944, %v943
  %v1091 = vpack.c.b16 %v946, %v945
  %v1092 = vpack.c.b16 %v948, %v947
  %v1093 = vpack.c.b16 %v950, %v949
  %v1094 = vpack.c.b16 %v952, %v951
  %v1095 = vpack.c.b16 %v954, %v953
  %v1096 = vpack.c.b16 %v956, %v955
  %v1097 = vpack.c.b16 %v958, %v957
  %v1098 = vpack.c.b16 %v960, %v959
  %v1099 = vpack.c.b16 %v962, %v961
  %v1100 = vpack.c.b16 %v964, %v963
  %v1101 = vpack.c.b16 %v966, %v965
  %v1102 = vpack.c.b16 %v968, %v967
  %v1103 = vpack.c.b16 %v970, %v969
  %v1104 = vpack.c.b16 %v972, %v971
  %v1105 = vpack.c.b16 %v974, %v973
  %v1106 = vpack.c.b16 %v976, %v975
  %v1107 = vpack.c.b16 %v978, %v977
  %v1108 = vpack.c.b16 %v980, %v979
  %1237 = vmatpush.bf16.msra.mxu0 %v988
  %1238 = vmatpush.bf16.msra.mxu0 %v987
  %1239 = vmatpush.bf16.msra.mxu0 %v986
  %1240 = vmatpush.bf16.msra.mxu0 %v985
  %1241 = vmatpush.bf16.msra.mxu0 %v984
  %1242 = vmatpush.bf16.msra.mxu0 %v983
  %1243 = vmatpush.bf16.msra.mxu0 %v982
  %1244 = vmatpush.bf16.msra.mxu0 %v981
  %1245 = vmatmul.bf16.gmra.mxu0 %v405
  %v1246 = vpop.f32.mrf.mxu0
  %v1247 = vadd.f32 %v307, %v1246
  %v1248 = vpop.f32.mrf.mxu0
  %v1249 = vadd.f32 %v307, %v1248
  %1250 = vmatmul.bf16.gmra.mxu0 %v421
  %v1251 = vpop.f32.mrf.mxu0
  %v1252 = vadd.f32 %v307, %v1251
  %v1253 = vpop.f32.mrf.mxu0
  %v1254 = vadd.f32 %v307, %v1253
  %1255 = vdwg.mxu0
  %1256 = vmatpush.bf16.msra.mxu0 %v996
  %1257 = vmatpush.bf16.msra.mxu0 %v995
  %1258 = vmatpush.bf16.msra.mxu0 %v994
  %1259 = vmatpush.bf16.msra.mxu0 %v993
  %1260 = vmatpush.bf16.msra.mxu0 %v992
  %1261 = vmatpush.bf16.msra.mxu0 %v991
  %1262 = vmatpush.bf16.msra.mxu0 %v990
  %1263 = vmatpush.bf16.msra.mxu0 %v989
  %1264 = vmatmul.bf16.gmra.mxu0 %v406
  %v1265 = vpop.f32.mrf.mxu0
  %v1266 = vadd.f32 %v1247, %v1265
  %v1267 = vpop.f32.mrf.mxu0
  %v1268 = vadd.f32 %v1249, %v1267
  %1269 = vmatmul.bf16.gmra.mxu0 %v422
  %v1270 = vpop.f32.mrf.mxu0
  %v1271 = vadd.f32 %v1252, %v1270
  %v1272 = vpop.f32.mrf.mxu0
  %v1273 = vadd.f32 %v1254, %v1272
  %1274 = vdwg.mxu0
  %1275 = vmatpush.bf16.msra.mxu0 %v1004
  %1276 = vmatpush.bf16.msra.mxu0 %v1003
  %1277 = vmatpush.bf16.msra.mxu0 %v1002
  %1278 = vmatpush.bf16.msra.mxu0 %v1001
  %1279 = vmatpush.bf16.msra.mxu0 %v1000
  %1280 = vmatpush.bf16.msra.mxu0 %v999
  %1281 = vmatpush.bf16.msra.mxu0 %v998
  %1282 = vmatpush.bf16.msra.mxu0 %v997
  %1283 = vmatmul.bf16.gmra.mxu0 %v407
  %v1284 = vpop.f32.mrf.mxu0
  %v1285 = vadd.f32 %v1266, %v1284
  %v1286 = vpop.f32.mrf.mxu0
  %v1287 = vadd.f32 %v1268, %v1286
  %1288 = vmatmul.bf16.gmra.mxu0 %v423
  %v1289 = vpop.f32.mrf.mxu0
  %v1290 = vadd.f32 %v1271, %v1289
  %v1291 = vpop.f32.mrf.mxu0
  %v1292 = vadd.f32 %v1273, %v1291
  %1293 = vdwg.mxu0
  %1294 = vmatpush.bf16.msra.mxu0 %v1012
  %1295 = vmatpush.bf16.msra.mxu0 %v1011
  %1296 = vmatpush.bf16.msra.mxu0 %v1010
  %1297 = vmatpush.bf16.msra.mxu0 %v1009
  %1298 = vmatpush.bf16.msra.mxu0 %v1008
  %1299 = vmatpush.bf16.msra.mxu0 %v1007
  %1300 = vmatpush.bf16.msra.mxu0 %v1006
  %1301 = vmatpush.bf16.msra.mxu0 %v1005
  %1302 = vmatmul.bf16.gmra.mxu0 %v408
  %v1303 = vpop.f32.mrf.mxu0
  %v1304 = vadd.f32 %v1285, %v1303
  %v1305 = vpop.f32.mrf.mxu0
  %v1306 = vadd.f32 %v1287, %v1305
  %1307 = vmatmul.bf16.gmra.mxu0 %v424
  %v1308 = vpop.f32.mrf.mxu0
  %v1309 = vadd.f32 %v1290, %v1308
  %v1310 = vpop.f32.mrf.mxu0
  %v1311 = vadd.f32 %v1292, %v1310
  %1312 = vdwg.mxu0
  %1313 = vmatpush.bf16.msra.mxu0 %v1020
  %1314 = vmatpush.bf16.msra.mxu0 %v1019
  %1315 = vmatpush.bf16.msra.mxu0 %v1018
  %1316 = vmatpush.bf16.msra.mxu0 %v1017
  %1317 = vmatpush.bf16.msra.mxu0 %v1016
  %1318 = vmatpush.bf16.msra.mxu0 %v1015
  %1319 = vmatpush.bf16.msra.mxu0 %v1014
  %1320 = vmatpush.bf16.msra.mxu0 %v1013
  %1321 = vmatmul.bf16.gmra.mxu0 %v409
  %v1322 = vpop.f32.mrf.mxu0
  %v1323 = vadd.f32 %v1304, %v1322
  %v1324 = vpop.f32.mrf.mxu0
  %v1325 = vadd.f32 %v1306, %v1324
  %1326 = vmatmul.bf16.gmra.mxu0 %v425
  %v1327 = vpop.f32.mrf.mxu0
  %v1328 = vadd.f32 %v1309, %v1327
  %v1329 = vpop.f32.mrf.mxu0
  %v1330 = vadd.f32 %v1311, %v1329
  %1331 = vdwg.mxu0
  %1332 = vmatpush.bf16.msra.mxu0 %v1028
  %1333 = vmatpush.bf16.msra.mxu0 %v1027
  %1334 = vmatpush.bf16.msra.mxu0 %v1026
  %1335 = vmatpush.bf16.msra.mxu0 %v1025
  %1336 = vmatpush.bf16.msra.mxu0 %v1024
  %1337 = vmatpush.bf16.msra.mxu0 %v1023
  %1338 = vmatpush.bf16.msra.mxu0 %v1022
  %1339 = vmatpush.bf16.msra.mxu0 %v1021
  %1340 = vmatmul.bf16.gmra.mxu0 %v410
  %v1341 = vpop.f32.mrf.mxu0
  %v1342 = vadd.f32 %v1323, %v1341
  %v1343 = vpop.f32.mrf.mxu0
  %v1344 = vadd.f32 %v1325, %v1343
  %1345 = vmatmul.bf16.gmra.mxu0 %v426
  %v1346 = vpop.f32.mrf.mxu0
  %v1347 = vadd.f32 %v1328, %v1346
  %v1348 = vpop.f32.mrf.mxu0
  %v1349 = vadd.f32 %v1330, %v1348
  %1350 = vdwg.mxu0
  %1351 = vmatpush.bf16.msra.mxu0 %v1036
  %1352 = vmatpush.bf16.msra.mxu0 %v1035
  %1353 = vmatpush.bf16.msra.mxu0 %v1034
  %1354 = vmatpush.bf16.msra.mxu0 %v1033
  %1355 = vmatpush.bf16.msra.mxu0 %v1032
  %1356 = vmatpush.bf16.msra.mxu0 %v1031
  %1357 = vmatpush.bf16.msra.mxu0 %v1030
  %1358 = vmatpush.bf16.msra.mxu0 %v1029
  %1359 = vmatmul.bf16.gmra.mxu0 %v411
  %v1360 = vpop.f32.mrf.mxu0
  %v1361 = vadd.f32 %v1342, %v1360
  %v1362 = vpop.f32.mrf.mxu0
  %v1363 = vadd.f32 %v1344, %v1362
  %1364 = vmatmul.bf16.gmra.mxu0 %v427
  %v1365 = vpop.f32.mrf.mxu0
  %v1366 = vadd.f32 %v1347, %v1365
  %v1367 = vpop.f32.mrf.mxu0
  %v1368 = vadd.f32 %v1349, %v1367
  %1369 = vdwg.mxu0
  %1370 = vmatpush.bf16.msra.mxu0 %v1044
  %1371 = vmatpush.bf16.msra.mxu0 %v1043
  %1372 = vmatpush.bf16.msra.mxu0 %v1042
  %1373 = vmatpush.bf16.msra.mxu0 %v1041
  %1374 = vmatpush.bf16.msra.mxu0 %v1040
  %1375 = vmatpush.bf16.msra.mxu0 %v1039
  %1376 = vmatpush.bf16.msra.mxu0 %v1038
  %1377 = vmatpush.bf16.msra.mxu0 %v1037
  %1378 = vmatmul.bf16.gmra.mxu0 %v412
  %v1379 = vpop.f32.mrf.mxu0
  %v1380 = vadd.f32 %v1361, %v1379
  %v1381 = vpop.f32.mrf.mxu0
  %v1382 = vadd.f32 %v1363, %v1381
  %1383 = vmatmul.bf16.gmra.mxu0 %v428
  %v1384 = vpop.f32.mrf.mxu0
  %v1385 = vadd.f32 %v1366, %v1384
  %v1386 = vpop.f32.mrf.mxu0
  %v1387 = vadd.f32 %v1368, %v1386
  %1388 = vdwg.mxu0
  %1389 = vmatpush.bf16.msra.mxu0 %v1052
  %1390 = vmatpush.bf16.msra.mxu0 %v1051
  %1391 = vmatpush.bf16.msra.mxu0 %v1050
  %1392 = vmatpush.bf16.msra.mxu0 %v1049
  %1393 = vmatpush.bf16.msra.mxu0 %v1048
  %1394 = vmatpush.bf16.msra.mxu0 %v1047
  %1395 = vmatpush.bf16.msra.mxu0 %v1046
  %1396 = vmatpush.bf16.msra.mxu0 %v1045
  %1397 = vmatmul.bf16.gmra.mxu0 %v413
  %v1398 = vpop.f32.mrf.mxu0
  %v1399 = vadd.f32 %v1380, %v1398
  %v1400 = vpop.f32.mrf.mxu0
  %v1401 = vadd.f32 %v1382, %v1400
  %1402 = vmatmul.bf16.gmra.mxu0 %v429
  %v1403 = vpop.f32.mrf.mxu0
  %v1404 = vadd.f32 %v1385, %v1403
  %v1405 = vpop.f32.mrf.mxu0
  %v1406 = vadd.f32 %v1387, %v1405
  %1407 = vdwg.mxu0
  %1408 = vmatpush.bf16.msra.mxu0 %v1060
  %1409 = vmatpush.bf16.msra.mxu0 %v1059
  %1410 = vmatpush.bf16.msra.mxu0 %v1058
  %1411 = vmatpush.bf16.msra.mxu0 %v1057
  %1412 = vmatpush.bf16.msra.mxu0 %v1056
  %1413 = vmatpush.bf16.msra.mxu0 %v1055
  %1414 = vmatpush.bf16.msra.mxu0 %v1054
  %1415 = vmatpush.bf16.msra.mxu0 %v1053
  %1416 = vmatmul.bf16.gmra.mxu0 %v414
  %v1417 = vpop.f32.mrf.mxu0
  %v1418 = vadd.f32 %v1399, %v1417
  %v1419 = vpop.f32.mrf.mxu0
  %v1420 = vadd.f32 %v1401, %v1419
  %1421 = vmatmul.bf16.gmra.mxu0 %v430
  %v1422 = vpop.f32.mrf.mxu0
  %v1423 = vadd.f32 %v1404, %v1422
  %v1424 = vpop.f32.mrf.mxu0
  %v1425 = vadd.f32 %v1406, %v1424
  %1426 = vdwg.mxu0
  %1427 = vmatpush.bf16.msra.mxu0 %v1068
  %1428 = vmatpush.bf16.msra.mxu0 %v1067
  %1429 = vmatpush.bf16.msra.mxu0 %v1066
  %1430 = vmatpush.bf16.msra.mxu0 %v1065
  %1431 = vmatpush.bf16.msra.mxu0 %v1064
  %1432 = vmatpush.bf16.msra.mxu0 %v1063
  %1433 = vmatpush.bf16.msra.mxu0 %v1062
  %1434 = vmatpush.bf16.msra.mxu0 %v1061
  %1435 = vmatmul.bf16.gmra.mxu0 %v415
  %v1436 = vpop.f32.mrf.mxu0
  %v1437 = vadd.f32 %v1418, %v1436
  %v1438 = vpop.f32.mrf.mxu0
  %v1439 = vadd.f32 %v1420, %v1438
  %1440 = vmatmul.bf16.gmra.mxu0 %v431
  %v1441 = vpop.f32.mrf.mxu0
  %v1442 = vadd.f32 %v1423, %v1441
  %v1443 = vpop.f32.mrf.mxu0
  %v1444 = vadd.f32 %v1425, %v1443
  %1445 = vdwg.mxu0
  %1446 = vmatpush.bf16.msra.mxu0 %v1076
  %1447 = vmatpush.bf16.msra.mxu0 %v1075
  %1448 = vmatpush.bf16.msra.mxu0 %v1074
  %1449 = vmatpush.bf16.msra.mxu0 %v1073
  %1450 = vmatpush.bf16.msra.mxu0 %v1072
  %1451 = vmatpush.bf16.msra.mxu0 %v1071
  %1452 = vmatpush.bf16.msra.mxu0 %v1070
  %1453 = vmatpush.bf16.msra.mxu0 %v1069
  %1454 = vmatmul.bf16.gmra.mxu0 %v416
  %v1455 = vpop.f32.mrf.mxu0
  %v1456 = vadd.f32 %v1437, %v1455
  %v1457 = vpop.f32.mrf.mxu0
  %v1458 = vadd.f32 %v1439, %v1457
  %1459 = vmatmul.bf16.gmra.mxu0 %v432
  %v1460 = vpop.f32.mrf.mxu0
  %v1461 = vadd.f32 %v1442, %v1460
  %v1462 = vpop.f32.mrf.mxu0
  %v1463 = vadd.f32 %v1444, %v1462
  %1464 = vdwg.mxu0
  %1465 = vmatpush.bf16.msra.mxu0 %v1084
  %1466 = vmatpush.bf16.msra.mxu0 %v1083
  %1467 = vmatpush.bf16.msra.mxu0 %v1082
  %1468 = vmatpush.bf16.msra.mxu0 %v1081
  %1469 = vmatpush.bf16.msra.mxu0 %v1080
  %1470 = vmatpush.bf16.msra.mxu0 %v1079
  %1471 = vmatpush.bf16.msra.mxu0 %v1078
  %1472 = vmatpush.bf16.msra.mxu0 %v1077
  %1473 = vmatmul.bf16.gmra.mxu0 %v417
  %v1474 = vpop.f32.mrf.mxu0
  %v1475 = vadd.f32 %v1456, %v1474
  %v1476 = vpop.f32.mrf.mxu0
  %v1477 = vadd.f32 %v1458, %v1476
  %1478 = vmatmul.bf16.gmra.mxu0 %v433
  %v1479 = vpop.f32.mrf.mxu0
  %v1480 = vadd.f32 %v1461, %v1479
  %v1481 = vpop.f32.mrf.mxu0
  %v1482 = vadd.f32 %v1463, %v1481
  %1483 = vdwg.mxu0
  %1484 = vmatpush.bf16.msra.mxu0 %v1092
  %1485 = vmatpush.bf16.msra.mxu0 %v1091
  %1486 = vmatpush.bf16.msra.mxu0 %v1090
  %1487 = vmatpush.bf16.msra.mxu0 %v1089
  %1488 = vmatpush.bf16.msra.mxu0 %v1088
  %1489 = vmatpush.bf16.msra.mxu0 %v1087
  %1490 = vmatpush.bf16.msra.mxu0 %v1086
  %1491 = vmatpush.bf16.msra.mxu0 %v1085
  %1492 = vmatmul.bf16.gmra.mxu0 %v418
  %v1493 = vpop.f32.mrf.mxu0
  %v1494 = vadd.f32 %v1475, %v1493
  %v1495 = vpop.f32.mrf.mxu0
  %v1496 = vadd.f32 %v1477, %v1495
  %1497 = vmatmul.bf16.gmra.mxu0 %v434
  %v1498 = vpop.f32.mrf.mxu0
  %v1499 = vadd.f32 %v1480, %v1498
  %v1500 = vpop.f32.mrf.mxu0
  %v1501 = vadd.f32 %v1482, %v1500
  %1502 = vdwg.mxu0
  %1503 = vmatpush.bf16.msra.mxu0 %v1100
  %1504 = vmatpush.bf16.msra.mxu0 %v1099
  %1505 = vmatpush.bf16.msra.mxu0 %v1098
  %1506 = vmatpush.bf16.msra.mxu0 %v1097
  %1507 = vmatpush.bf16.msra.mxu0 %v1096
  %1508 = vmatpush.bf16.msra.mxu0 %v1095
  %1509 = vmatpush.bf16.msra.mxu0 %v1094
  %1510 = vmatpush.bf16.msra.mxu0 %v1093
  %1511 = vmatmul.bf16.gmra.mxu0 %v419
  %v1512 = vpop.f32.mrf.mxu0
  %v1513 = vadd.f32 %v1494, %v1512
  %v1514 = vpop.f32.mrf.mxu0
  %v1515 = vadd.f32 %v1496, %v1514
  %1516 = vmatmul.bf16.gmra.mxu0 %v435
  %v1517 = vpop.f32.mrf.mxu0
  %v1518 = vadd.f32 %v1499, %v1517
  %v1519 = vpop.f32.mrf.mxu0
  %v1520 = vadd.f32 %v1501, %v1519
  %1521 = vdwg.mxu0
  %1522 = vmatpush.bf16.msra.mxu0 %v1108
  %1523 = vmatpush.bf16.msra.mxu0 %v1107
  %1524 = vmatpush.bf16.msra.mxu0 %v1106
  %1525 = vmatpush.bf16.msra.mxu0 %v1105
  %1526 = vmatpush.bf16.msra.mxu0 %v1104
  %1527 = vmatpush.bf16.msra.mxu0 %v1103
  %1528 = vmatpush.bf16.msra.mxu0 %v1102
  %1529 = vmatpush.bf16.msra.mxu0 %v1101
  %1530 = vmatmul.bf16.gmra.mxu0 %v420
  %v1531 = vpop.f32.mrf.mxu0
  %v1532 = vadd.f32 %v1513, %v1531
  %v1533 = vpop.f32.mrf.mxu0
  %v1534 = vadd.f32 %v1515, %v1533
  %1535 = vmatmul.bf16.gmra.mxu0 %v436
  %v1536 = vpop.f32.mrf.mxu0
  %v1537 = vadd.f32 %v1518, %v1536
  %v1538 = vpop.f32.mrf.mxu0
  %v1539 = vadd.f32 %v1520, %v1538
  %1540 = vdwg.mxu0
  %v1541 = vpack.c.bf16 %v1532, %v1532
  %v1542 = vpack.c.bf16 %v1534, %v1534
  %v1543 = vpack.c.bf16 %v1537, %v1537
  %v1544 = vpack.c.bf16 %v1539, %v1539
  %1545 = vst [vmem:[%s3] sm:$0xf] %v1541
  %1546 = vst [vmem:[%s3 + $0x4] sm:$0xf] %v1542
  %1547 = vst [vmem:[%s3 + $0x8] sm:$0xf] %v1543
  %1548 = vst [vmem:[%s3 + $0xc] sm:$0xf] %v1544
  %v1549 = vadd.f32 %v1532, %v1534
  %v1550 = vadd.f32 %v1549, %v1537
  %v1551 = vadd.f32 %v1550, %v1539
  %v1552 = vrot.slane %v1551, 4
  %v1553 = vadd.f32 %v1551, %v1552
  %v1554 = vrot.slane %v1553, 2
  %v1555 = vadd.f32 %v1553, %v1554
  %v1556 = vrot.slane %v1555, 1
  %v1557 = vadd.f32 %v1555, %v1556
  %1558 = vst [vmem:[%s4] sm:$0x1] %v1557
  %v1559 = vmul.f32 %v1532, %v1532
  %v1560 = vmul.f32 %v1534, %v1534
  %v1561 = vmul.f32 %v1537, %v1537
  %v1562 = vmul.f32 %v1539, %v1539
  %v1563 = vadd.f32 %v1559, %v1560
  %v1564 = vadd.f32 %v1563, %v1561
  %v1565 = vadd.f32 %v1564, %v1562
  %v1566 = vrot.slane %v1565, 4
  %v1567 = vadd.f32 %v1565, %v1566
  %v1568 = vrot.slane %v1567, 2
  %v1569 = vadd.f32 %v1567, %v1568
  %v1570 = vrot.slane %v1569, 1
  %v1571 = vadd.f32 %v1569, %v1570
  %1572 = vst [vmem:[%s5] sm:$0x1] %v1571
  // Predicated region
  $region14: #{_lambda_.11} parent=0 // pred_check
    _
  $region15: #{_lambda_.11} parent=0 // pred_check_branch
    %1574 = sbr.rel (0) target = $region17
  $region16: #{_lambda_.11} parent=0 // pred_region
    _
  $region17: #{_lambda_.11} parent=0 // pred_fallthru
    _
  // Predicated region
  $region18: #{_lambda_.11} parent=0 // pred_check
    _
  $region19: #{_lambda_.11} parent=0 // pred_check_branch
    %1576 = sbr.rel (0) target = $region21
  $region20: #{_lambda_.11} parent=0 // pred_region
    _
  $region21: #{_lambda_.11} parent=0 // pred_fallthru
    _
  // Predicated region
  $region22: #{_lambda_.11} parent=0 // pred_check
    _
  $region23: #{_lambda_.11} parent=0 // pred_check_branch
    %1578 = sbr.rel (0) target = $region25
  $region24: #{_lambda_.11} parent=0 // pred_region
    _
  $region25: #{_lambda_.11} parent=0 // pred_fallthru
    _
  // Predicated region
  $region26: #{_lambda_.11} parent=0 // pred_check
    _
  $region27: #{_lambda_.11} parent=0 // pred_check_branch
    %1580 = sbr.rel (0) target = $region29
  $region28: #{_lambda_.11} parent=0 // pred_region
    _
  $region29: #{_lambda_.11} parent=0 // pred_fallthru
    _
  // Predicated region
  $region30: #{_lambda_.11} parent=0 // pred_check
    _
  $region31: #{_lambda_.11} parent=0 // pred_check_branch
    %1582 = sbr.rel (0) target = $region33
  $region32: #{_lambda_.11} parent=0 // pred_region
    _
  $region33: #{_lambda_.11} parent=0 // pred_fallthru
    _
  // Predicated region
  $region34: #{_lambda_.11} parent=0 // pred_check
    _
  $region35: #{_lambda_.11} parent=0 // pred_check_branch
    %1584 = sbr.rel (0) target = $region37
  $region36: #{_lambda_.11} parent=0 // pred_region
    _
  $region37: #{_lambda_.11} parent=0 // pred_fallthru
    _

// kernel: _lambda_.15
$region0: #{_lambda_.15}
  #allocation0 [shape = 'u32[]', space=smem, size = 0x4, offset = 0x4, fixed_abs, tag = 'smem constant byte address 0x4 - core index']
  #allocation1 [shape = 'u32[72,128]{1,0:T(1,128)}', space=vmem, size = 0x9000, scoped, tag = 'internal scratch']
  %s0 = inlined_call_operand.vmem [shape: bf16[32,2048], index: 0, kind: input, shape index: {}]
  %s1 = inlined_call_operand.vmem [shape: bf16[2048,128], index: 1, kind: input, shape index: {}]
  %s2 = inlined_call_operand.vmem [shape: f32[1,128], index: 2, kind: input, shape index: {}]
  %s3 = inlined_call_operand.vmem [shape: f32[32,128], index: 3, kind: output, shape index: {}]
  %s4 = sld [smem:[#allocation0]]
  $region22: #{_lambda_.15} parent=0
    _
  %s6 = ssub.s32 1, %s4
  %s7 = scalar_select 0, %s6, %s4
  // Predicated region
  $region2: #{_lambda_.15} parent=0 // pred_check
    _
  $region3: #{_lambda_.15} parent=0 // pred_check_branch
    %9 = sbr.rel (0) target = $region5
  $region4: #{_lambda_.15} parent=0 // pred_region
    _
  $region5: #{_lambda_.15} parent=0 // pred_fallthru
    _
  // Predicated region
  $region6: #{_lambda_.15} parent=0 // pred_check
    _
  $region7: #{_lambda_.15} parent=0 // pred_check_branch
    %11 = sbr.rel (0) target = $region9
  $region8: #{_lambda_.15} parent=0 // pred_region
    _
  $region9: #{_lambda_.15} parent=0 // pred_fallthru
    _
  // Predicated region
  $region10: #{_lambda_.15} parent=0 // pred_check
    _
  $region11: #{_lambda_.15} parent=0 // pred_check_branch
    %13 = sbr.rel (0) target = $region13
  $region12: #{_lambda_.15} parent=0 // pred_region
    _
  $region13: #{_lambda_.15} parent=0 // pred_fallthru
    _
  %v14 = vld [vmem:[%s0] sm:$0xff]
  %v15 = vld [vmem:[%s0 + $0x8] sm:$0xff]
  %v16 = vld [vmem:[%s0 + $0x10] sm:$0xff]
  %v17 = vld [vmem:[%s0 + $0x18] sm:$0xff]
  %v18 = vld [vmem:[%s0 + $0x20] sm:$0xff]
  %v19 = vld [vmem:[%s0 + $0x28] sm:$0xff]
  %v20 = vld [vmem:[%s0 + $0x30] sm:$0xff]
  %v21 = vld [vmem:[%s0 + $0x38] sm:$0xff]
  %v22 = vld [vmem:[%s0 + $0x40] sm:$0xff]
  %v23 = vld [vmem:[%s0 + $0x48] sm:$0xff]
  %v24 = vld [vmem:[%s0 + $0x50] sm:$0xff]
  %v25 = vld [vmem:[%s0 + $0x58] sm:$0xff]
  %v26 = vld [vmem:[%s0 + $0x60] sm:$0xff]
  %v27 = vld [vmem:[%s0 + $0x68] sm:$0xff]
  %v28 = vld [vmem:[%s0 + $0x70] sm:$0xff]
  %v29 = vld [vmem:[%s0 + $0x78] sm:$0xff]
  %v30 = vld [vmem:[%s0 + $0x80] sm:$0xff]
  %v31 = vld [vmem:[%s0 + $0x88] sm:$0xff]
  %v32 = vld [vmem:[%s0 + $0x90] sm:$0xff]
  %v33 = vld [vmem:[%s0 + $0x98] sm:$0xff]
  %v34 = vld [vmem:[%s0 + $0xa0] sm:$0xff]
  %v35 = vld [vmem:[%s0 + $0xa8] sm:$0xff]
  %v36 = vld [vmem:[%s0 + $0xb0] sm:$0xff]
  %v37 = vld [vmem:[%s0 + $0xb8] sm:$0xff]
  %v38 = vld [vmem:[%s0 + $0xc0] sm:$0xff]
  %v39 = vld [vmem:[%s0 + $0xc8] sm:$0xff]
  %v40 = vld [vmem:[%s0 + $0xd0] sm:$0xff]
  %v41 = vld [vmem:[%s0 + $0xd8] sm:$0xff]
  %v42 = vld [vmem:[%s0 + $0xe0] sm:$0xff]
  %v43 = vld [vmem:[%s0 + $0xe8] sm:$0xff]
  %v44 = vld [vmem:[%s0 + $0xf0] sm:$0xff]
  %v45 = vld [vmem:[%s0 + $0xf8] sm:$0xff]
  %v46 = vld [vmem:[%s1] sm:$0xf]
  %v47 = vld [vmem:[%s1 + $0x4] sm:$0xf]
  %v48 = vld [vmem:[%s1 + $0x8] sm:$0xf]
  %v49 = vld [vmem:[%s1 + $0xc] sm:$0xf]
  %v50 = vld [vmem:[%s1 + $0x10] sm:$0xf]
  %v51 = vld [vmem:[%s1 + $0x14] sm:$0xf]
  %v52 = vld [vmem:[%s1 + $0x18] sm:$0xf]
  %v53 = vld [vmem:[%s1 + $0x1c] sm:$0xf]
  %v54 = vld [vmem:[%s1 + $0x20] sm:$0xf]
  %v55 = vld [vmem:[%s1 + $0x24] sm:$0xf]
  %v56 = vld [vmem:[%s1 + $0x28] sm:$0xf]
  %v57 = vld [vmem:[%s1 + $0x2c] sm:$0xf]
  %v58 = vld [vmem:[%s1 + $0x30] sm:$0xf]
  %v59 = vld [vmem:[%s1 + $0x34] sm:$0xf]
  %v60 = vld [vmem:[%s1 + $0x38] sm:$0xf]
  %v61 = vld [vmem:[%s1 + $0x3c] sm:$0xf]
  %v62 = vld [vmem:[%s1 + $0x40] sm:$0xf]
  %v63 = vld [vmem:[%s1 + $0x44] sm:$0xf]
  %v64 = vld [vmem:[%s1 + $0x48] sm:$0xf]
  %v65 = vld [vmem:[%s1 + $0x4c] sm:$0xf]
  %v66 = vld [vmem:[%s1 + $0x50] sm:$0xf]
  %v67 = vld [vmem:[%s1 + $0x54] sm:$0xf]
  %v68 = vld [vmem:[%s1 + $0x58] sm:$0xf]
  %v69 = vld [vmem:[%s1 + $0x5c] sm:$0xf]
  %v70 = vld [vmem:[%s1 + $0x60] sm:$0xf]
  %v71 = vld [vmem:[%s1 + $0x64] sm:$0xf]
  %v72 = vld [vmem:[%s1 + $0x68] sm:$0xf]
  %v73 = vld [vmem:[%s1 + $0x6c] sm:$0xf]
  %v74 = vld [vmem:[%s1 + $0x70] sm:$0xf]
  %v75 = vld [vmem:[%s1 + $0x74] sm:$0xf]
  %v76 = vld [vmem:[%s1 + $0x78] sm:$0xf]
  %v77 = vld [vmem:[%s1 + $0x7c] sm:$0xf]
  %v78 = vld [vmem:[%s1 + $0x80] sm:$0xf]
  %v79 = vld [vmem:[%s1 + $0x84] sm:$0xf]
  %v80 = vld [vmem:[%s1 + $0x88] sm:$0xf]
  %v81 = vld [vmem:[%s1 + $0x8c] sm:$0xf]
  %v82 = vld [vmem:[%s1 + $0x90] sm:$0xf]
  %v83 = vld [vmem:[%s1 + $0x94] sm:$0xf]
  %v84 = vld [vmem:[%s1 + $0x98] sm:$0xf]
  %v85 = vld [vmem:[%s1 + $0x9c] sm:$0xf]
  %v86 = vld [vmem:[%s1 + $0xa0] sm:$0xf]
  %v87 = vld [vmem:[%s1 + $0xa4] sm:$0xf]
  %v88 = vld [vmem:[%s1 + $0xa8] sm:$0xf]
  %v89 = vld [vmem:[%s1 + $0xac] sm:$0xf]
  %v90 = vld [vmem:[%s1 + $0xb0] sm:$0xf]
  %v91 = vld [vmem:[%s1 + $0xb4] sm:$0xf]
  %v92 = vld [vmem:[%s1 + $0xb8] sm:$0xf]
  %v93 = vld [vmem:[%s1 + $0xbc] sm:$0xf]
  %v94 = vld [vmem:[%s1 + $0xc0] sm:$0xf]
  %v95 = vld [vmem:[%s1 + $0xc4] sm:$0xf]
  %v96 = vld [vmem:[%s1 + $0xc8] sm:$0xf]
  %v97 = vld [vmem:[%s1 + $0xcc] sm:$0xf]
  %v98 = vld [vmem:[%s1 + $0xd0] sm:$0xf]
  %v99 = vld [vmem:[%s1 + $0xd4] sm:$0xf]
  %v100 = vld [vmem:[%s1 + $0xd8] sm:$0xf]
  %v101 = vld [vmem:[%s1 + $0xdc] sm:$0xf]
  %v102 = vld [vmem:[%s1 + $0xe0] sm:$0xf]
  %v103 = vld [vmem:[%s1 + $0xe4] sm:$0xf]
  %v104 = vld [vmem:[%s1 + $0xe8] sm:$0xf]
  %v105 = vld [vmem:[%s1 + $0xec] sm:$0xf]
  %v106 = vld [vmem:[%s1 + $0xf0] sm:$0xf]
  %v107 = vld [vmem:[%s1 + $0xf4] sm:$0xf]
  %v108 = vld [vmem:[%s1 + $0xf8] sm:$0xf]
  %v109 = vld [vmem:[%s1 + $0xfc] sm:$0xf]
  %v110 = vld [vmem:[%s1 + $0x100] sm:$0xf]
  %v111 = vld [vmem:[%s1 + $0x104] sm:$0xf]
  %v112 = vld [vmem:[%s1 + $0x108] sm:$0xf]
  %v113 = vld [vmem:[%s1 + $0x10c] sm:$0xf]
  %v114 = vld [vmem:[%s1 + $0x110] sm:$0xf]
  %v115 = vld [vmem:[%s1 + $0x114] sm:$0xf]
  %v116 = vld [vmem:[%s1 + $0x118] sm:$0xf]
  %v117 = vld [vmem:[%s1 + $0x11c] sm:$0xf]
  %v118 = vld [vmem:[%s1 + $0x120] sm:$0xf]
  %v119 = vld [vmem:[%s1 + $0x124] sm:$0xf]
  %v120 = vld [vmem:[%s1 + $0x128] sm:$0xf]
  %v121 = vld [vmem:[%s1 + $0x12c] sm:$0xf]
  %v122 = vld [vmem:[%s1 + $0x130] sm:$0xf]
  %v123 = vld [vmem:[%s1 + $0x134] sm:$0xf]
  %v124 = vld [vmem:[%s1 + $0x138] sm:$0xf]
  %v125 = vld [vmem:[%s1 + $0x13c] sm:$0xf]
  %v126 = vld [vmem:[%s1 + $0x140] sm:$0xf]
  %v127 = vld [vmem:[%s1 + $0x144] sm:$0xf]
  %v128 = vld [vmem:[%s1 + $0x148] sm:$0xf]
  %v129 = vld [vmem:[%s1 + $0x14c] sm:$0xf]
  %v130 = vld [vmem:[%s1 + $0x150] sm:$0xf]
  %v131 = vld [vmem:[%s1 + $0x154] sm:$0xf]
  %v132 = vld [vmem:[%s1 + $0x158] sm:$0xf]
  %v133 = vld [vmem:[%s1 + $0x15c] sm:$0xf]
  %v134 = vld [vmem:[%s1 + $0x160] sm:$0xf]
  %v135 = vld [vmem:[%s1 + $0x164] sm:$0xf]
  %v136 = vld [vmem:[%s1 + $0x168] sm:$0xf]
  %v137 = vld [vmem:[%s1 + $0x16c] sm:$0xf]
  %v138 = vld [vmem:[%s1 + $0x170] sm:$0xf]
  %v139 = vld [vmem:[%s1 + $0x174] sm:$0xf]
  %v140 = vld [vmem:[%s1 + $0x178] sm:$0xf]
  %v141 = vld [vmem:[%s1 + $0x17c] sm:$0xf]
  %v142 = vld [vmem:[%s1 + $0x180] sm:$0xf]
  %v143 = vld [vmem:[%s1 + $0x184] sm:$0xf]
  %v144 = vld [vmem:[%s1 + $0x188] sm:$0xf]
  %v145 = vld [vmem:[%s1 + $0x18c] sm:$0xf]
  %v146 = vld [vmem:[%s1 + $0x190] sm:$0xf]
  %v147 = vld [vmem:[%s1 + $0x194] sm:$0xf]
  %v148 = vld [vmem:[%s1 + $0x198] sm:$0xf]
  %v149 = vld [vmem:[%s1 + $0x19c] sm:$0xf]
  %v150 = vld [vmem:[%s1 + $0x1a0] sm:$0xf]
  %v151 = vld [vmem:[%s1 + $0x1a4] sm:$0xf]
  %v152 = vld [vmem:[%s1 + $0x1a8] sm:$0xf]
  %v153 = vld [vmem:[%s1 + $0x1ac] sm:$0xf]
  %v154 = vld [vmem:[%s1 + $0x1b0] sm:$0xf]
  %v155 = vld [vmem:[%s1 + $0x1b4] sm:$0xf]
  %v156 = vld [vmem:[%s1 + $0x1b8] sm:$0xf]
  %v157 = vld [vmem:[%s1 + $0x1bc] sm:$0xf]
  %v158 = vld [vmem:[%s1 + $0x1c0] sm:$0xf]
  %v159 = vld [vmem:[%s1 + $0x1c4] sm:$0xf]
  %v160 = vld [vmem:[%s1 + $0x1c8] sm:$0xf]
  %v161 = vld [vmem:[%s1 + $0x1cc] sm:$0xf]
  %v162 = vld [vmem:[%s1 + $0x1d0] sm:$0xf]
  %v163 = vld [vmem:[%s1 + $0x1d4] sm:$0xf]
  %v164 = vld [vmem:[%s1 + $0x1d8] sm:$0xf]
  %v165 = vld [vmem:[%s1 + $0x1dc] sm:$0xf]
  %v166 = vld [vmem:[%s1 + $0x1e0] sm:$0xf]
  %v167 = vld [vmem:[%s1 + $0x1e4] sm:$0xf]
  %v168 = vld [vmem:[%s1 + $0x1e8] sm:$0xf]
  %v169 = vld [vmem:[%s1 + $0x1ec] sm:$0xf]
  %v170 = vld [vmem:[%s1 + $0x1f0] sm:$0xf]
  %v171 = vld [vmem:[%s1 + $0x1f4] sm:$0xf]
  %v172 = vld [vmem:[%s1 + $0x1f8] sm:$0xf]
  %v173 = vld [vmem:[%s1 + $0x1fc] sm:$0xf]
  %v174 = vld [vmem:[%s1 + $0x200] sm:$0xf]
  %v175 = vld [vmem:[%s1 + $0x204] sm:$0xf]
  %v176 = vld [vmem:[%s1 + $0x208] sm:$0xf]
  %v177 = vld [vmem:[%s1 + $0x20c] sm:$0xf]
  %v178 = vld [vmem:[%s1 + $0x210] sm:$0xf]
  %v179 = vld [vmem:[%s1 + $0x214] sm:$0xf]
  %v180 = vld [vmem:[%s1 + $0x218] sm:$0xf]
  %v181 = vld [vmem:[%s1 + $0x21c] sm:$0xf]
  %v182 = vld [vmem:[%s1 + $0x220] sm:$0xf]
  %v183 = vld [vmem:[%s1 + $0x224] sm:$0xf]
  %v184 = vld [vmem:[%s1 + $0x228] sm:$0xf]
  %v185 = vld [vmem:[%s1 + $0x22c] sm:$0xf]
  %v186 = vld [vmem:[%s1 + $0x230] sm:$0xf]
  %v187 = vld [vmem:[%s1 + $0x234] sm:$0xf]
  %v188 = vld [vmem:[%s1 + $0x238] sm:$0xf]
  %v189 = vld [vmem:[%s1 + $0x23c] sm:$0xf]
  %v190 = vld [vmem:[%s1 + $0x240] sm:$0xf]
  %v191 = vld [vmem:[%s1 + $0x244] sm:$0xf]
  %v192 = vld [vmem:[%s1 + $0x248] sm:$0xf]
  %v193 = vld [vmem:[%s1 + $0x24c] sm:$0xf]
  %v194 = vld [vmem:[%s1 + $0x250] sm:$0xf]
  %v195 = vld [vmem:[%s1 + $0x254] sm:$0xf]
  %v196 = vld [vmem:[%s1 + $0x258] sm:$0xf]
  %v197 = vld [vmem:[%s1 + $0x25c] sm:$0xf]
  %v198 = vld [vmem:[%s1 + $0x260] sm:$0xf]
  %v199 = vld [vmem:[%s1 + $0x264] sm:$0xf]
  %v200 = vld [vmem:[%s1 + $0x268] sm:$0xf]
  %v201 = vld [vmem:[%s1 + $0x26c] sm:$0xf]
  %v202 = vld [vmem:[%s1 + $0x270] sm:$0xf]
  %v203 = vld [vmem:[%s1 + $0x274] sm:$0xf]
  %v204 = vld [vmem:[%s1 + $0x278] sm:$0xf]
  %v205 = vld [vmem:[%s1 + $0x27c] sm:$0xf]
  %v206 = vld [vmem:[%s1 + $0x280] sm:$0xf]
  %v207 = vld [vmem:[%s1 + $0x284] sm:$0xf]
  %v208 = vld [vmem:[%s1 + $0x288] sm:$0xf]
  %v209 = vld [vmem:[%s1 + $0x28c] sm:$0xf]
  %v210 = vld [vmem:[%s1 + $0x290] sm:$0xf]
  %v211 = vld [vmem:[%s1 + $0x294] sm:$0xf]
  %v212 = vld [vmem:[%s1 + $0x298] sm:$0xf]
  %v213 = vld [vmem:[%s1 + $0x29c] sm:$0xf]
  %v214 = vld [vmem:[%s1 + $0x2a0] sm:$0xf]
  %v215 = vld [vmem:[%s1 + $0x2a4] sm:$0xf]
  %v216 = vld [vmem:[%s1 + $0x2a8] sm:$0xf]
  %v217 = vld [vmem:[%s1 + $0x2ac] sm:$0xf]
  %v218 = vld [vmem:[%s1 + $0x2b0] sm:$0xf]
  %v219 = vld [vmem:[%s1 + $0x2b4] sm:$0xf]
  %v220 = vld [vmem:[%s1 + $0x2b8] sm:$0xf]
  %v221 = vld [vmem:[%s1 + $0x2bc] sm:$0xf]
  %v222 = vld [vmem:[%s1 + $0x2c0] sm:$0xf]
  %v223 = vld [vmem:[%s1 + $0x2c4] sm:$0xf]
  %v224 = vld [vmem:[%s1 + $0x2c8] sm:$0xf]
  %v225 = vld [vmem:[%s1 + $0x2cc] sm:$0xf]
  %v226 = vld [vmem:[%s1 + $0x2d0] sm:$0xf]
  %v227 = vld [vmem:[%s1 + $0x2d4] sm:$0xf]
  %v228 = vld [vmem:[%s1 + $0x2d8] sm:$0xf]
  %v229 = vld [vmem:[%s1 + $0x2dc] sm:$0xf]
  %v230 = vld [vmem:[%s1 + $0x2e0] sm:$0xf]
  %v231 = vld [vmem:[%s1 + $0x2e4] sm:$0xf]
  %v232 = vld [vmem:[%s1 + $0x2e8] sm:$0xf]
  %v233 = vld [vmem:[%s1 + $0x2ec] sm:$0xf]
  %v234 = vld [vmem:[%s1 + $0x2f0] sm:$0xf]
  %v235 = vld [vmem:[%s1 + $0x2f4] sm:$0xf]
  %v236 = vld [vmem:[%s1 + $0x2f8] sm:$0xf]
  %v237 = vld [vmem:[%s1 + $0x2fc] sm:$0xf]
  %v238 = vld [vmem:[%s1 + $0x300] sm:$0xf]
  %v239 = vld [vmem:[%s1 + $0x304] sm:$0xf]
  %v240 = vld [vmem:[%s1 + $0x308] sm:$0xf]
  %v241 = vld [vmem:[%s1 + $0x30c] sm:$0xf]
  %v242 = vld [vmem:[%s1 + $0x310] sm:$0xf]
  %v243 = vld [vmem:[%s1 + $0x314] sm:$0xf]
  %v244 = vld [vmem:[%s1 + $0x318] sm:$0xf]
  %v245 = vld [vmem:[%s1 + $0x31c] sm:$0xf]
  %v246 = vld [vmem:[%s1 + $0x320] sm:$0xf]
  %v247 = vld [vmem:[%s1 + $0x324] sm:$0xf]
  %v248 = vld [vmem:[%s1 + $0x328] sm:$0xf]
  %v249 = vld [vmem:[%s1 + $0x32c] sm:$0xf]
  %v250 = vld [vmem:[%s1 + $0x330] sm:$0xf]
  %v251 = vld [vmem:[%s1 + $0x334] sm:$0xf]
  %v252 = vld [vmem:[%s1 + $0x338] sm:$0xf]
  %v253 = vld [vmem:[%s1 + $0x33c] sm:$0xf]
  %v254 = vld [vmem:[%s1 + $0x340] sm:$0xf]
  %v255 = vld [vmem:[%s1 + $0x344] sm:$0xf]
  %v256 = vld [vmem:[%s1 + $0x348] sm:$0xf]
  %v257 = vld [vmem:[%s1 + $0x34c] sm:$0xf]
  %v258 = vld [vmem:[%s1 + $0x350] sm:$0xf]
  %v259 = vld [vmem:[%s1 + $0x354] sm:$0xf]
  %v260 = vld [vmem:[%s1 + $0x358] sm:$0xf]
  %v261 = vld [vmem:[%s1 + $0x35c] sm:$0xf]
  %v262 = vld [vmem:[%s1 + $0x360] sm:$0xf]
  %v263 = vld [vmem:[%s1 + $0x364] sm:$0xf]
  %v264 = vld [vmem:[%s1 + $0x368] sm:$0xf]
  %v265 = vld [vmem:[%s1 + $0x36c] sm:$0xf]
  %v266 = vld [vmem:[%s1 + $0x370] sm:$0xf]
  %v267 = vld [vmem:[%s1 + $0x374] sm:$0xf]
  %v268 = vld [vmem:[%s1 + $0x378] sm:$0xf]
  %v269 = vld [vmem:[%s1 + $0x37c] sm:$0xf]
  %v270 = vld [vmem:[%s1 + $0x380] sm:$0xf]
  %v271 = vld [vmem:[%s1 + $0x384] sm:$0xf]
  %v272 = vld [vmem:[%s1 + $0x388] sm:$0xf]
  %v273 = vld [vmem:[%s1 + $0x38c] sm:$0xf]
  %v274 = vld [vmem:[%s1 + $0x390] sm:$0xf]
  %v275 = vld [vmem:[%s1 + $0x394] sm:$0xf]
  %v276 = vld [vmem:[%s1 + $0x398] sm:$0xf]
  %v277 = vld [vmem:[%s1 + $0x39c] sm:$0xf]
  %v278 = vld [vmem:[%s1 + $0x3a0] sm:$0xf]
  %v279 = vld [vmem:[%s1 + $0x3a4] sm:$0xf]
  %v280 = vld [vmem:[%s1 + $0x3a8] sm:$0xf]
  %v281 = vld [vmem:[%s1 + $0x3ac] sm:$0xf]
  %v282 = vld [vmem:[%s1 + $0x3b0] sm:$0xf]
  %v283 = vld [vmem:[%s1 + $0x3b4] sm:$0xf]
  %v284 = vld [vmem:[%s1 + $0x3b8] sm:$0xf]
  %v285 = vld [vmem:[%s1 + $0x3bc] sm:$0xf]
  %v286 = vld [vmem:[%s1 + $0x3c0] sm:$0xf]
  %v287 = vld [vmem:[%s1 + $0x3c4] sm:$0xf]
  %v288 = vld [vmem:[%s1 + $0x3c8] sm:$0xf]
  %v289 = vld [vmem:[%s1 + $0x3cc] sm:$0xf]
  %v290 = vld [vmem:[%s1 + $0x3d0] sm:$0xf]
  %v291 = vld [vmem:[%s1 + $0x3d4] sm:$0xf]
  %v292 = vld [vmem:[%s1 + $0x3d8] sm:$0xf]
  %v293 = vld [vmem:[%s1 + $0x3dc] sm:$0xf]
  %v294 = vld [vmem:[%s1 + $0x3e0] sm:$0xf]
  %v295 = vld [vmem:[%s1 + $0x3e4] sm:$0xf]
  %v296 = vld [vmem:[%s1 + $0x3e8] sm:$0xf]
  %v297 = vld [vmem:[%s1 + $0x3ec] sm:$0xf]
  %v298 = vld [vmem:[%s1 + $0x3f0] sm:$0xf]
  %v299 = vld [vmem:[%s1 + $0x3f4] sm:$0xf]
  %v300 = vld [vmem:[%s1 + $0x3f8] sm:$0xf]
  %v301 = vld [vmem:[%s1 + $0x3fc] sm:$0xf]
  %v302 = vld [vmem:[%s2] sm:$0x1]
  %v304 = vperm.slane %v302, 0
  %v338 = vunpack.c.l.b16 %v14
  %v339 = vunpack.c.h.b16 %v14
  %v340 = vunpack.c.l.b16 %v15
  %v341 = vunpack.c.h.b16 %v15
  %v342 = vunpack.c.l.b16 %v16
  %v343 = vunpack.c.h.b16 %v16
  %v344 = vunpack.c.l.b16 %v17
  %v345 = vunpack.c.h.b16 %v17
  %v346 = vunpack.c.l.b16 %v18
  %v347 = vunpack.c.h.b16 %v18
  %v348 = vunpack.c.l.b16 %v19
  %v349 = vunpack.c.h.b16 %v19
  %v350 = vunpack.c.l.b16 %v20
  %v351 = vunpack.c.h.b16 %v20
  %v352 = vunpack.c.l.b16 %v21
  %v353 = vunpack.c.h.b16 %v21
  %v354 = vunpack.c.l.b16 %v22
  %v355 = vunpack.c.h.b16 %v22
  %v356 = vunpack.c.l.b16 %v23
  %v357 = vunpack.c.h.b16 %v23
  %v358 = vunpack.c.l.b16 %v24
  %v359 = vunpack.c.h.b16 %v24
  %v360 = vunpack.c.l.b16 %v25
  %v361 = vunpack.c.h.b16 %v25
  %v362 = vunpack.c.l.b16 %v26
  %v363 = vunpack.c.h.b16 %v26
  %v364 = vunpack.c.l.b16 %v27
  %v365 = vunpack.c.h.b16 %v27
  %v366 = vunpack.c.l.b16 %v28
  %v367 = vunpack.c.h.b16 %v28
  %v368 = vunpack.c.l.b16 %v29
  %v369 = vunpack.c.h.b16 %v29
  %v370 = vunpack.c.l.b16 %v30
  %v371 = vunpack.c.h.b16 %v30
  %v372 = vunpack.c.l.b16 %v31
  %v373 = vunpack.c.h.b16 %v31
  %v374 = vunpack.c.l.b16 %v32
  %v375 = vunpack.c.h.b16 %v32
  %v376 = vunpack.c.l.b16 %v33
  %v377 = vunpack.c.h.b16 %v33
  %v378 = vunpack.c.l.b16 %v34
  %v379 = vunpack.c.h.b16 %v34
  %v380 = vunpack.c.l.b16 %v35
  %v381 = vunpack.c.h.b16 %v35
  %v382 = vunpack.c.l.b16 %v36
  %v383 = vunpack.c.h.b16 %v36
  %v384 = vunpack.c.l.b16 %v37
  %v385 = vunpack.c.h.b16 %v37
  %v386 = vunpack.c.l.b16 %v38
  %v387 = vunpack.c.h.b16 %v38
  %v388 = vunpack.c.l.b16 %v39
  %v389 = vunpack.c.h.b16 %v39
  %v390 = vunpack.c.l.b16 %v40
  %v391 = vunpack.c.h.b16 %v40
  %v392 = vunpack.c.l.b16 %v41
  %v393 = vunpack.c.h.b16 %v41
  %v394 = vunpack.c.l.b16 %v42
  %v395 = vunpack.c.h.b16 %v42
  %v396 = vunpack.c.l.b16 %v43
  %v397 = vunpack.c.h.b16 %v43
  %v398 = vunpack.c.l.b16 %v44
  %v399 = vunpack.c.h.b16 %v44
  %v400 = vunpack.c.l.b16 %v45
  %v401 = vunpack.c.h.b16 %v45
  %v402 = vpack.c.b16 %v354, %v338
  %v403 = vpack.c.b16 %v355, %v339
  %v404 = vpack.c.b16 %v356, %v340
  %v405 = vpack.c.b16 %v357, %v341
  %v406 = vpack.c.b16 %v358, %v342
  %v407 = vpack.c.b16 %v359, %v343
  %v408 = vpack.c.b16 %v360, %v344
  %v409 = vpack.c.b16 %v361, %v345
  %v410 = vpack.c.b16 %v362, %v346
  %v411 = vpack.c.b16 %v363, %v347
  %v412 = vpack.c.b16 %v364, %v348
  %v413 = vpack.c.b16 %v365, %v349
  %v414 = vpack.c.b16 %v366, %v350
  %v415 = vpack.c.b16 %v367, %v351
  %v416 = vpack.c.b16 %v368, %v352
  %v417 = vpack.c.b16 %v369, %v353
  %v418 = vpack.c.b16 %v386, %v370
  %v419 = vpack.c.b16 %v387, %v371
  %v420 = vpack.c.b16 %v388, %v372
  %v421 = vpack.c.b16 %v389, %v373
  %v422 = vpack.c.b16 %v390, %v374
  %v423 = vpack.c.b16 %v391, %v375
  %v424 = vpack.c.b16 %v392, %v376
  %v425 = vpack.c.b16 %v393, %v377
  %v426 = vpack.c.b16 %v394, %v378
  %v427 = vpack.c.b16 %v395, %v379
  %v428 = vpack.c.b16 %v396, %v380
  %v429 = vpack.c.b16 %v397, %v381
  %v430 = vpack.c.b16 %v398, %v382
  %v431 = vpack.c.b16 %v399, %v383
  %v432 = vpack.c.b16 %v400, %v384
  %v433 = vpack.c.b16 %v401, %v385
  %v722 = vunpack.c.l.b16 %v46
  %v723 = vunpack.c.l.b16 %v47
  %v724 = vunpack.c.l.b16 %v48
  %v725 = vunpack.c.l.b16 %v49
  %v726 = vunpack.c.l.b16 %v50
  %v727 = vunpack.c.l.b16 %v51
  %v728 = vunpack.c.l.b16 %v52
  %v729 = vunpack.c.l.b16 %v53
  %v730 = vunpack.c.l.b16 %v54
  %v731 = vunpack.c.l.b16 %v55
  %v732 = vunpack.c.l.b16 %v56
  %v733 = vunpack.c.l.b16 %v57
  %v734 = vunpack.c.l.b16 %v58
  %v735 = vunpack.c.l.b16 %v59
  %v736 = vunpack.c.l.b16 %v60
  %v737 = vunpack.c.l.b16 %v61
  %v738 = vunpack.c.l.b16 %v62
  %v739 = vunpack.c.l.b16 %v63
  %v740 = vunpack.c.l.b16 %v64
  %v741 = vunpack.c.l.b16 %v65
  %v742 = vunpack.c.l.b16 %v66
  %v743 = vunpack.c.l.b16 %v67
  %v744 = vunpack.c.l.b16 %v68
  %v745 = vunpack.c.l.b16 %v69
  %v746 = vunpack.c.l.b16 %v70
  %v747 = vunpack.c.l.b16 %v71
  %v748 = vunpack.c.l.b16 %v72
  %v749 = vunpack.c.l.b16 %v73
  %v750 = vunpack.c.l.b16 %v74
  %v751 = vunpack.c.l.b16 %v75
  %v752 = vunpack.c.l.b16 %v76
  %v753 = vunpack.c.l.b16 %v77
  %v754 = vunpack.c.l.b16 %v78
  %v755 = vunpack.c.l.b16 %v79
  %v756 = vunpack.c.l.b16 %v80
  %v757 = vunpack.c.l.b16 %v81
  %v758 = vunpack.c.l.b16 %v82
  %v759 = vunpack.c.l.b16 %v83
  %v760 = vunpack.c.l.b16 %v84
  %v761 = vunpack.c.l.b16 %v85
  %v762 = vunpack.c.l.b16 %v86
  %v763 = vunpack.c.l.b16 %v87
  %v764 = vunpack.c.l.b16 %v88
  %v765 = vunpack.c.l.b16 %v89
  %v766 = vunpack.c.l.b16 %v90
  %v767 = vunpack.c.l.b16 %v91
  %v768 = vunpack.c.l.b16 %v92
  %v769 = vunpack.c.l.b16 %v93
  %v770 = vunpack.c.l.b16 %v94
  %v771 = vunpack.c.l.b16 %v95
  %v772 = vunpack.c.l.b16 %v96
  %v773 = vunpack.c.l.b16 %v97
  %v774 = vunpack.c.l.b16 %v98
  %v775 = vunpack.c.l.b16 %v99
  %v776 = vunpack.c.l.b16 %v100
  %v777 = vunpack.c.l.b16 %v101
  %v778 = vunpack.c.l.b16 %v102
  %v779 = vunpack.c.l.b16 %v103
  %v780 = vunpack.c.l.b16 %v104
  %v781 = vunpack.c.l.b16 %v105
  %v782 = vunpack.c.l.b16 %v106
  %v783 = vunpack.c.l.b16 %v107
  %v784 = vunpack.c.l.b16 %v108
  %v785 = vunpack.c.l.b16 %v109
  %v786 = vunpack.c.l.b16 %v110
  %v787 = vunpack.c.l.b16 %v111
  %v788 = vunpack.c.l.b16 %v112
  %v789 = vunpack.c.l.b16 %v113
  %v790 = vunpack.c.l.b16 %v114
  %v791 = vunpack.c.l.b16 %v115
  %v792 = vunpack.c.l.b16 %v116
  %v793 = vunpack.c.l.b16 %v117
  %v794 = vunpack.c.l.b16 %v118
  %v795 = vunpack.c.l.b16 %v119
  %v796 = vunpack.c.l.b16 %v120
  %v797 = vunpack.c.l.b16 %v121
  %v798 = vunpack.c.l.b16 %v122
  %v799 = vunpack.c.l.b16 %v123
  %v800 = vunpack.c.l.b16 %v124
  %v801 = vunpack.c.l.b16 %v125
  %v802 = vunpack.c.l.b16 %v126
  %v803 = vunpack.c.l.b16 %v127
  %v804 = vunpack.c.l.b16 %v128
  %v805 = vunpack.c.l.b16 %v129
  %v806 = vunpack.c.l.b16 %v130
  %v807 = vunpack.c.l.b16 %v131
  %v808 = vunpack.c.l.b16 %v132
  %v809 = vunpack.c.l.b16 %v133
  %v810 = vunpack.c.l.b16 %v134
  %v811 = vunpack.c.l.b16 %v135
  %v812 = vunpack.c.l.b16 %v136
  %v813 = vunpack.c.l.b16 %v137
  %v814 = vunpack.c.l.b16 %v138
  %v815 = vunpack.c.l.b16 %v139
  %v816 = vunpack.c.l.b16 %v140
  %v817 = vunpack.c.l.b16 %v141
  %v818 = vunpack.c.l.b16 %v142
  %v819 = vunpack.c.l.b16 %v143
  %v820 = vunpack.c.l.b16 %v144
  %v821 = vunpack.c.l.b16 %v145
  %v822 = vunpack.c.l.b16 %v146
  %v823 = vunpack.c.l.b16 %v147
  %v824 = vunpack.c.l.b16 %v148
  %v825 = vunpack.c.l.b16 %v149
  %v826 = vunpack.c.l.b16 %v150
  %v827 = vunpack.c.l.b16 %v151
  %v828 = vunpack.c.l.b16 %v152
  %v829 = vunpack.c.l.b16 %v153
  %v830 = vunpack.c.l.b16 %v154
  %v831 = vunpack.c.l.b16 %v155
  %v832 = vunpack.c.l.b16 %v156
  %v833 = vunpack.c.l.b16 %v157
  %v834 = vunpack.c.l.b16 %v158
  %v835 = vunpack.c.l.b16 %v159
  %v836 = vunpack.c.l.b16 %v160
  %v837 = vunpack.c.l.b16 %v161
  %v838 = vunpack.c.l.b16 %v162
  %v839 = vunpack.c.l.b16 %v163
  %v840 = vunpack.c.l.b16 %v164
  %v841 = vunpack.c.l.b16 %v165
  %v842 = vunpack.c.l.b16 %v166
  %v843 = vunpack.c.l.b16 %v167
  %v844 = vunpack.c.l.b16 %v168
  %v845 = vunpack.c.l.b16 %v169
  %v846 = vunpack.c.l.b16 %v170
  %v847 = vunpack.c.l.b16 %v171
  %v848 = vunpack.c.l.b16 %v172
  %v849 = vunpack.c.l.b16 %v173
  %v850 = vunpack.c.l.b16 %v174
  %v851 = vunpack.c.l.b16 %v175
  %v852 = vunpack.c.l.b16 %v176
  %v853 = vunpack.c.l.b16 %v177
  %v854 = vunpack.c.l.b16 %v178
  %v855 = vunpack.c.l.b16 %v179
  %v856 = vunpack.c.l.b16 %v180
  %v857 = vunpack.c.l.b16 %v181
  %v858 = vunpack.c.l.b16 %v182
  %v859 = vunpack.c.l.b16 %v183
  %v860 = vunpack.c.l.b16 %v184
  %v861 = vunpack.c.l.b16 %v185
  %v862 = vunpack.c.l.b16 %v186
  %v863 = vunpack.c.l.b16 %v187
  %v864 = vunpack.c.l.b16 %v188
  %v865 = vunpack.c.l.b16 %v189
  %v866 = vunpack.c.l.b16 %v190
  %v867 = vunpack.c.l.b16 %v191
  %v868 = vunpack.c.l.b16 %v192
  %v869 = vunpack.c.l.b16 %v193
  %v870 = vunpack.c.l.b16 %v194
  %v871 = vunpack.c.l.b16 %v195
  %v872 = vunpack.c.l.b16 %v196
  %v873 = vunpack.c.l.b16 %v197
  %v874 = vunpack.c.l.b16 %v198
  %v875 = vunpack.c.l.b16 %v199
  %v876 = vunpack.c.l.b16 %v200
  %v877 = vunpack.c.l.b16 %v201
  %v878 = vunpack.c.l.b16 %v202
  %v879 = vunpack.c.l.b16 %v203
  %v880 = vunpack.c.l.b16 %v204
  %v881 = vunpack.c.l.b16 %v205
  %v882 = vunpack.c.l.b16 %v206
  %v883 = vunpack.c.l.b16 %v207
  %v884 = vunpack.c.l.b16 %v208
  %v885 = vunpack.c.l.b16 %v209
  %v886 = vunpack.c.l.b16 %v210
  %v887 = vunpack.c.l.b16 %v211
  %v888 = vunpack.c.l.b16 %v212
  %v889 = vunpack.c.l.b16 %v213
  %v890 = vunpack.c.l.b16 %v214
  %v891 = vunpack.c.l.b16 %v215
  %v892 = vunpack.c.l.b16 %v216
  %v893 = vunpack.c.l.b16 %v217
  %v894 = vunpack.c.l.b16 %v218
  %v895 = vunpack.c.l.b16 %v219
  %v896 = vunpack.c.l.b16 %v220
  %v897 = vunpack.c.l.b16 %v221
  %v898 = vunpack.c.l.b16 %v222
  %v899 = vunpack.c.l.b16 %v223
  %v900 = vunpack.c.l.b16 %v224
  %v901 = vunpack.c.l.b16 %v225
  %v902 = vunpack.c.l.b16 %v226
  %v903 = vunpack.c.l.b16 %v227
  %v904 = vunpack.c.l.b16 %v228
  %v905 = vunpack.c.l.b16 %v229
  %v906 = vunpack.c.l.b16 %v230
  %v907 = vunpack.c.l.b16 %v231
  %v908 = vunpack.c.l.b16 %v232
  %v909 = vunpack.c.l.b16 %v233
  %v910 = vunpack.c.l.b16 %v234
  %v911 = vunpack.c.l.b16 %v235
  %v912 = vunpack.c.l.b16 %v236
  %v913 = vunpack.c.l.b16 %v237
  %v914 = vunpack.c.l.b16 %v238
  %v915 = vunpack.c.l.b16 %v239
  %v916 = vunpack.c.l.b16 %v240
  %v917 = vunpack.c.l.b16 %v241
  %v918 = vunpack.c.l.b16 %v242
  %v919 = vunpack.c.l.b16 %v243
  %v920 = vunpack.c.l.b16 %v244
  %v921 = vunpack.c.l.b16 %v245
  %v922 = vunpack.c.l.b16 %v246
  %v923 = vunpack.c.l.b16 %v247
  %v924 = vunpack.c.l.b16 %v248
  %v925 = vunpack.c.l.b16 %v249
  %v926 = vunpack.c.l.b16 %v250
  %v927 = vunpack.c.l.b16 %v251
  %v928 = vunpack.c.l.b16 %v252
  %v929 = vunpack.c.l.b16 %v253
  %v930 = vunpack.c.l.b16 %v254
  %v931 = vunpack.c.l.b16 %v255
  %v932 = vunpack.c.l.b16 %v256
  %v933 = vunpack.c.l.b16 %v257
  %v934 = vunpack.c.l.b16 %v258
  %v935 = vunpack.c.l.b16 %v259
  %v936 = vunpack.c.l.b16 %v260
  %v937 = vunpack.c.l.b16 %v261
  %v938 = vunpack.c.l.b16 %v262
  %v939 = vunpack.c.l.b16 %v263
  %v940 = vunpack.c.l.b16 %v264
  %v941 = vunpack.c.l.b16 %v265
  %v942 = vunpack.c.l.b16 %v266
  %v943 = vunpack.c.l.b16 %v267
  %v944 = vunpack.c.l.b16 %v268
  %v945 = vunpack.c.l.b16 %v269
  %v946 = vunpack.c.l.b16 %v270
  %v947 = vunpack.c.l.b16 %v271
  %v948 = vunpack.c.l.b16 %v272
  %v949 = vunpack.c.l.b16 %v273
  %v950 = vunpack.c.l.b16 %v274
  %v951 = vunpack.c.l.b16 %v275
  %v952 = vunpack.c.l.b16 %v276
  %v953 = vunpack.c.l.b16 %v277
  %v954 = vunpack.c.l.b16 %v278
  %v955 = vunpack.c.l.b16 %v279
  %v956 = vunpack.c.l.b16 %v280
  %v957 = vunpack.c.l.b16 %v281
  %v958 = vunpack.c.l.b16 %v282
  %v959 = vunpack.c.l.b16 %v283
  %v960 = vunpack.c.l.b16 %v284
  %v961 = vunpack.c.l.b16 %v285
  %v962 = vunpack.c.l.b16 %v286
  %v963 = vunpack.c.l.b16 %v287
  %v964 = vunpack.c.l.b16 %v288
  %v965 = vunpack.c.l.b16 %v289
  %v966 = vunpack.c.l.b16 %v290
  %v967 = vunpack.c.l.b16 %v291
  %v968 = vunpack.c.l.b16 %v292
  %v969 = vunpack.c.l.b16 %v293
  %v970 = vunpack.c.l.b16 %v294
  %v971 = vunpack.c.l.b16 %v295
  %v972 = vunpack.c.l.b16 %v296
  %v973 = vunpack.c.l.b16 %v297
  %v974 = vunpack.c.l.b16 %v298
  %v975 = vunpack.c.l.b16 %v299
  %v976 = vunpack.c.l.b16 %v300
  %v977 = vunpack.c.l.b16 %v301
  %v978 = vpack.c.b16 %v723, %v722
  %v979 = vpack.c.b16 %v725, %v724
  %v980 = vpack.c.b16 %v727, %v726
  %v981 = vpack.c.b16 %v729, %v728
  %v982 = vpack.c.b16 %v731, %v730
  %v983 = vpack.c.b16 %v733, %v732
  %v984 = vpack.c.b16 %v735, %v734
  %v985 = vpack.c.b16 %v737, %v736
  %v986 = vpack.c.b16 %v739, %v738
  %v987 = vpack.c.b16 %v741, %v740
  %v988 = vpack.c.b16 %v743, %v742
  %v989 = vpack.c.b16 %v745, %v744
  %v990 = vpack.c.b16 %v747, %v746
  %v991 = vpack.c.b16 %v749, %v748
  %v992 = vpack.c.b16 %v751, %v750
  %v993 = vpack.c.b16 %v753, %v752
  %v994 = vpack.c.b16 %v755, %v754
  %v995 = vpack.c.b16 %v757, %v756
  %v996 = vpack.c.b16 %v759, %v758
  %v997 = vpack.c.b16 %v761, %v760
  %v998 = vpack.c.b16 %v763, %v762
  %v999 = vpack.c.b16 %v765, %v764
  %v1000 = vpack.c.b16 %v767, %v766
  %v1001 = vpack.c.b16 %v769, %v768
  %v1002 = vpack.c.b16 %v771, %v770
  %v1003 = vpack.c.b16 %v773, %v772
  %v1004 = vpack.c.b16 %v775, %v774
  %v1005 = vpack.c.b16 %v777, %v776
  %v1006 = vpack.c.b16 %v779, %v778
  %v1007 = vpack.c.b16 %v781, %v780
  %v1008 = vpack.c.b16 %v783, %v782
  %v1009 = vpack.c.b16 %v785, %v784
  %v1010 = vpack.c.b16 %v787, %v786
  %v1011 = vpack.c.b16 %v789, %v788
  %v1012 = vpack.c.b16 %v791, %v790
  %v1013 = vpack.c.b16 %v793, %v792
  %v1014 = vpack.c.b16 %v795, %v794
  %v1015 = vpack.c.b16 %v797, %v796
  %v1016 = vpack.c.b16 %v799, %v798
  %v1017 = vpack.c.b16 %v801, %v800
  %v1018 = vpack.c.b16 %v803, %v802
  %v1019 = vpack.c.b16 %v805, %v804
  %v1020 = vpack.c.b16 %v807, %v806
  %v1021 = vpack.c.b16 %v809, %v808
  %v1022 = vpack.c.b16 %v811, %v810
  %v1023 = vpack.c.b16 %v813, %v812
  %v1024 = vpack.c.b16 %v815, %v814
  %v1025 = vpack.c.b16 %v817, %v816
  %v1026 = vpack.c.b16 %v819, %v818
  %v1027 = vpack.c.b16 %v821, %v820
  %v1028 = vpack.c.b16 %v823, %v822
  %v1029 = vpack.c.b16 %v825, %v824
  %v1030 = vpack.c.b16 %v827, %v826
  %v1031 = vpack.c.b16 %v829, %v828
  %v1032 = vpack.c.b16 %v831, %v830
  %v1033 = vpack.c.b16 %v833, %v832
  %v1034 = vpack.c.b16 %v835, %v834
  %v1035 = vpack.c.b16 %v837, %v836
  %v1036 = vpack.c.b16 %v839, %v838
  %v1037 = vpack.c.b16 %v841, %v840
  %v1038 = vpack.c.b16 %v843, %v842
  %v1039 = vpack.c.b16 %v845, %v844
  %v1040 = vpack.c.b16 %v847, %v846
  %v1041 = vpack.c.b16 %v849, %v848
  %v1042 = vpack.c.b16 %v851, %v850
  %v1043 = vpack.c.b16 %v853, %v852
  %v1044 = vpack.c.b16 %v855, %v854
  %v1045 = vpack.c.b16 %v857, %v856
  %v1046 = vpack.c.b16 %v859, %v858
  %v1047 = vpack.c.b16 %v861, %v860
  %v1048 = vpack.c.b16 %v863, %v862
  %v1049 = vpack.c.b16 %v865, %v864
  %v1050 = vpack.c.b16 %v867, %v866
  %v1051 = vpack.c.b16 %v869, %v868
  %v1052 = vpack.c.b16 %v871, %v870
  %v1053 = vpack.c.b16 %v873, %v872
  %v1054 = vpack.c.b16 %v875, %v874
  %v1055 = vpack.c.b16 %v877, %v876
  %v1056 = vpack.c.b16 %v879, %v878
  %v1057 = vpack.c.b16 %v881, %v880
  %v1058 = vpack.c.b16 %v883, %v882
  %v1059 = vpack.c.b16 %v885, %v884
  %v1060 = vpack.c.b16 %v887, %v886
  %v1061 = vpack.c.b16 %v889, %v888
  %v1062 = vpack.c.b16 %v891, %v890
  %v1063 = vpack.c.b16 %v893, %v892
  %v1064 = vpack.c.b16 %v895, %v894
  %v1065 = vpack.c.b16 %v897, %v896
  %v1066 = vpack.c.b16 %v899, %v898
  %v1067 = vpack.c.b16 %v901, %v900
  %v1068 = vpack.c.b16 %v903, %v902
  %v1069 = vpack.c.b16 %v905, %v904
  %v1070 = vpack.c.b16 %v907, %v906
  %v1071 = vpack.c.b16 %v909, %v908
  %v1072 = vpack.c.b16 %v911, %v910
  %v1073 = vpack.c.b16 %v913, %v912
  %v1074 = vpack.c.b16 %v915, %v914
  %v1075 = vpack.c.b16 %v917, %v916
  %v1076 = vpack.c.b16 %v919, %v918
  %v1077 = vpack.c.b16 %v921, %v920
  %v1078 = vpack.c.b16 %v923, %v922
  %v1079 = vpack.c.b16 %v925, %v924
  %v1080 = vpack.c.b16 %v927, %v926
  %v1081 = vpack.c.b16 %v929, %v928
  %v1082 = vpack.c.b16 %v931, %v930
  %v1083 = vpack.c.b16 %v933, %v932
  %v1084 = vpack.c.b16 %v935, %v934
  %v1085 = vpack.c.b16 %v937, %v936
  %v1086 = vpack.c.b16 %v939, %v938
  %v1087 = vpack.c.b16 %v941, %v940
  %v1088 = vpack.c.b16 %v943, %v942
  %v1089 = vpack.c.b16 %v945, %v944
  %v1090 = vpack.c.b16 %v947, %v946
  %v1091 = vpack.c.b16 %v949, %v948
  %v1092 = vpack.c.b16 %v951, %v950
  %v1093 = vpack.c.b16 %v953, %v952
  %v1094 = vpack.c.b16 %v955, %v954
  %v1095 = vpack.c.b16 %v957, %v956
  %v1096 = vpack.c.b16 %v959, %v958
  %v1097 = vpack.c.b16 %v961, %v960
  %v1098 = vpack.c.b16 %v963, %v962
  %v1099 = vpack.c.b16 %v965, %v964
  %v1100 = vpack.c.b16 %v967, %v966
  %v1101 = vpack.c.b16 %v969, %v968
  %v1102 = vpack.c.b16 %v971, %v970
  %v1103 = vpack.c.b16 %v973, %v972
  %v1104 = vpack.c.b16 %v975, %v974
  %v1105 = vpack.c.b16 %v977, %v976
  %1234 = vmatpush.bf16.msra.mxu0 %v985
  %1235 = vmatpush.bf16.msra.mxu0 %v984
  %1236 = vmatpush.bf16.msra.mxu0 %v983
  %1237 = vmatpush.bf16.msra.mxu0 %v982
  %1238 = vmatpush.bf16.msra.mxu0 %v981
  %1239 = vmatpush.bf16.msra.mxu0 %v980
  %1240 = vmatpush.bf16.msra.mxu0 %v979
  %1241 = vmatpush.bf16.msra.mxu0 %v978
  %1242 = vmatmul.bf16.gmra.mxu0 %v402
  %v1243 = vpop.f32.mrf.mxu0
  %v1244 = vadd.f32 %v304, %v1243
  %v1245 = vpop.f32.mrf.mxu0
  %v1246 = vadd.f32 %v304, %v1245
  %1247 = vmatmul.bf16.gmra.mxu0 %v418
  %v1248 = vpop.f32.mrf.mxu0
  %v1249 = vadd.f32 %v304, %v1248
  %v1250 = vpop.f32.mrf.mxu0
  %v1251 = vadd.f32 %v304, %v1250
  %1252 = vdwg.mxu0
  %1253 = vmatpush.bf16.msra.mxu0 %v993
  %1254 = vmatpush.bf16.msra.mxu0 %v992
  %1255 = vmatpush.bf16.msra.mxu0 %v991
  %1256 = vmatpush.bf16.msra.mxu0 %v990
  %1257 = vmatpush.bf16.msra.mxu0 %v989
  %1258 = vmatpush.bf16.msra.mxu0 %v988
  %1259 = vmatpush.bf16.msra.mxu0 %v987
  %1260 = vmatpush.bf16.msra.mxu0 %v986
  %1261 = vmatmul.bf16.gmra.mxu0 %v403
  %v1262 = vpop.f32.mrf.mxu0
  %v1263 = vadd.f32 %v1244, %v1262
  %v1264 = vpop.f32.mrf.mxu0
  %v1265 = vadd.f32 %v1246, %v1264
  %1266 = vmatmul.bf16.gmra.mxu0 %v419
  %v1267 = vpop.f32.mrf.mxu0
  %v1268 = vadd.f32 %v1249, %v1267
  %v1269 = vpop.f32.mrf.mxu0
  %v1270 = vadd.f32 %v1251, %v1269
  %1271 = vdwg.mxu0
  %1272 = vmatpush.bf16.msra.mxu0 %v1001
  %1273 = vmatpush.bf16.msra.mxu0 %v1000
  %1274 = vmatpush.bf16.msra.mxu0 %v999
  %1275 = vmatpush.bf16.msra.mxu0 %v998
  %1276 = vmatpush.bf16.msra.mxu0 %v997
  %1277 = vmatpush.bf16.msra.mxu0 %v996
  %1278 = vmatpush.bf16.msra.mxu0 %v995
  %1279 = vmatpush.bf16.msra.mxu0 %v994
  %1280 = vmatmul.bf16.gmra.mxu0 %v404
  %v1281 = vpop.f32.mrf.mxu0
  %v1282 = vadd.f32 %v1263, %v1281
  %v1283 = vpop.f32.mrf.mxu0
  %v1284 = vadd.f32 %v1265, %v1283
  %1285 = vmatmul.bf16.gmra.mxu0 %v420
  %v1286 = vpop.f32.mrf.mxu0
  %v1287 = vadd.f32 %v1268, %v1286
  %v1288 = vpop.f32.mrf.mxu0
  %v1289 = vadd.f32 %v1270, %v1288
  %1290 = vdwg.mxu0
  %1291 = vmatpush.bf16.msra.mxu0 %v1009
  %1292 = vmatpush.bf16.msra.mxu0 %v1008
  %1293 = vmatpush.bf16.msra.mxu0 %v1007
  %1294 = vmatpush.bf16.msra.mxu0 %v1006
  %1295 = vmatpush.bf16.msra.mxu0 %v1005
  %1296 = vmatpush.bf16.msra.mxu0 %v1004
  %1297 = vmatpush.bf16.msra.mxu0 %v1003
  %1298 = vmatpush.bf16.msra.mxu0 %v1002
  %1299 = vmatmul.bf16.gmra.mxu0 %v405
  %v1300 = vpop.f32.mrf.mxu0
  %v1301 = vadd.f32 %v1282, %v1300
  %v1302 = vpop.f32.mrf.mxu0
  %v1303 = vadd.f32 %v1284, %v1302
  %1304 = vmatmul.bf16.gmra.mxu0 %v421
  %v1305 = vpop.f32.mrf.mxu0
  %v1306 = vadd.f32 %v1287, %v1305
  %v1307 = vpop.f32.mrf.mxu0
  %v1308 = vadd.f32 %v1289, %v1307
  %1309 = vdwg.mxu0
  %1310 = vmatpush.bf16.msra.mxu0 %v1017
  %1311 = vmatpush.bf16.msra.mxu0 %v1016
  %1312 = vmatpush.bf16.msra.mxu0 %v1015
  %1313 = vmatpush.bf16.msra.mxu0 %v1014
  %1314 = vmatpush.bf16.msra.mxu0 %v1013
  %1315 = vmatpush.bf16.msra.mxu0 %v1012
  %1316 = vmatpush.bf16.msra.mxu0 %v1011
  %1317 = vmatpush.bf16.msra.mxu0 %v1010
  %1318 = vmatmul.bf16.gmra.mxu0 %v406
  %v1319 = vpop.f32.mrf.mxu0
  %v1320 = vadd.f32 %v1301, %v1319
  %v1321 = vpop.f32.mrf.mxu0
  %v1322 = vadd.f32 %v1303, %v1321
  %1323 = vmatmul.bf16.gmra.mxu0 %v422
  %v1324 = vpop.f32.mrf.mxu0
  %v1325 = vadd.f32 %v1306, %v1324
  %v1326 = vpop.f32.mrf.mxu0
  %v1327 = vadd.f32 %v1308, %v1326
  %1328 = vdwg.mxu0
  %1329 = vmatpush.bf16.msra.mxu0 %v1025
  %1330 = vmatpush.bf16.msra.mxu0 %v1024
  %1331 = vmatpush.bf16.msra.mxu0 %v1023
  %1332 = vmatpush.bf16.msra.mxu0 %v1022
  %1333 = vmatpush.bf16.msra.mxu0 %v1021
  %1334 = vmatpush.bf16.msra.mxu0 %v1020
  %1335 = vmatpush.bf16.msra.mxu0 %v1019
  %1336 = vmatpush.bf16.msra.mxu0 %v1018
  %1337 = vmatmul.bf16.gmra.mxu0 %v407
  %v1338 = vpop.f32.mrf.mxu0
  %v1339 = vadd.f32 %v1320, %v1338
  %v1340 = vpop.f32.mrf.mxu0
  %v1341 = vadd.f32 %v1322, %v1340
  %1342 = vmatmul.bf16.gmra.mxu0 %v423
  %v1343 = vpop.f32.mrf.mxu0
  %v1344 = vadd.f32 %v1325, %v1343
  %v1345 = vpop.f32.mrf.mxu0
  %v1346 = vadd.f32 %v1327, %v1345
  %1347 = vdwg.mxu0
  %1348 = vmatpush.bf16.msra.mxu0 %v1033
  %1349 = vmatpush.bf16.msra.mxu0 %v1032
  %1350 = vmatpush.bf16.msra.mxu0 %v1031
  %1351 = vmatpush.bf16.msra.mxu0 %v1030
  %1352 = vmatpush.bf16.msra.mxu0 %v1029
  %1353 = vmatpush.bf16.msra.mxu0 %v1028
  %1354 = vmatpush.bf16.msra.mxu0 %v1027
  %1355 = vmatpush.bf16.msra.mxu0 %v1026
  %1356 = vmatmul.bf16.gmra.mxu0 %v408
  %v1357 = vpop.f32.mrf.mxu0
  %v1358 = vadd.f32 %v1339, %v1357
  %v1359 = vpop.f32.mrf.mxu0
  %v1360 = vadd.f32 %v1341, %v1359
  %1361 = vmatmul.bf16.gmra.mxu0 %v424
  %v1362 = vpop.f32.mrf.mxu0
  %v1363 = vadd.f32 %v1344, %v1362
  %v1364 = vpop.f32.mrf.mxu0
  %v1365 = vadd.f32 %v1346, %v1364
  %1366 = vdwg.mxu0
  %1367 = vmatpush.bf16.msra.mxu0 %v1041
  %1368 = vmatpush.bf16.msra.mxu0 %v1040
  %1369 = vmatpush.bf16.msra.mxu0 %v1039
  %1370 = vmatpush.bf16.msra.mxu0 %v1038
  %1371 = vmatpush.bf16.msra.mxu0 %v1037
  %1372 = vmatpush.bf16.msra.mxu0 %v1036
  %1373 = vmatpush.bf16.msra.mxu0 %v1035
  %1374 = vmatpush.bf16.msra.mxu0 %v1034
  %1375 = vmatmul.bf16.gmra.mxu0 %v409
  %v1376 = vpop.f32.mrf.mxu0
  %v1377 = vadd.f32 %v1358, %v1376
  %v1378 = vpop.f32.mrf.mxu0
  %v1379 = vadd.f32 %v1360, %v1378
  %1380 = vmatmul.bf16.gmra.mxu0 %v425
  %v1381 = vpop.f32.mrf.mxu0
  %v1382 = vadd.f32 %v1363, %v1381
  %v1383 = vpop.f32.mrf.mxu0
  %v1384 = vadd.f32 %v1365, %v1383
  %1385 = vdwg.mxu0
  %1386 = vmatpush.bf16.msra.mxu0 %v1049
  %1387 = vmatpush.bf16.msra.mxu0 %v1048
  %1388 = vmatpush.bf16.msra.mxu0 %v1047
  %1389 = vmatpush.bf16.msra.mxu0 %v1046
  %1390 = vmatpush.bf16.msra.mxu0 %v1045
  %1391 = vmatpush.bf16.msra.mxu0 %v1044
  %1392 = vmatpush.bf16.msra.mxu0 %v1043
  %1393 = vmatpush.bf16.msra.mxu0 %v1042
  %1394 = vmatmul.bf16.gmra.mxu0 %v410
  %v1395 = vpop.f32.mrf.mxu0
  %v1396 = vadd.f32 %v1377, %v1395
  %v1397 = vpop.f32.mrf.mxu0
  %v1398 = vadd.f32 %v1379, %v1397
  %1399 = vmatmul.bf16.gmra.mxu0 %v426
  %v1400 = vpop.f32.mrf.mxu0
  %v1401 = vadd.f32 %v1382, %v1400
  %v1402 = vpop.f32.mrf.mxu0
  %v1403 = vadd.f32 %v1384, %v1402
  %1404 = vdwg.mxu0
  %1405 = vmatpush.bf16.msra.mxu0 %v1057
  %1406 = vmatpush.bf16.msra.mxu0 %v1056
  %1407 = vmatpush.bf16.msra.mxu0 %v1055
  %1408 = vmatpush.bf16.msra.mxu0 %v1054
  %1409 = vmatpush.bf16.msra.mxu0 %v1053
  %1410 = vmatpush.bf16.msra.mxu0 %v1052
  %1411 = vmatpush.bf16.msra.mxu0 %v1051
  %1412 = vmatpush.bf16.msra.mxu0 %v1050
  %1413 = vmatmul.bf16.gmra.mxu0 %v411
  %v1414 = vpop.f32.mrf.mxu0
  %v1415 = vadd.f32 %v1396, %v1414
  %v1416 = vpop.f32.mrf.mxu0
  %v1417 = vadd.f32 %v1398, %v1416
  %1418 = vmatmul.bf16.gmra.mxu0 %v427
  %v1419 = vpop.f32.mrf.mxu0
  %v1420 = vadd.f32 %v1401, %v1419
  %v1421 = vpop.f32.mrf.mxu0
  %v1422 = vadd.f32 %v1403, %v1421
  %1423 = vdwg.mxu0
  %1424 = vmatpush.bf16.msra.mxu0 %v1065
  %1425 = vmatpush.bf16.msra.mxu0 %v1064
  %1426 = vmatpush.bf16.msra.mxu0 %v1063
  %1427 = vmatpush.bf16.msra.mxu0 %v1062
  %1428 = vmatpush.bf16.msra.mxu0 %v1061
  %1429 = vmatpush.bf16.msra.mxu0 %v1060
  %1430 = vmatpush.bf16.msra.mxu0 %v1059
  %1431 = vmatpush.bf16.msra.mxu0 %v1058
  %1432 = vmatmul.bf16.gmra.mxu0 %v412
  %v1433 = vpop.f32.mrf.mxu0
  %v1434 = vadd.f32 %v1415, %v1433
  %v1435 = vpop.f32.mrf.mxu0
  %v1436 = vadd.f32 %v1417, %v1435
  %1437 = vmatmul.bf16.gmra.mxu0 %v428
  %v1438 = vpop.f32.mrf.mxu0
  %v1439 = vadd.f32 %v1420, %v1438
  %v1440 = vpop.f32.mrf.mxu0
  %v1441 = vadd.f32 %v1422, %v1440
  %1442 = vdwg.mxu0
  %1443 = vmatpush.bf16.msra.mxu0 %v1073
  %1444 = vmatpush.bf16.msra.mxu0 %v1072
  %1445 = vmatpush.bf16.msra.mxu0 %v1071
  %1446 = vmatpush.bf16.msra.mxu0 %v1070
  %1447 = vmatpush.bf16.msra.mxu0 %v1069
  %1448 = vmatpush.bf16.msra.mxu0 %v1068
  %1449 = vmatpush.bf16.msra.mxu0 %v1067
  %1450 = vmatpush.bf16.msra.mxu0 %v1066
  %1451 = vmatmul.bf16.gmra.mxu0 %v413
  %v1452 = vpop.f32.mrf.mxu0
  %v1453 = vadd.f32 %v1434, %v1452
  %v1454 = vpop.f32.mrf.mxu0
  %v1455 = vadd.f32 %v1436, %v1454
  %1456 = vmatmul.bf16.gmra.mxu0 %v429
  %v1457 = vpop.f32.mrf.mxu0
  %v1458 = vadd.f32 %v1439, %v1457
  %v1459 = vpop.f32.mrf.mxu0
  %v1460 = vadd.f32 %v1441, %v1459
  %1461 = vdwg.mxu0
  %1462 = vmatpush.bf16.msra.mxu0 %v1081
  %1463 = vmatpush.bf16.msra.mxu0 %v1080
  %1464 = vmatpush.bf16.msra.mxu0 %v1079
  %1465 = vmatpush.bf16.msra.mxu0 %v1078
  %1466 = vmatpush.bf16.msra.mxu0 %v1077
  %1467 = vmatpush.bf16.msra.mxu0 %v1076
  %1468 = vmatpush.bf16.msra.mxu0 %v1075
  %1469 = vmatpush.bf16.msra.mxu0 %v1074
  %1470 = vmatmul.bf16.gmra.mxu0 %v414
  %v1471 = vpop.f32.mrf.mxu0
  %v1472 = vadd.f32 %v1453, %v1471
  %v1473 = vpop.f32.mrf.mxu0
  %v1474 = vadd.f32 %v1455, %v1473
  %1475 = vmatmul.bf16.gmra.mxu0 %v430
  %v1476 = vpop.f32.mrf.mxu0
  %v1477 = vadd.f32 %v1458, %v1476
  %v1478 = vpop.f32.mrf.mxu0
  %v1479 = vadd.f32 %v1460, %v1478
  %1480 = vdwg.mxu0
  %1481 = vmatpush.bf16.msra.mxu0 %v1089
  %1482 = vmatpush.bf16.msra.mxu0 %v1088
  %1483 = vmatpush.bf16.msra.mxu0 %v1087
  %1484 = vmatpush.bf16.msra.mxu0 %v1086
  %1485 = vmatpush.bf16.msra.mxu0 %v1085
  %1486 = vmatpush.bf16.msra.mxu0 %v1084
  %1487 = vmatpush.bf16.msra.mxu0 %v1083
  %1488 = vmatpush.bf16.msra.mxu0 %v1082
  %1489 = vmatmul.bf16.gmra.mxu0 %v415
  %v1490 = vpop.f32.mrf.mxu0
  %v1491 = vadd.f32 %v1472, %v1490
  %v1492 = vpop.f32.mrf.mxu0
  %v1493 = vadd.f32 %v1474, %v1492
  %1494 = vmatmul.bf16.gmra.mxu0 %v431
  %v1495 = vpop.f32.mrf.mxu0
  %v1496 = vadd.f32 %v1477, %v1495
  %v1497 = vpop.f32.mrf.mxu0
  %v1498 = vadd.f32 %v1479, %v1497
  %1499 = vdwg.mxu0
  %1500 = vmatpush.bf16.msra.mxu0 %v1097
  %1501 = vmatpush.bf16.msra.mxu0 %v1096
  %1502 = vmatpush.bf16.msra.mxu0 %v1095
  %1503 = vmatpush.bf16.msra.mxu0 %v1094
  %1504 = vmatpush.bf16.msra.mxu0 %v1093
  %1505 = vmatpush.bf16.msra.mxu0 %v1092
  %1506 = vmatpush.bf16.msra.mxu0 %v1091
  %1507 = vmatpush.bf16.msra.mxu0 %v1090
  %1508 = vmatmul.bf16.gmra.mxu0 %v416
  %v1509 = vpop.f32.mrf.mxu0
  %v1510 = vadd.f32 %v1491, %v1509
  %v1511 = vpop.f32.mrf.mxu0
  %v1512 = vadd.f32 %v1493, %v1511
  %1513 = vmatmul.bf16.gmra.mxu0 %v432
  %v1514 = vpop.f32.mrf.mxu0
  %v1515 = vadd.f32 %v1496, %v1514
  %v1516 = vpop.f32.mrf.mxu0
  %v1517 = vadd.f32 %v1498, %v1516
  %1518 = vdwg.mxu0
  %1519 = vmatpush.bf16.msra.mxu0 %v1105
  %1520 = vmatpush.bf16.msra.mxu0 %v1104
  %1521 = vmatpush.bf16.msra.mxu0 %v1103
  %1522 = vmatpush.bf16.msra.mxu0 %v1102
  %1523 = vmatpush.bf16.msra.mxu0 %v1101
  %1524 = vmatpush.bf16.msra.mxu0 %v1100
  %1525 = vmatpush.bf16.msra.mxu0 %v1099
  %1526 = vmatpush.bf16.msra.mxu0 %v1098
  %1527 = vmatmul.bf16.gmra.mxu0 %v417
  %v1528 = vpop.f32.mrf.mxu0
  %v1529 = vadd.f32 %v1510, %v1528
  %v1530 = vpop.f32.mrf.mxu0
  %v1531 = vadd.f32 %v1512, %v1530
  %1532 = vmatmul.bf16.gmra.mxu0 %v433
  %v1533 = vpop.f32.mrf.mxu0
  %v1534 = vadd.f32 %v1515, %v1533
  %v1535 = vpop.f32.mrf.mxu0
  %v1536 = vadd.f32 %v1517, %v1535
  %1537 = vdwg.mxu0
  %1538 = vst [vmem:[%s3] sm:$0xff] %v1529
  %1539 = vst [vmem:[%s3 + $0x8] sm:$0xff] %v1531
  %1540 = vst [vmem:[%s3 + $0x10] sm:$0xff] %v1534
  %1541 = vst [vmem:[%s3 + $0x18] sm:$0xff] %v1536
  // Predicated region
  $region14: #{_lambda_.15} parent=0 // pred_check
    _
  $region15: #{_lambda_.15} parent=0 // pred_check_branch
    %1543 = sbr.rel (0) target = $region17
  $region16: #{_lambda_.15} parent=0 // pred_region
    _
  $region17: #{_lambda_.15} parent=0 // pred_fallthru
    _
  // Predicated region
  $region18: #{_lambda_.15} parent=0 // pred_check
    _
  $region19: #{_lambda_.15} parent=0 // pred_check_branch
    %1545 = sbr.rel (0) target = $region21
  $region20: #{_lambda_.15} parent=0 // pred_region
    _
  $region21: #{_lambda_.15} parent=0 // pred_fallthru
    _

</llo_original>
